<compile_context>
chip_gen: v7x
topology: tpu7x:2x2x1
jax: 0.10.0
libtpu: 0.0.40
codegen_flags: <defaults>
</compile_context>

<pallas_src>
import functools

import jax
import jax.numpy as jnp
from jax.experimental import pallas as pl
from jax.experimental.pallas import tpu as pltpu


_COS_EPS = 1e-8        # F.cosine_similarity default eps
_DIST_EPS = 1e-6       # F.pairwise_distance / triplet_margin_loss default eps
_SEARCH_MARGIN = 0.9   # hard-coded in the PyTorch forward


def _round_up(x, m):
    return (x + m - 1) // m * m


def _test_loss_kernel(mo_ref, smax_ref, smin_ref, enc_ref, out_ref, *,
                      margin, num_pos, num_negneut, feat_dim):
    tb, d_pad = mo_ref.shape
    ktot = enc_ref.shape[1]

    mo_raw = mo_ref[...]          # (tb, d_pad)      input dtype (bf16 ok)
    enc_raw = enc_ref[...]        # (tb, ktot, d_pad) input dtype

    # ---- anchor . enc_k dot products on the MXU (batched contraction) ----
    dots3 = jnp.einsum(
        "bqd,bkd->bqk",
        mo_raw[:, None, :], enc_raw,
        preferred_element_type=jnp.float32,
        precision=jax.lax.Precision.HIGHEST,
    )                                           # (tb, 1, ktot) f32
    dots = dots3[:, 0, :]                       # (tb, ktot)

    # ---- norms: VPU square + lane reduce, inverse via EUP rsqrt ----
    mo_f32 = mo_raw.astype(jnp.float32)
    enc_f32 = enc_raw.astype(jnp.float32)
    w_mo = jnp.sum(mo_f32 * mo_f32, axis=-1, keepdims=True)          # (tb, 1)
    w_enc = jnp.sum(enc_f32 * enc_f32, axis=-1)                      # (tb, ktot)
    # clamp(||x||, eps) == sqrt(clamp(||x||^2, eps^2))  ->  rsqrt on the EUP
    inv_mo = jax.lax.rsqrt(jnp.maximum(w_mo, _COS_EPS * _COS_EPS))
    inv_enc = jax.lax.rsqrt(jnp.maximum(w_enc, _COS_EPS * _COS_EPS))
    cos = dots * (inv_mo * inv_enc)                                  # (tb, ktot)

    # ---- pos mean / (neg ++ neutral) mean via masked lane reductions ----
    k_ids = jax.lax.broadcasted_iota(jnp.int32, (tb, ktot), 1)
    pos_mask = (k_ids < num_pos).astype(jnp.float32)
    neg_mask = 1.0 - pos_mask
    pos_mean = jnp.sum(cos * pos_mask, axis=-1, keepdims=True) * (1.0 / num_pos)
    neg_mean = jnp.sum(cos * neg_mask, axis=-1, keepdims=True) * (1.0 / num_negneut)
    loss_model = jnp.maximum(neg_mean - pos_mean + margin, 0.0)      # (tb, 1)

    # ---- triplet_margin_loss(model_out, search_min, search_max, margin=0.9) ----
    # PyTorch adds eps=1e-6 to the difference before the L2 norm; mask the eps to the
    # real feature lanes so the zero-padded lanes stay exact.
    lane_ids = jax.lax.broadcasted_iota(jnp.int32, (tb, d_pad), 1)
    eps_vec = jnp.where(lane_ids < feat_dim, _DIST_EPS, 0.0).astype(jnp.float32)
    diff_p = mo_f32 - smin_ref[...].astype(jnp.float32) + eps_vec
    diff_n = mo_f32 - smax_ref[...].astype(jnp.float32) + eps_vec
    d_pos = jnp.sqrt(jnp.sum(diff_p * diff_p, axis=-1, keepdims=True))
    d_neg = jnp.sqrt(jnp.sum(diff_n * diff_n, axis=-1, keepdims=True))
    loss_search = jnp.maximum(d_pos - d_neg + _SEARCH_MARGIN, 0.0)   # (tb, 1)

    total = loss_model + loss_search                                 # (tb, 1)
    # Lane-dense, unmasked store: replicate the per-element loss across 128 lanes.
    out_ref[...] = jnp.broadcast_to(total, out_ref.shape)


def test_loss(model_out, search_max, search_min, pos_encs, neg_encs, neutral_encs,
              margin=0.2, *, block_b=8):
    """Pallas TPU implementation of TestLoss.forward; returns a scalar f32 loss."""
    B, D = model_out.shape
    P, N, U = pos_encs.shape[1], neg_encs.shape[1], neutral_encs.shape[1]
    Ktot = P + N + U

    # Fuse all candidate encodings -> a single contraction per tile.
    encs = jnp.concatenate([pos_encs, neg_encs, neutral_encs], axis=1)  # (B, Ktot, D)

    # Lane-dense feature axis (multiple of 128) and sublane-aligned batch axis.
    d_pad = _round_up(D, 128)
    b_pad = _round_up(B, block_b)

    def pad2(x):
        return jnp.pad(x, ((0, b_pad - B), (0, d_pad - D)))

    mo_p = pad2(model_out)
    smax_p = pad2(search_max)
    smin_p = pad2(search_min)
    encs_p = jnp.pad(encs, ((0, b_pad - B), (0, 0), (0, d_pad - D)))
    # NOTE: if P+N+U ever grows large enough to pressure VMEM, add a second grid
    # axis tiling Ktot and accumulate the pos/neg partial sums in VMEM scratch.

    grid = (b_pad // block_b,)

    kernel = functools.partial(
        _test_loss_kernel,
        margin=float(margin), num_pos=P, num_negneut=N + U, feat_dim=D)

    bytes_in = sum(int(x.size) * x.dtype.itemsize
                   for x in (mo_p, smax_p, smin_p, encs_p))
    cost = pl.CostEstimate(
        flops=int(6 * b_pad * Ktot * d_pad + 16 * b_pad * d_pad),
        transcendentals=int(b_pad * (Ktot + 3)),
        bytes_accessed=int(bytes_in + b_pad * 128 * 4),
    )

    out = pl.pallas_call(
        kernel,
        out_shape=jax.ShapeDtypeStruct((b_pad, 128), jnp.float32),
        grid=grid,
        in_specs=[
            pl.BlockSpec((block_b, d_pad), lambda i: (i, 0)),
            pl.BlockSpec((block_b, d_pad), lambda i: (i, 0)),
            pl.BlockSpec((block_b, d_pad), lambda i: (i, 0)),
            pl.BlockSpec((block_b, Ktot, d_pad), lambda i: (i, 0, 0)),
        ],
        out_specs=pl.BlockSpec((block_b, 128), lambda i: (i, 0)),
        compiler_params=pltpu.CompilerParams(
            dimension_semantics=("parallel",)),
        cost_estimate=cost,
    )(mo_p, smax_p, smin_p, encs_p)

    # Per-batch-element losses sit in lane 0 of each row; mean over the real batch.
    return jnp.mean(out[:B, 0])


def _reference_loss(model_out, search_max, search_min, pos_encs, neg_encs,
                    neutral_encs, margin=0.2):
    """Plain-JAX reference matching the PyTorch forward (for verification)."""
    eps = 1e-8
    a = model_out[:, None, :].astype(jnp.float32)

    def cos(x, y):
        num = jnp.sum(x * y, axis=2)
        nx = jnp.maximum(jnp.sqrt(jnp.sum(x * x, axis=2)), eps)
        ny = jnp.maximum(jnp.sqrt(jnp.sum(y * y, axis=2)), eps)
        return num / (nx * ny)

    pos_s = cos(a, pos_encs.astype(jnp.float32))
    neg_s = cos(a, neg_encs.astype(jnp.float32))
    neut_s = cos(a, neutral_encs.astype(jnp.float32))
    neg_score = jnp.concatenate([neg_s, neut_s], axis=1).mean(axis=1)
    loss_model = jnp.mean(jnp.maximum(neg_score - pos_s.mean(axis=1) + margin, 0.0))

    def dist(x, y):
        d = x.astype(jnp.float32) - y.astype(jnp.float32) + _DIST_EPS
        return jnp.sqrt(jnp.sum(d * d, axis=1))

    loss_search = jnp.mean(jnp.maximum(
        dist(model_out, search_min) - dist(model_out, search_max) + _SEARCH_MARGIN,
        0.0))
    return loss_model + loss_search


if __name__ == "__main__":
    # Small shapes consistent with the module; B=12 exercises batch padding and a
    # 2-step "parallel" grid (block_b=8 -> B padded to 16).
    B, D = 12, 32
    P, N, U = 8, 8, 8
    key = jax.random.PRNGKey(0)
    ks = jax.random.split(key, 6)
    model_out    = jax.random.normal(ks[0], (B, D), dtype=jnp.float32)
    search_max   = jax.random.normal(ks[1], (B, D), dtype=jnp.float32)
    search_min   = jax.random.normal(ks[2], (B, D), dtype=jnp.float32)
    pos_encs     = jax.random.normal(ks[3], (B, P, D), dtype=jnp.float32)
    neg_encs     = jax.random.normal(ks[4], (B, N, D), dtype=jnp.float32)
    neutral_encs = jax.random.normal(ks[5], (B, U, D), dtype=jnp.float32)

    loss = test_loss(model_out, search_max, search_min, pos_encs, neg_encs,
                     neutral_encs, margin=0.2)
    loss = jax.block_until_ready(loss)

    ref = jax.block_until_ready(_reference_loss(
        model_out, search_max, search_min, pos_encs, neg_encs, neutral_encs,
        margin=0.2))
    assert jnp.allclose(loss, ref, atol=1e-3, rtol=1e-3), (loss, ref)

    print("KERNEL_OK")
</pallas_src>

<mosaic_0001>
module attributes {stable_mosaic.version = 11 : i64} {
  func.func @_test_loss_kernel(%arg0: i32, %arg1: memref<8x128xf32, #tpu.memory_space<vmem>>, %arg2: memref<8x128xf32, #tpu.memory_space<vmem>>, %arg3: memref<8x128xf32, #tpu.memory_space<vmem>>, %arg4: memref<8x24x128xf32, #tpu.memory_space<vmem>>, %arg5: memref<8x128xf32, #tpu.memory_space<vmem>>) attributes {dimension_semantics = [#tpu.dimension_semantics<parallel>], iteration_bounds = array<i64: 2>, scalar_prefetch = 0 : i64, scratch_operands = 0 : i64, tpu.core_type = #tpu.core_type<tc>, window_params = [{transform_indices = @transform_0, window_bounds = array<i64: 8, 128>}, {transform_indices = @transform_1, window_bounds = array<i64: 8, 128>}, {transform_indices = @transform_2, window_bounds = array<i64: 8, 128>}, {transform_indices = @transform_3, window_bounds = array<i64: 8, 24, 128>}, {transform_indices = @transform_4, window_bounds = array<i64: 8, 128>}]} {
    %c0 = arith.constant 0 : index
    %c0_0 = arith.constant 0 : index
    %0 = vector.load %arg1[%c0, %c0_0] : memref<8x128xf32, #tpu.memory_space<vmem>>, vector<8x128xf32>
    %c0_1 = arith.constant 0 : index
    %c0_2 = arith.constant 0 : index
    %c0_3 = arith.constant 0 : index
    %1 = vector.load %arg4[%c0_1, %c0_2, %c0_3] : memref<8x24x128xf32, #tpu.memory_space<vmem>>, vector<8x24x128xf32>
    %2 = vector.shape_cast %0 : vector<8x128xf32> to vector<8x1x128xf32>
    "tpu.trace_start"() <{level = 10 : i32, message = "bqd,bkd->bqk"}> : () -> ()
    %cst = arith.constant dense<0.000000e+00> : vector<8x1x24xf32>
    %3 = tpu.matmul %2, %1, %cst {dimension_numbers = #tpu.dot_dimension_numbers<[2], [2], [1], [1], [0, 0, 0, 1, 1, 1], [0], [0]>, precision = #tpu.contract_precision<fp32>} : vector<8x1x128xf32>, vector<8x24x128xf32>, vector<8x1x24xf32> -> vector<8x1x24xf32>
    "tpu.trace_stop"() : () -> ()
    %4 = vector.shape_cast %3 : vector<8x1x24xf32> to vector<8x24xf32>
    %5 = arith.mulf %0, %0 : vector<8x128xf32>
    %cst_4 = arith.constant dense<0.000000e+00> : vector<8xf32>
    %6 = vector.multi_reduction <add>, %5, %cst_4 [1] : vector<8x128xf32> to vector<8xf32>
    %7 = vector.shape_cast %6 : vector<8xf32> to vector<8x1xf32>
    %8 = arith.mulf %1, %1 : vector<8x24x128xf32>
    %cst_5 = arith.constant dense<0.000000e+00> : vector<8x24xf32>
    %9 = vector.multi_reduction <add>, %8, %cst_5 [2] : vector<8x24x128xf32> to vector<8x24xf32>
    %cst_6 = arith.constant 1.000000e-16 : f32
    %10 = vector.broadcast %cst_6 : f32 to vector<8x1xf32>
    %11 = arith.maximumf %7, %10 : vector<8x1xf32>
    %12 = math.rsqrt %11 : vector<8x1xf32>
    %cst_7 = arith.constant 1.000000e-16 : f32
    %13 = vector.broadcast %cst_7 : f32 to vector<8x24xf32>
    %14 = arith.maximumf %9, %13 : vector<8x24xf32>
    %15 = math.rsqrt %14 : vector<8x24xf32>
    %16 = vector.broadcast %12 : vector<8x1xf32> to vector<8x24xf32>
    %17 = arith.mulf %16, %15 : vector<8x24xf32>
    %18 = arith.mulf %4, %17 : vector<8x24xf32>
    %19 = tpu.iota {dimensions = array<i32: 1>} : vector<8x24xi32>
    %c8_i32 = arith.constant 8 : i32
    %20 = vector.broadcast %c8_i32 : i32 to vector<8x24xi32>
    %21 = arith.cmpi slt, %19, %20 : vector<8x24xi32>
    %22 = arith.extui %21 : vector<8x24xi1> to vector<8x24xi32>
    %23 = arith.sitofp %22 : vector<8x24xi32> to vector<8x24xf32>
    %cst_8 = arith.constant 1.000000e+00 : f32
    %24 = vector.broadcast %cst_8 : f32 to vector<8x24xf32>
    %25 = arith.subf %24, %23 : vector<8x24xf32>
    %26 = arith.mulf %18, %23 : vector<8x24xf32>
    %cst_9 = arith.constant dense<0.000000e+00> : vector<8xf32>
    %27 = vector.multi_reduction <add>, %26, %cst_9 [1] : vector<8x24xf32> to vector<8xf32>
    %28 = vector.shape_cast %27 : vector<8xf32> to vector<8x1xf32>
    %cst_10 = arith.constant 1.250000e-01 : f32
    %29 = vector.broadcast %cst_10 : f32 to vector<8x1xf32>
    %30 = arith.mulf %28, %29 : vector<8x1xf32>
    %31 = arith.mulf %18, %25 : vector<8x24xf32>
    %cst_11 = arith.constant dense<0.000000e+00> : vector<8xf32>
    %32 = vector.multi_reduction <add>, %31, %cst_11 [1] : vector<8x24xf32> to vector<8xf32>
    %33 = vector.shape_cast %32 : vector<8xf32> to vector<8x1xf32>
    %cst_12 = arith.constant 6.250000e-02 : f32
    %34 = vector.broadcast %cst_12 : f32 to vector<8x1xf32>
    %35 = arith.mulf %33, %34 : vector<8x1xf32>
    %36 = arith.subf %35, %30 : vector<8x1xf32>
    %cst_13 = arith.constant 2.000000e-01 : f32
    %37 = vector.broadcast %cst_13 : f32 to vector<8x1xf32>
    %38 = arith.addf %36, %37 : vector<8x1xf32>
    %cst_14 = arith.constant 0.000000e+00 : f32
    %39 = vector.broadcast %cst_14 : f32 to vector<8x1xf32>
    %40 = arith.maximumf %38, %39 : vector<8x1xf32>
    %41 = tpu.iota {dimensions = array<i32: 1>} : vector<8x128xi32>
    %c32_i32 = arith.constant 32 : i32
    %42 = vector.broadcast %c32_i32 : i32 to vector<8x128xi32>
    %43 = arith.cmpi slt, %41, %42 : vector<8x128xi32>
    %cst_15 = arith.constant 9.99999997E-7 : f32
    %cst_16 = arith.constant 0.000000e+00 : f32
    %44 = vector.broadcast %cst_15 : f32 to vector<8x128xf32>
    %45 = vector.broadcast %cst_16 : f32 to vector<8x128xf32>
    %46 = arith.select %43, %44, %45 : vector<8x128xi1>, vector<8x128xf32>
    %c0_17 = arith.constant 0 : index
    %c0_18 = arith.constant 0 : index
    %47 = vector.load %arg3[%c0_17, %c0_18] : memref<8x128xf32, #tpu.memory_space<vmem>>, vector<8x128xf32>
    %48 = arith.subf %0, %47 : vector<8x128xf32>
    %49 = arith.addf %48, %46 : vector<8x128xf32>
    %c0_19 = arith.constant 0 : index
    %c0_20 = arith.constant 0 : index
    %50 = vector.load %arg2[%c0_19, %c0_20] : memref<8x128xf32, #tpu.memory_space<vmem>>, vector<8x128xf32>
    %51 = arith.subf %0, %50 : vector<8x128xf32>
    %52 = arith.addf %51, %46 : vector<8x128xf32>
    %53 = arith.mulf %49, %49 : vector<8x128xf32>
    %cst_21 = arith.constant dense<0.000000e+00> : vector<8xf32>
    %54 = vector.multi_reduction <add>, %53, %cst_21 [1] : vector<8x128xf32> to vector<8xf32>
    %55 = vector.shape_cast %54 : vector<8xf32> to vector<8x1xf32>
    %56 = math.sqrt %55 : vector<8x1xf32>
    %57 = arith.mulf %52, %52 : vector<8x128xf32>
    %cst_22 = arith.constant dense<0.000000e+00> : vector<8xf32>
    %58 = vector.multi_reduction <add>, %57, %cst_22 [1] : vector<8x128xf32> to vector<8xf32>
    %59 = vector.shape_cast %58 : vector<8xf32> to vector<8x1xf32>
    %60 = math.sqrt %59 : vector<8x1xf32>
    %61 = arith.subf %56, %60 : vector<8x1xf32>
    %cst_23 = arith.constant 0.899999976 : f32
    %62 = vector.broadcast %cst_23 : f32 to vector<8x1xf32>
    %63 = arith.addf %61, %62 : vector<8x1xf32>
    %cst_24 = arith.constant 0.000000e+00 : f32
    %64 = vector.broadcast %cst_24 : f32 to vector<8x1xf32>
    %65 = arith.maximumf %63, %64 : vector<8x1xf32>
    %66 = arith.addf %40, %65 : vector<8x1xf32>
    %67 = vector.shape_cast %66 : vector<8x1xf32> to vector<8x1xf32>
    %68 = vector.broadcast %67 : vector<8x1xf32> to vector<8x128xf32>
    %c0_25 = arith.constant 0 : index
    %c0_26 = arith.constant 0 : index
    %69 = vector.load %arg5[%c0_25, %c0_26] : memref<8x128xf32, #tpu.memory_space<vmem>>, vector<8x128xf32>
    tpu.vector_store %arg5[%c0_25, %c0_26], %68 {strides = array<i32>} : memref<8x128xf32, #tpu.memory_space<vmem>>, vector<8x128xf32>,
    return
  }
  func.func @transform_0(%arg0: i32) -> (i32, i32) {
    %c0_i32 = arith.constant 0 : i32
    %c0_i32_0 = arith.constant 0 : i32
    return %arg0, %c0_i32 : i32, i32
  }
  func.func @transform_1(%arg0: i32) -> (i32, i32) {
    %c0_i32 = arith.constant 0 : i32
    %c0_i32_0 = arith.constant 0 : i32
    return %arg0, %c0_i32 : i32, i32
  }
  func.func @transform_2(%arg0: i32) -> (i32, i32) {
    %c0_i32 = arith.constant 0 : i32
    %c0_i32_0 = arith.constant 0 : i32
    return %arg0, %c0_i32 : i32, i32
  }
  func.func @transform_3(%arg0: i32) -> (i32, i32, i32) {
    %c0_i32 = arith.constant 0 : i32
    %c0_i32_0 = arith.constant 0 : i32
    %c0_i32_1 = arith.constant 0 : i32
    return %arg0, %c0_i32, %c0_i32_0 : i32, i32, i32
  }
  func.func @transform_4(%arg0: i32) -> (i32, i32) {
    %c0_i32 = arith.constant 0 : i32
    %c0_i32_0 = arith.constant 0 : i32
    return %arg0, %c0_i32 : i32, i32
  }
}

</mosaic_0001>

<llo_original>
// kernel: tpu_custom_call.1
$region0: #{tpu_custom_call.1}
  #allocation0 [shape = 'u32[]', space=smem, size = 0x4, offset = 0x4, fixed_abs, tag = 'smem constant byte address 0x4 - core index']
  #allocation1 [shape = 'u32[144,128]{1,0:T(1,128)}', space=vmem, size = 0x12000, scoped, tag = 'internal scratch']
  %s0 = inlined_call_operand.hbm [shape: f32[16,128], index: 0, kind: input, shape index: {}]
  %s1 = inlined_call_operand.hbm [shape: f32[16,128], index: 1, kind: input, shape index: {}]
  %s2 = inlined_call_operand.hbm [shape: f32[16,128], index: 2, kind: input, shape index: {}]
  %s3 = inlined_call_operand.hbm [shape: f32[16,24,128], index: 3, kind: input, shape index: {}]
  %s4 = inlined_call_operand.hbm [shape: f32[16,128], index: 4, kind: output, shape index: {}]
  %s5 = sld [smem:[#allocation0]]
  $region65: #{tpu_custom_call.1} parent=0
    _
  %s7 = ssub.s32 1, %s5
  %s8 = scalar_select 0, %s7, %s5
  $region1: #{tpu_custom_call.1} parent=0
    #allocation2 [shape = 'u8[8192]{0}', space=vmem, size = 0x2000, scoped, tag = 'input window, operand 0']
    #allocation3 [shape = 's32[2]{0}', space=sflag, size = 0x8, scoped, tag = 'scoped memory for tpu_custom_call.1']
    #allocation4 [shape = 's32[2]{0}', space=sflag, size = 0x8, scoped, tag = 'scoped memory for tpu_custom_call.1']
    #allocation5 [shape = 'u8[8192]{0}', space=vmem, size = 0x2000, scoped, tag = 'input window, operand 1']
    #allocation6 [shape = 's32[2]{0}', space=sflag, size = 0x8, scoped, tag = 'scoped memory for tpu_custom_call.1']
    #allocation7 [shape = 'u8[8192]{0}', space=vmem, size = 0x2000, scoped, tag = 'input window, operand 2']
    #allocation8 [shape = 'u8[196608]{0}', space=vmem, size = 0x30000, scoped, tag = 'input window, operand 3']
    #allocation9 [shape = 's32[2]{0}', space=sflag, size = 0x8, scoped, tag = 'scoped memory for tpu_custom_call.1']
    #allocation10 [shape = 'u8[8192]{0}', space=vmem, size = 0x2000, scoped, tag = 'output window, operand 0']
    %9 = vsyncpa [#allocation3], 0
    %s10 = scalar_lea.sflag [#allocation3], 1
    %11 = vsyncpa %s10, 0
    %12 = vsyncpa [#allocation6], 0
    %s13 = scalar_lea.sflag [#allocation6], 1
    %14 = vsyncpa %s13, 0
    %15 = vsyncpa [#allocation9], 0
    %s16 = scalar_lea.sflag [#allocation9], 1
    %17 = vsyncpa %s16, 0
    %18 = vsyncpa [#allocation4], 0
    %s19 = scalar_lea.sflag [#allocation4], 1
    %20 = vsyncpa %s19, 0
    loop: start=0, step=1, limit=4
    $region2: #{tpu_custom_call.1} parent=1 // loop_pre_header
      _
    $region3: #{tpu_custom_call.1} parent=1 // loop_header
      %s22 = sphi 0, %s26
      %p23 = scmp.ge.s32.totalorder %s22, 4
      %s32 = sphi 0, %s34
      %s35 = sphi 0, %s32
      %s36 = sphi 0, %s35
      %s52 = sphi 0, %s36
      %s58 = sphi 0, %s60
      %s61 = sphi 0, %s58
      %s62 = sphi 0, %s61
      %s78 = sphi 0, %s62
      %s84 = sphi 0, %s86
      %s87 = sphi 0, %s84
      %s88 = sphi 0, %s87
      %s104 = sphi 0, %s88
      %s110 = sphi 0, %s112
      %s113 = sphi 0, %s110
      %s114 = sphi 0, %s113
      %s130 = sphi 0, %s114
      %s136 = sphi 0, %s138
      %s139 = sphi 0, %s136
      %s140 = sphi 0, %s139
      %s156 = sphi 0, %s140
    $region4: #{tpu_custom_call.1} parent=1 // loop_header_branch
      %25 = sbr.rel (%p23) target = $region8
    $region5: #{tpu_custom_call.1} parent=1 // loop_body
      %s27 = ssub.s32 %s22, 1
      %s28 = ssub.s32 %s22, 2
      %s29 = sadd.s32 %s22, 1
      %s30 = ssub.s32 %s22, %s29
      %p31 = scmp.eq.s32.totalorder %s30, 0
      %s33 = sadd.s32 %s32, 1
      %s34 = scalar_select %p31, %s32, %s33
      %p37 = pneg %p31
      %p38 = scmp.eq.s32.totalorder %s22, 1
      %p39 = por %p37, %p38
      %p40 = scmp.ne.s32.totalorder %s32, %s35
      %p41 = scmp.eq.s32.totalorder %s22, 0
      %p42 = por %p40, %p41
      %p43 = scmp.ne.s32.totalorder %s32, %s35
      %p44 = scmp.eq.s32.totalorder %s27, 1
      %p45 = por %p43, %p44
      %p46 = scmp.ne.s32.totalorder %s35, %s36
      %p47 = scmp.eq.s32.totalorder %s27, 0
      %p48 = por %p46, %p47
      %p49 = scmp.ne.s32.totalorder %s35, %s36
      %p50 = scmp.eq.s32.totalorder %s28, 1
      %p51 = por %p49, %p50
      %p53 = scmp.ne.s32.totalorder %s36, %s52
      %p54 = scmp.eq.s32.totalorder %s28, 0
      %p55 = por %p53, %p54
      %s56 = ssub.s32 %s22, %s29
      %p57 = scmp.eq.s32.totalorder %s56, 0
      %s59 = sadd.s32 %s58, 1
      %s60 = scalar_select %p57, %s58, %s59
      %p63 = pneg %p57
      %p64 = scmp.eq.s32.totalorder %s22, 1
      %p65 = por %p63, %p64
      %p66 = scmp.ne.s32.totalorder %s58, %s61
      %p67 = scmp.eq.s32.totalorder %s22, 0
      %p68 = por %p66, %p67
      %p69 = scmp.ne.s32.totalorder %s58, %s61
      %p70 = scmp.eq.s32.totalorder %s27, 1
      %p71 = por %p69, %p70
      %p72 = scmp.ne.s32.totalorder %s61, %s62
      %p73 = scmp.eq.s32.totalorder %s27, 0
      %p74 = por %p72, %p73
      %p75 = scmp.ne.s32.totalorder %s61, %s62
      %p76 = scmp.eq.s32.totalorder %s28, 1
      %p77 = por %p75, %p76
      %p79 = scmp.ne.s32.totalorder %s62, %s78
      %p80 = scmp.eq.s32.totalorder %s28, 0
      %p81 = por %p79, %p80
      %s82 = ssub.s32 %s22, %s29
      %p83 = scmp.eq.s32.totalorder %s82, 0
      %s85 = sadd.s32 %s84, 1
      %s86 = scalar_select %p83, %s84, %s85
      %p89 = pneg %p83
      %p90 = scmp.eq.s32.totalorder %s22, 1
      %p91 = por %p89, %p90
      %p92 = scmp.ne.s32.totalorder %s84, %s87
      %p93 = scmp.eq.s32.totalorder %s22, 0
      %p94 = por %p92, %p93
      %p95 = scmp.ne.s32.totalorder %s84, %s87
      %p96 = scmp.eq.s32.totalorder %s27, 1
      %p97 = por %p95, %p96
      %p98 = scmp.ne.s32.totalorder %s87, %s88
      %p99 = scmp.eq.s32.totalorder %s27, 0
      %p100 = por %p98, %p99
      %p101 = scmp.ne.s32.totalorder %s87, %s88
      %p102 = scmp.eq.s32.totalorder %s28, 1
      %p103 = por %p101, %p102
      %p105 = scmp.ne.s32.totalorder %s88, %s104
      %p106 = scmp.eq.s32.totalorder %s28, 0
      %p107 = por %p105, %p106
      %s108 = ssub.s32 %s22, %s29
      %p109 = scmp.eq.s32.totalorder %s108, 0
      %s111 = sadd.s32 %s110, 1
      %s112 = scalar_select %p109, %s110, %s111
      %p115 = pneg %p109
      %p116 = scmp.eq.s32.totalorder %s22, 1
      %p117 = por %p115, %p116
      %p118 = scmp.ne.s32.totalorder %s110, %s113
      %p119 = scmp.eq.s32.totalorder %s22, 0
      %p120 = por %p118, %p119
      %p121 = scmp.ne.s32.totalorder %s110, %s113
      %p122 = scmp.eq.s32.totalorder %s27, 1
      %p123 = por %p121, %p122
      %p124 = scmp.ne.s32.totalorder %s113, %s114
      %p125 = scmp.eq.s32.totalorder %s27, 0
      %p126 = por %p124, %p125
      %p127 = scmp.ne.s32.totalorder %s113, %s114
      %p128 = scmp.eq.s32.totalorder %s28, 1
      %p129 = por %p127, %p128
      %p131 = scmp.ne.s32.totalorder %s114, %s130
      %p132 = scmp.eq.s32.totalorder %s28, 0
      %p133 = por %p131, %p132
      %s134 = ssub.s32 %s22, %s29
      %p135 = scmp.eq.s32.totalorder %s134, 0
      %s137 = sadd.s32 %s136, 1
      %s138 = scalar_select %p135, %s136, %s137
      %p141 = pneg %p135
      %p142 = scmp.eq.s32.totalorder %s22, 1
      %p143 = por %p141, %p142
      %p144 = scmp.ne.s32.totalorder %s136, %s139
      %p145 = scmp.eq.s32.totalorder %s22, 0
      %p146 = por %p144, %p145
      %p147 = scmp.ne.s32.totalorder %s136, %s139
      %p148 = scmp.eq.s32.totalorder %s27, 1
      %p149 = por %p147, %p148
      %p150 = scmp.ne.s32.totalorder %s139, %s140
      %p151 = scmp.eq.s32.totalorder %s27, 0
      %p152 = por %p150, %p151
      %p153 = scmp.ne.s32.totalorder %s139, %s140
      %p154 = scmp.eq.s32.totalorder %s28, 1
      %p155 = por %p153, %p154
      %p157 = scmp.ne.s32.totalorder %s140, %s156
      %p158 = scmp.eq.s32.totalorder %s28, 0
      %p159 = por %p157, %p158
      %p160 = scmp.le.s32.totalorder 1, %s22
      %p161 = scmp.lt.s32.totalorder %s22, 3
      %p162 = pnand %p160, %p161
      %p163 = pneg %p162
      // Predicated region
      $region9: #{tpu_custom_call.1} parent=5 // pred_check
        _
      $region10: #{tpu_custom_call.1} parent=5 // pred_check_branch
        %165 = sbr.rel (%p162) target = $region12
      $region11: #{tpu_custom_call.1} parent=5 // pred_region
        %s166 = ssub.s32 %s22, 1
      $region12: #{tpu_custom_call.1} parent=5 // pred_fallthru
        _
      %p167 = scmp.lt.s32.totalorder %s22, 2
      // Predicated region
      $region13: #{tpu_custom_call.1} parent=5 // pred_check
        %p168 = pneg %p167
      $region14: #{tpu_custom_call.1} parent=5 // pred_check_branch
        %170 = sbr.rel (%p168) target = $region16
      $region15: #{tpu_custom_call.1} parent=5 // pred_region
        // Predicated region
        $region17: #{tpu_custom_call.1} parent=15 // pred_check
          %p171 = pneg %p42
        $region18: #{tpu_custom_call.1} parent=15 // pred_check_branch
          %173 = sbr.rel (%p171) target = $region20
        $region19: #{tpu_custom_call.1} parent=15 // pred_region
          %s174 = sand.u32 %s32, 1
          %s175 = scalar_lea.sflag [#allocation3], %s174
          %s176 = sand.u32 %s32, 1
          %s177 = smul.addr %s176, 8
          %s178 = scalar_lea.vmem [#allocation2], %s177
          %s180 = ssub.s32 128, 128
          %181 = vsyncadd %s175, %s180
          %s182 = smul.addr %s22, 128
          %s183 = scalar_lea.hbm %s0, %s182
          %s185 = sshll.u32 %s178, 4
          %s186 = int_to_ptr.vmem [resolvable:$true] %s185
          %188 = dma.hbm_to_vmem [thread:$0]  %s183, 128, %s186, %s175
        $region20: #{tpu_custom_call.1} parent=15 // pred_fallthru
          _
        // Predicated region
        $region21: #{tpu_custom_call.1} parent=15 // pred_check
          %p189 = pneg %p68
        $region22: #{tpu_custom_call.1} parent=15 // pred_check_branch
          %191 = sbr.rel (%p189) target = $region24
        $region23: #{tpu_custom_call.1} parent=15 // pred_region
          %s192 = sand.u32 %s22, 1
          %s193 = scalar_lea.sflag [#allocation6], %s192
          %s194 = sand.u32 %s58, 1
          %s195 = smul.addr %s194, 8
          %s196 = scalar_lea.vmem [#allocation5], %s195
          %s198 = ssub.s32 128, 128
          %199 = vsyncadd %s193, %s198
          %s200 = smul.addr %s22, 128
          %s201 = scalar_lea.hbm %s1, %s200
          %s203 = sshll.u32 %s196, 4
          %s204 = int_to_ptr.vmem [resolvable:$true] %s203
          %206 = dma.hbm_to_vmem [thread:$0]  %s201, 128, %s204, %s193
        $region24: #{tpu_custom_call.1} parent=15 // pred_fallthru
          _
        // Predicated region
        $region25: #{tpu_custom_call.1} parent=15 // pred_check
          %p207 = pneg %p94
        $region26: #{tpu_custom_call.1} parent=15 // pred_check_branch
          %209 = sbr.rel (%p207) target = $region28
        $region27: #{tpu_custom_call.1} parent=15 // pred_region
          %s210 = sand.u32 %s22, 1
          %s211 = scalar_lea.sflag [#allocation6], %s210
          %s212 = sand.u32 %s84, 1
          %s213 = smul.addr %s212, 8
          %s214 = scalar_lea.vmem [#allocation7], %s213
          %s216 = ssub.s32 128, 128
          %217 = vsyncadd %s211, %s216
          %s218 = smul.addr %s22, 128
          %s219 = scalar_lea.hbm %s2, %s218
          %s221 = sshll.u32 %s214, 4
          %s222 = int_to_ptr.vmem [resolvable:$true] %s221
          %224 = dma.hbm_to_vmem [thread:$0]  %s219, 128, %s222, %s211
        $region28: #{tpu_custom_call.1} parent=15 // pred_fallthru
          _
        // Predicated region
        $region29: #{tpu_custom_call.1} parent=15 // pred_check
          %p225 = pneg %p120
        $region30: #{tpu_custom_call.1} parent=15 // pred_check_branch
          %227 = sbr.rel (%p225) target = $region32
        $region31: #{tpu_custom_call.1} parent=15 // pred_region
          %s228 = sand.u32 %s110, 1
          %s229 = scalar_lea.sflag [#allocation9], %s228
          %s230 = sand.u32 %s110, 1
          %s231 = smul.addr %s230, 192
          %s232 = scalar_lea.vmem [#allocation8], %s231
          %s233 = smul.u32 8, %s22
          %s235 = ssub.s32 3072, 3072
          %236 = vsyncadd %s229, %s235
          %s237 = smul.addr %s233, 3
          %s238 = smul.addr %s237, 128
          %s239 = scalar_lea.hbm %s3, %s238
          %s240 = sshll.u32 %s232, 4
          %s241 = int_to_ptr.vmem [resolvable:$true] %s240
          %246 = dma.hbm_to_vmem [thread:$0]  %s239, 3072, %s241, %s229, 128, 128, 8
        $region32: #{tpu_custom_call.1} parent=15 // pred_fallthru
          _
      $region16: #{tpu_custom_call.1} parent=5 // pred_fallthru
        _
      %p247 = scmp.le.s32.totalorder 1, %s22
      %p248 = scmp.lt.s32.totalorder %s22, 3
      %p249 = pnand %p247, %p248
      %p250 = pneg %p249
      // Predicated region
      $region33: #{tpu_custom_call.1} parent=5 // pred_check
        _
      $region34: #{tpu_custom_call.1} parent=5 // pred_check_branch
        %252 = sbr.rel (%p249) target = $region36
      $region35: #{tpu_custom_call.1} parent=5 // pred_region
        %s253 = ssub.s32 %s22, 1
        %s254 = sand.u32 %s35, 1
        %s255 = scalar_lea.sflag [#allocation3], %s254
        %s256 = sand.u32 %s35, 1
        %s257 = smul.addr %s256, 8
        %s258 = scalar_lea.vmem [#allocation2], %s257
        // Predicated region
        $region37: #{tpu_custom_call.1} parent=35 // pred_check
          %p259 = pneg %p48
        $region38: #{tpu_custom_call.1} parent=35 // pred_check_branch
          %261 = sbr.rel (%p259) target = $region40
        $region39: #{tpu_custom_call.1} parent=35 // pred_region
          %262 = dma.done %s255, 128
        $region40: #{tpu_custom_call.1} parent=35 // pred_fallthru
          _
        %s263 = sand.u32 %s27, 1
        %s264 = scalar_lea.sflag [#allocation6], %s263
        %s265 = sand.u32 %s61, 1
        %s266 = smul.addr %s265, 8
        %s267 = scalar_lea.vmem [#allocation5], %s266
        // Predicated region
        $region41: #{tpu_custom_call.1} parent=35 // pred_check
          %p268 = pneg %p74
        $region42: #{tpu_custom_call.1} parent=35 // pred_check_branch
          %270 = sbr.rel (%p268) target = $region44
        $region43: #{tpu_custom_call.1} parent=35 // pred_region
          %271 = dma.done %s264, 128
        $region44: #{tpu_custom_call.1} parent=35 // pred_fallthru
          _
        %s272 = sand.u32 %s27, 1
        %s273 = scalar_lea.sflag [#allocation6], %s272
        %s274 = sand.u32 %s87, 1
        %s275 = smul.addr %s274, 8
        %s276 = scalar_lea.vmem [#allocation7], %s275
        // Predicated region
        $region45: #{tpu_custom_call.1} parent=35 // pred_check
          %p277 = pneg %p100
        $region46: #{tpu_custom_call.1} parent=35 // pred_check_branch
          %279 = sbr.rel (%p277) target = $region48
        $region47: #{tpu_custom_call.1} parent=35 // pred_region
          %280 = dma.done %s273, 128
        $region48: #{tpu_custom_call.1} parent=35 // pred_fallthru
          _
        %s281 = sand.u32 %s113, 1
        %s282 = scalar_lea.sflag [#allocation9], %s281
        %s283 = sand.u32 %s113, 1
        %s284 = smul.addr %s283, 192
        %s285 = scalar_lea.vmem [#allocation8], %s284
        // Predicated region
        $region49: #{tpu_custom_call.1} parent=35 // pred_check
          %p286 = pneg %p126
        $region50: #{tpu_custom_call.1} parent=35 // pred_check_branch
          %288 = sbr.rel (%p286) target = $region52
        $region51: #{tpu_custom_call.1} parent=35 // pred_region
          %289 = dma.done %s282, 3072
        $region52: #{tpu_custom_call.1} parent=35 // pred_fallthru
          _
        %s290 = sand.u32 %s35, 1
        %s291 = scalar_lea.sflag [#allocation3], %s290
        %s292 = sand.u32 %s35, 1
        %s293 = smul.addr %s292, 8
        %s294 = scalar_lea.vmem [#allocation2], %s293
        %p295 = pneg %p48
        %p296 = pneg %p45
        %s297 = sand.u32 %s27, 1
        %s298 = scalar_lea.sflag [#allocation6], %s297
        %s299 = sand.u32 %s61, 1
        %s300 = smul.addr %s299, 8
        %s301 = scalar_lea.vmem [#allocation5], %s300
        %p302 = pneg %p74
        %p303 = pneg %p71
        %s304 = sand.u32 %s27, 1
        %s305 = scalar_lea.sflag [#allocation6], %s304
        %s306 = sand.u32 %s87, 1
        %s307 = smul.addr %s306, 8
        %s308 = scalar_lea.vmem [#allocation7], %s307
        %p309 = pneg %p100
        %p310 = pneg %p97
        %s311 = sand.u32 %s113, 1
        %s312 = scalar_lea.sflag [#allocation9], %s311
        %s313 = sand.u32 %s113, 1
        %s314 = smul.addr %s313, 192
        %s315 = scalar_lea.vmem [#allocation8], %s314
        %p316 = pneg %p126
        %p317 = pneg %p123
        %p318 = pneg %p152
        %p319 = pneg %p149
        %s320 = sand.u32 %s139, 1
        %s321 = scalar_lea.sflag [#allocation4], %s320
        %s322 = sand.u32 %s139, 1
        %s323 = smul.addr %s322, 8
        %s324 = scalar_lea.vmem [#allocation10], %s323
        %s325 = smul.u32 8, %s27
        %v326 = vld [vmem:[%s258] sm:$0xff]
        %v327 = vld [vmem:[%s285] sm:$0xff]
        %v328 = vld [vmem:[%s285 + $0x8] sm:$0xff]
        %v329 = vld [vmem:[%s285 + $0x10] sm:$0xff]
        %v330 = vld [vmem:[%s285 + $0x18] sm:$0xff]
        %v331 = vld [vmem:[%s285 + $0x20] sm:$0xff]
        %v332 = vld [vmem:[%s285 + $0x28] sm:$0xff]
        %v333 = vld [vmem:[%s285 + $0x30] sm:$0xff]
        %v334 = vld [vmem:[%s285 + $0x38] sm:$0xff]
        %v335 = vld [vmem:[%s285 + $0x40] sm:$0xff]
        %v336 = vld [vmem:[%s285 + $0x48] sm:$0xff]
        %v337 = vld [vmem:[%s285 + $0x50] sm:$0xff]
        %v338 = vld [vmem:[%s285 + $0x58] sm:$0xff]
        %v339 = vld [vmem:[%s285 + $0x60] sm:$0xff]
        %v340 = vld [vmem:[%s285 + $0x68] sm:$0xff]
        %v341 = vld [vmem:[%s285 + $0x70] sm:$0xff]
        %v342 = vld [vmem:[%s285 + $0x78] sm:$0xff]
        %v343 = vld [vmem:[%s285 + $0x80] sm:$0xff]
        %v344 = vld [vmem:[%s285 + $0x88] sm:$0xff]
        %v345 = vld [vmem:[%s285 + $0x90] sm:$0xff]
        %v346 = vld [vmem:[%s285 + $0x98] sm:$0xff]
        %v347 = vld [vmem:[%s285 + $0xa0] sm:$0xff]
        %v348 = vld [vmem:[%s285 + $0xa8] sm:$0xff]
        %v349 = vld [vmem:[%s285 + $0xb0] sm:$0xff]
        %v350 = vld [vmem:[%s285 + $0xb8] sm:$0xff]
        %v352 = vcombine.high %v326, %v326
        %v354 = vunpack.c.l.s4 1966171168
        %v355 = vunpack.c.0.s8 %v354
        %v356 = vlaneseq
        %v357 = vshrl.u32 %v356, 7
        %v358 = vsub.s32 %v355, %v357
        %v359 = vrot.slane %v326, %v358
        %v361 = vunpack.c.l.s4 1966171168
        %v362 = vunpack.c.0.s8 %v361
        %v363 = vlaneseq
        %v364 = vshrl.u32 %v363, 7
        %v365 = vsub.s32 %v362, %v364
        %v366 = vrot.slane %v352, %v365
        %v367 = vcombine.high %v359, %v359
        %v368 = vcombine.high %v366, %v366
        %v370 = vunpack.c.l.s4 1966171168
        %v371 = vunpack.c.0.s8 %v370
        %v372 = vlaneseq
        %v373 = vshrl.u32 %v372, 7
        %v374 = vsub.s32 %v371, %v373
        %v375 = vrot.slane %v359, %v374
        %v377 = vunpack.c.l.s4 1966171168
        %v378 = vunpack.c.0.s8 %v377
        %v379 = vlaneseq
        %v380 = vshrl.u32 %v379, 7
        %v381 = vsub.s32 %v378, %v380
        %v382 = vrot.slane %v366, %v381
        %v384 = vunpack.c.l.s4 1966171168
        %v385 = vunpack.c.0.s8 %v384
        %v386 = vlaneseq
        %v387 = vshrl.u32 %v386, 7
        %v388 = vsub.s32 %v385, %v387
        %v389 = vrot.slane %v367, %v388
        %v391 = vunpack.c.l.s4 1966171168
        %v392 = vunpack.c.0.s8 %v391
        %v393 = vlaneseq
        %v394 = vshrl.u32 %v393, 7
        %v395 = vsub.s32 %v392, %v394
        %v396 = vrot.slane %v368, %v395
        %v397 = vcombine.high %v375, %v375
        %v398 = vcombine.high %v382, %v382
        %v399 = vcombine.high %v389, %v389
        %v400 = vcombine.high %v396, %v396
        %409 = vmatprep.subr.mxu0 0.0
        %v410 = vand.u32 %v327, 4294901760
        %411 = vmatpush1.xpose.msra.mxu0 %v410
        %412 = vmatprep.subr.mxu0 0.0
        %v413 = vand.u32 %v328, 4294901760
        %414 = vmatpush1.xpose.msra.mxu0 %v413
        %415 = vmatprep.subr.mxu0 0.0
        %v416 = vand.u32 %v329, 4294901760
        %417 = vmatpush1.xpose.msra.mxu0 %v416
        %418 = vmatprep.subr.mxu0 0.0
        %419 = vmatpush1.xpose.msra.mxu0 0.0
        %420 = vmatprep.subr.mxu0 0.0
        %421 = vmatpush1.xpose.msra.mxu0 0.0
        %422 = vmatprep.subr.mxu0 0.0
        %423 = vmatpush1.xpose.msra.mxu0 0.0
        %424 = vmatprep.subr.mxu0 0.0
        %425 = vmatpush1.xpose.msra.mxu0 0.0
        %426 = vmatprep.subr.mxu0 0.0
        %427 = vmatpush1.xpose.msra.mxu0 0.0
        %428 = vmatprep.subr.mxu0 0.0
        %429 = vmatpush1.xpose.msra.mxu0 0.0
        %430 = vmatprep.subr.mxu0 0.0
        %431 = vmatpush1.xpose.msra.mxu0 0.0
        %432 = vmatprep.subr.mxu0 0.0
        %433 = vmatpush1.xpose.msra.mxu0 0.0
        %434 = vmatprep.subr.mxu0 0.0
        %435 = vmatpush1.xpose.msra.mxu0 0.0
        %436 = vmatprep.subr.mxu0 0.0
        %437 = vmatpush1.xpose.msra.mxu0 0.0
        %438 = vmatprep.subr.mxu0 0.0
        %439 = vmatpush1.xpose.msra.mxu0 0.0
        %440 = vmatprep.subr.mxu0 0.0
        %441 = vmatpush1.xpose.msra.mxu0 0.0
        %442 = vmatprep.subr.mxu0 0.0
        %443 = vmatpush1.xpose.msra.mxu0 0.0
        %444 = vmatprep.subr.mxu0 0.0
        %445 = vmatpush1.xpose.msra.mxu0 0.0
        %446 = vmatprep.subr.mxu0 0.0
        %447 = vmatpush1.xpose.msra.mxu0 0.0
        %448 = vmatprep.subr.mxu0 0.0
        %449 = vmatpush1.xpose.msra.mxu0 0.0
        %450 = vmatprep.subr.mxu0 0.0
        %451 = vmatpush1.xpose.msra.mxu0 0.0
        %452 = vmatprep.subr.mxu0 0.0
        %453 = vmatpush1.xpose.msra.mxu0 0.0
        %454 = vmatprep.subr.mxu0 0.0
        %455 = vmatpush1.xpose.msra.mxu0 0.0
        %456 = vmatprep.subr.mxu0 0.0
        %457 = vmatpush1.xpose.msra.mxu0 0.0
        %458 = vmatprep.subr.mxu0 0.0
        %459 = vmatpush1.xpose.msra.mxu0 0.0
        %460 = vmatprep.subr.mxu0 0.0
        %461 = vmatpush1.xpose.msra.mxu0 0.0
        %462 = vmatprep.subr.mxu0 0.0
        %463 = vmatpush1.xpose.msra.mxu0 0.0
        %464 = vmatprep.subr.mxu0 0.0
        %465 = vmatpush1.xpose.msra.mxu0 0.0
        %466 = vmatprep.subr.mxu0 0.0
        %467 = vmatpush1.xpose.msra.mxu0 0.0
        %468 = vmatprep.subr.mxu0 0.0
        %469 = vmatpush1.xpose.msra.mxu0 0.0
        %470 = vmatprep.subr.mxu0 0.0
        %471 = vmatpush1.xpose.msra.mxu0 0.0
        %472 = vmatprep.subr.mxu0 0.0
        %473 = vmatpush1.xpose.msra.mxu0 0.0
        %474 = vmatprep.subr.mxu0 0.0
        %475 = vmatpush1.xpose.msra.mxu0 0.0
        %476 = vmatprep.mubr.f32.mxu0 0.0
        %v477 = vand.u32 %v375, 4294901760
        %v478 = vsub.f32 %v375, %v477
        %v479 = vand.u32 %v478, 4294901760
        %v480 = vsub.f32 %v478, %v479
        %v481 = vand.u32 %v480, 4294901760
        %482 = vmatmul.mubr.f32.gmra.mrb[0].mxu0 %v481
        %v483 = vpop.f32.mrb[0].mxu0
        %v484 = vadd.f32 0.0, %v483
        %v485 = vpop.f32.mrb[0].mxu0
        %486 = vdwg.mxu0
        %487 = vmatprep.subr.mxu0 0.0
        %v488 = vand.u32 %v327, 4294901760
        %v489 = vsub.f32 %v327, %v488
        %v490 = vand.u32 %v489, 4294901760
        %v491 = vsub.f32 %v489, %v490
        %v492 = vand.u32 %v491, 4294901760
        %493 = vmatpush1.xpose.msra.mxu0 %v492
        %494 = vmatprep.subr.mxu0 0.0
        %v495 = vand.u32 %v328, 4294901760
        %v496 = vsub.f32 %v328, %v495
        %v497 = vand.u32 %v496, 4294901760
        %v498 = vsub.f32 %v496, %v497
        %v499 = vand.u32 %v498, 4294901760
        %500 = vmatpush1.xpose.msra.mxu0 %v499
        %501 = vmatprep.subr.mxu0 0.0
        %v502 = vand.u32 %v329, 4294901760
        %v503 = vsub.f32 %v329, %v502
        %v504 = vand.u32 %v503, 4294901760
        %v505 = vsub.f32 %v503, %v504
        %v506 = vand.u32 %v505, 4294901760
        %507 = vmatpush1.xpose.msra.mxu0 %v506
        %508 = vmatprep.subr.mxu0 0.0
        %509 = vmatpush1.xpose.msra.mxu0 0.0
        %510 = vmatprep.subr.mxu0 0.0
        %511 = vmatpush1.xpose.msra.mxu0 0.0
        %512 = vmatprep.subr.mxu0 0.0
        %513 = vmatpush1.xpose.msra.mxu0 0.0
        %514 = vmatprep.subr.mxu0 0.0
        %515 = vmatpush1.xpose.msra.mxu0 0.0
        %516 = vmatprep.subr.mxu0 0.0
        %517 = vmatpush1.xpose.msra.mxu0 0.0
        %518 = vmatprep.subr.mxu0 0.0
        %519 = vmatpush1.xpose.msra.mxu0 0.0
        %520 = vmatprep.subr.mxu0 0.0
        %521 = vmatpush1.xpose.msra.mxu0 0.0
        %522 = vmatprep.subr.mxu0 0.0
        %523 = vmatpush1.xpose.msra.mxu0 0.0
        %524 = vmatprep.subr.mxu0 0.0
        %525 = vmatpush1.xpose.msra.mxu0 0.0
        %526 = vmatprep.subr.mxu0 0.0
        %527 = vmatpush1.xpose.msra.mxu0 0.0
        %528 = vmatprep.subr.mxu0 0.0
        %529 = vmatpush1.xpose.msra.mxu0 0.0
        %530 = vmatprep.subr.mxu0 0.0
        %531 = vmatpush1.xpose.msra.mxu0 0.0
        %532 = vmatprep.subr.mxu0 0.0
        %533 = vmatpush1.xpose.msra.mxu0 0.0
        %534 = vmatprep.subr.mxu0 0.0
        %535 = vmatpush1.xpose.msra.mxu0 0.0
        %536 = vmatprep.subr.mxu0 0.0
        %537 = vmatpush1.xpose.msra.mxu0 0.0
        %538 = vmatprep.subr.mxu0 0.0
        %539 = vmatpush1.xpose.msra.mxu0 0.0
        %540 = vmatprep.subr.mxu0 0.0
        %541 = vmatpush1.xpose.msra.mxu0 0.0
        %542 = vmatprep.subr.mxu0 0.0
        %543 = vmatpush1.xpose.msra.mxu0 0.0
        %544 = vmatprep.subr.mxu0 0.0
        %545 = vmatpush1.xpose.msra.mxu0 0.0
        %546 = vmatprep.subr.mxu0 0.0
        %547 = vmatpush1.xpose.msra.mxu0 0.0
        %548 = vmatprep.subr.mxu0 0.0
        %549 = vmatpush1.xpose.msra.mxu0 0.0
        %550 = vmatprep.subr.mxu0 0.0
        %551 = vmatpush1.xpose.msra.mxu0 0.0
        %552 = vmatprep.subr.mxu0 0.0
        %553 = vmatpush1.xpose.msra.mxu0 0.0
        %554 = vmatprep.subr.mxu0 0.0
        %555 = vmatpush1.xpose.msra.mxu0 0.0
        %556 = vmatprep.subr.mxu0 0.0
        %557 = vmatpush1.xpose.msra.mxu0 0.0
        %558 = vmatprep.subr.mxu0 0.0
        %559 = vmatpush1.xpose.msra.mxu0 0.0
        %560 = vmatprep.subr.mxu0 0.0
        %561 = vmatpush1.xpose.msra.mxu0 0.0
        %562 = vmatprep.subr.mxu0 0.0
        %563 = vmatpush1.xpose.msra.mxu0 0.0
        %564 = vmatprep.subr.mxu0 0.0
        %565 = vmatpush1.xpose.msra.mxu0 0.0
        %566 = vmatprep.mubr.f32.mxu0 0.0
        %v567 = vand.u32 %v375, 4294901760
        %568 = vmatmul.mubr.f32.gmra.mrb[0].mxu0 %v567
        %v569 = vpop.f32.mrb[0].mxu0
        %v570 = vadd.f32 %v484, %v569
        %v571 = vpop.f32.mrb[0].mxu0
        %572 = vdwg.mxu0
        %573 = vmatprep.subr.mxu0 0.0
        %v574 = vand.u32 %v327, 4294901760
        %v575 = vsub.f32 %v327, %v574
        %576 = vmatpush1.xpose.msra.mxu0 %v575
        %577 = vmatprep.subr.mxu0 0.0
        %v578 = vand.u32 %v328, 4294901760
        %v579 = vsub.f32 %v328, %v578
        %580 = vmatpush1.xpose.msra.mxu0 %v579
        %581 = vmatprep.subr.mxu0 0.0
        %v582 = vand.u32 %v329, 4294901760
        %v583 = vsub.f32 %v329, %v582
        %584 = vmatpush1.xpose.msra.mxu0 %v583
        %585 = vmatprep.subr.mxu0 0.0
        %586 = vmatpush1.xpose.msra.mxu0 0.0
        %587 = vmatprep.subr.mxu0 0.0
        %588 = vmatpush1.xpose.msra.mxu0 0.0
        %589 = vmatprep.subr.mxu0 0.0
        %590 = vmatpush1.xpose.msra.mxu0 0.0
        %591 = vmatprep.subr.mxu0 0.0
        %592 = vmatpush1.xpose.msra.mxu0 0.0
        %593 = vmatprep.subr.mxu0 0.0
        %594 = vmatpush1.xpose.msra.mxu0 0.0
        %595 = vmatprep.subr.mxu0 0.0
        %596 = vmatpush1.xpose.msra.mxu0 0.0
        %597 = vmatprep.subr.mxu0 0.0
        %598 = vmatpush1.xpose.msra.mxu0 0.0
        %599 = vmatprep.subr.mxu0 0.0
        %600 = vmatpush1.xpose.msra.mxu0 0.0
        %601 = vmatprep.subr.mxu0 0.0
        %602 = vmatpush1.xpose.msra.mxu0 0.0
        %603 = vmatprep.subr.mxu0 0.0
        %604 = vmatpush1.xpose.msra.mxu0 0.0
        %605 = vmatprep.subr.mxu0 0.0
        %606 = vmatpush1.xpose.msra.mxu0 0.0
        %607 = vmatprep.subr.mxu0 0.0
        %608 = vmatpush1.xpose.msra.mxu0 0.0
        %609 = vmatprep.subr.mxu0 0.0
        %610 = vmatpush1.xpose.msra.mxu0 0.0
        %611 = vmatprep.subr.mxu0 0.0
        %612 = vmatpush1.xpose.msra.mxu0 0.0
        %613 = vmatprep.subr.mxu0 0.0
        %614 = vmatpush1.xpose.msra.mxu0 0.0
        %615 = vmatprep.subr.mxu0 0.0
        %616 = vmatpush1.xpose.msra.mxu0 0.0
        %617 = vmatprep.subr.mxu0 0.0
        %618 = vmatpush1.xpose.msra.mxu0 0.0
        %619 = vmatprep.subr.mxu0 0.0
        %620 = vmatpush1.xpose.msra.mxu0 0.0
        %621 = vmatprep.subr.mxu0 0.0
        %622 = vmatpush1.xpose.msra.mxu0 0.0
        %623 = vmatprep.subr.mxu0 0.0
        %624 = vmatpush1.xpose.msra.mxu0 0.0
        %625 = vmatprep.subr.mxu0 0.0
        %626 = vmatpush1.xpose.msra.mxu0 0.0
        %627 = vmatprep.subr.mxu0 0.0
        %628 = vmatpush1.xpose.msra.mxu0 0.0
        %629 = vmatprep.subr.mxu0 0.0
        %630 = vmatpush1.xpose.msra.mxu0 0.0
        %631 = vmatprep.subr.mxu0 0.0
        %632 = vmatpush1.xpose.msra.mxu0 0.0
        %633 = vmatprep.subr.mxu0 0.0
        %634 = vmatpush1.xpose.msra.mxu0 0.0
        %635 = vmatprep.subr.mxu0 0.0
        %636 = vmatpush1.xpose.msra.mxu0 0.0
        %637 = vmatprep.subr.mxu0 0.0
        %638 = vmatpush1.xpose.msra.mxu0 0.0
        %639 = vmatprep.subr.mxu0 0.0
        %640 = vmatpush1.xpose.msra.mxu0 0.0
        %641 = vmatprep.subr.mxu0 0.0
        %642 = vmatpush1.xpose.msra.mxu0 0.0
        %643 = vmatprep.mubr.f32.mxu0 0.0
        %v644 = vand.u32 %v375, 4294901760
        %v645 = vsub.f32 %v375, %v644
        %646 = vmatmul.mubr.f32.gmra.mrb[0].mxu0 %v645
        %v647 = vpop.f32.mrb[0].mxu0
        %v648 = vadd.f32 %v570, %v647
        %v649 = vpop.f32.mrb[0].mxu0
        %650 = vdwg.mxu0
        %651 = vmatprep.subr.mxu0 0.0
        %v652 = vand.u32 %v327, 4294901760
        %653 = vmatpush1.xpose.msra.mxu0 %v652
        %654 = vmatprep.subr.mxu0 0.0
        %v655 = vand.u32 %v328, 4294901760
        %656 = vmatpush1.xpose.msra.mxu0 %v655
        %657 = vmatprep.subr.mxu0 0.0
        %v658 = vand.u32 %v329, 4294901760
        %659 = vmatpush1.xpose.msra.mxu0 %v658
        %660 = vmatprep.subr.mxu0 0.0
        %661 = vmatpush1.xpose.msra.mxu0 0.0
        %662 = vmatprep.subr.mxu0 0.0
        %663 = vmatpush1.xpose.msra.mxu0 0.0
        %664 = vmatprep.subr.mxu0 0.0
        %665 = vmatpush1.xpose.msra.mxu0 0.0
        %666 = vmatprep.subr.mxu0 0.0
        %667 = vmatpush1.xpose.msra.mxu0 0.0
        %668 = vmatprep.subr.mxu0 0.0
        %669 = vmatpush1.xpose.msra.mxu0 0.0
        %670 = vmatprep.subr.mxu0 0.0
        %671 = vmatpush1.xpose.msra.mxu0 0.0
        %672 = vmatprep.subr.mxu0 0.0
        %673 = vmatpush1.xpose.msra.mxu0 0.0
        %674 = vmatprep.subr.mxu0 0.0
        %675 = vmatpush1.xpose.msra.mxu0 0.0
        %676 = vmatprep.subr.mxu0 0.0
        %677 = vmatpush1.xpose.msra.mxu0 0.0
        %678 = vmatprep.subr.mxu0 0.0
        %679 = vmatpush1.xpose.msra.mxu0 0.0
        %680 = vmatprep.subr.mxu0 0.0
        %681 = vmatpush1.xpose.msra.mxu0 0.0
        %682 = vmatprep.subr.mxu0 0.0
        %683 = vmatpush1.xpose.msra.mxu0 0.0
        %684 = vmatprep.subr.mxu0 0.0
        %685 = vmatpush1.xpose.msra.mxu0 0.0
        %686 = vmatprep.subr.mxu0 0.0
        %687 = vmatpush1.xpose.msra.mxu0 0.0
        %688 = vmatprep.subr.mxu0 0.0
        %689 = vmatpush1.xpose.msra.mxu0 0.0
        %690 = vmatprep.subr.mxu0 0.0
        %691 = vmatpush1.xpose.msra.mxu0 0.0
        %692 = vmatprep.subr.mxu0 0.0
        %693 = vmatpush1.xpose.msra.mxu0 0.0
        %694 = vmatprep.subr.mxu0 0.0
        %695 = vmatpush1.xpose.msra.mxu0 0.0
        %696 = vmatprep.subr.mxu0 0.0
        %697 = vmatpush1.xpose.msra.mxu0 0.0
        %698 = vmatprep.subr.mxu0 0.0
        %699 = vmatpush1.xpose.msra.mxu0 0.0
        %700 = vmatprep.subr.mxu0 0.0
        %701 = vmatpush1.xpose.msra.mxu0 0.0
        %702 = vmatprep.subr.mxu0 0.0
        %703 = vmatpush1.xpose.msra.mxu0 0.0
        %704 = vmatprep.subr.mxu0 0.0
        %705 = vmatpush1.xpose.msra.mxu0 0.0
        %706 = vmatprep.subr.mxu0 0.0
        %707 = vmatpush1.xpose.msra.mxu0 0.0
        %708 = vmatprep.subr.mxu0 0.0
        %709 = vmatpush1.xpose.msra.mxu0 0.0
        %710 = vmatprep.subr.mxu0 0.0
        %711 = vmatpush1.xpose.msra.mxu0 0.0
        %712 = vmatprep.subr.mxu0 0.0
        %713 = vmatpush1.xpose.msra.mxu0 0.0
        %714 = vmatprep.subr.mxu0 0.0
        %715 = vmatpush1.xpose.msra.mxu0 0.0
        %716 = vmatprep.subr.mxu0 0.0
        %717 = vmatpush1.xpose.msra.mxu0 0.0
        %718 = vmatprep.mubr.f32.mxu0 0.0
        %v719 = vand.u32 %v375, 4294901760
        %v720 = vsub.f32 %v375, %v719
        %v721 = vand.u32 %v720, 4294901760
        %722 = vmatmul.mubr.f32.gmra.mrb[0].mxu0 %v721
        %v723 = vpop.f32.mrb[0].mxu0
        %v724 = vadd.f32 %v648, %v723
        %v725 = vpop.f32.mrb[0].mxu0
        %726 = vdwg.mxu0
        %727 = vmatprep.subr.mxu0 0.0
        %v728 = vand.u32 %v327, 4294901760
        %v729 = vsub.f32 %v327, %v728
        %v730 = vand.u32 %v729, 4294901760
        %731 = vmatpush1.xpose.msra.mxu0 %v730
        %732 = vmatprep.subr.mxu0 0.0
        %v733 = vand.u32 %v328, 4294901760
        %v734 = vsub.f32 %v328, %v733
        %v735 = vand.u32 %v734, 4294901760
        %736 = vmatpush1.xpose.msra.mxu0 %v735
        %737 = vmatprep.subr.mxu0 0.0
        %v738 = vand.u32 %v329, 4294901760
        %v739 = vsub.f32 %v329, %v738
        %v740 = vand.u32 %v739, 4294901760
        %741 = vmatpush1.xpose.msra.mxu0 %v740
        %742 = vmatprep.subr.mxu0 0.0
        %743 = vmatpush1.xpose.msra.mxu0 0.0
        %744 = vmatprep.subr.mxu0 0.0
        %745 = vmatpush1.xpose.msra.mxu0 0.0
        %746 = vmatprep.subr.mxu0 0.0
        %747 = vmatpush1.xpose.msra.mxu0 0.0
        %748 = vmatprep.subr.mxu0 0.0
        %749 = vmatpush1.xpose.msra.mxu0 0.0
        %750 = vmatprep.subr.mxu0 0.0
        %751 = vmatpush1.xpose.msra.mxu0 0.0
        %752 = vmatprep.subr.mxu0 0.0
        %753 = vmatpush1.xpose.msra.mxu0 0.0
        %754 = vmatprep.subr.mxu0 0.0
        %755 = vmatpush1.xpose.msra.mxu0 0.0
        %756 = vmatprep.subr.mxu0 0.0
        %757 = vmatpush1.xpose.msra.mxu0 0.0
        %758 = vmatprep.subr.mxu0 0.0
        %759 = vmatpush1.xpose.msra.mxu0 0.0
        %760 = vmatprep.subr.mxu0 0.0
        %761 = vmatpush1.xpose.msra.mxu0 0.0
        %762 = vmatprep.subr.mxu0 0.0
        %763 = vmatpush1.xpose.msra.mxu0 0.0
        %764 = vmatprep.subr.mxu0 0.0
        %765 = vmatpush1.xpose.msra.mxu0 0.0
        %766 = vmatprep.subr.mxu0 0.0
        %767 = vmatpush1.xpose.msra.mxu0 0.0
        %768 = vmatprep.subr.mxu0 0.0
        %769 = vmatpush1.xpose.msra.mxu0 0.0
        %770 = vmatprep.subr.mxu0 0.0
        %771 = vmatpush1.xpose.msra.mxu0 0.0
        %772 = vmatprep.subr.mxu0 0.0
        %773 = vmatpush1.xpose.msra.mxu0 0.0
        %774 = vmatprep.subr.mxu0 0.0
        %775 = vmatpush1.xpose.msra.mxu0 0.0
        %776 = vmatprep.subr.mxu0 0.0
        %777 = vmatpush1.xpose.msra.mxu0 0.0
        %778 = vmatprep.subr.mxu0 0.0
        %779 = vmatpush1.xpose.msra.mxu0 0.0
        %780 = vmatprep.subr.mxu0 0.0
        %781 = vmatpush1.xpose.msra.mxu0 0.0
        %782 = vmatprep.subr.mxu0 0.0
        %783 = vmatpush1.xpose.msra.mxu0 0.0
        %784 = vmatprep.subr.mxu0 0.0
        %785 = vmatpush1.xpose.msra.mxu0 0.0
        %786 = vmatprep.subr.mxu0 0.0
        %787 = vmatpush1.xpose.msra.mxu0 0.0
        %788 = vmatprep.subr.mxu0 0.0
        %789 = vmatpush1.xpose.msra.mxu0 0.0
        %790 = vmatprep.subr.mxu0 0.0
        %791 = vmatpush1.xpose.msra.mxu0 0.0
        %792 = vmatprep.subr.mxu0 0.0
        %793 = vmatpush1.xpose.msra.mxu0 0.0
        %794 = vmatprep.subr.mxu0 0.0
        %795 = vmatpush1.xpose.msra.mxu0 0.0
        %796 = vmatprep.subr.mxu0 0.0
        %797 = vmatpush1.xpose.msra.mxu0 0.0
        %798 = vmatprep.subr.mxu0 0.0
        %799 = vmatpush1.xpose.msra.mxu0 0.0
        %800 = vmatprep.mubr.f32.mxu0 0.0
        %v801 = vand.u32 %v375, 4294901760
        %802 = vmatmul.mubr.f32.gmra.mrb[0].mxu0 %v801
        %v803 = vpop.f32.mrb[0].mxu0
        %v804 = vadd.f32 %v724, %v803
        %v805 = vpop.f32.mrb[0].mxu0
        %806 = vdwg.mxu0
        %807 = vmatprep.subr.mxu0 0.0
        %v808 = vand.u32 %v327, 4294901760
        %809 = vmatpush1.xpose.msra.mxu0 %v808
        %810 = vmatprep.subr.mxu0 0.0
        %v811 = vand.u32 %v328, 4294901760
        %812 = vmatpush1.xpose.msra.mxu0 %v811
        %813 = vmatprep.subr.mxu0 0.0
        %v814 = vand.u32 %v329, 4294901760
        %815 = vmatpush1.xpose.msra.mxu0 %v814
        %816 = vmatprep.subr.mxu0 0.0
        %817 = vmatpush1.xpose.msra.mxu0 0.0
        %818 = vmatprep.subr.mxu0 0.0
        %819 = vmatpush1.xpose.msra.mxu0 0.0
        %820 = vmatprep.subr.mxu0 0.0
        %821 = vmatpush1.xpose.msra.mxu0 0.0
        %822 = vmatprep.subr.mxu0 0.0
        %823 = vmatpush1.xpose.msra.mxu0 0.0
        %824 = vmatprep.subr.mxu0 0.0
        %825 = vmatpush1.xpose.msra.mxu0 0.0
        %826 = vmatprep.subr.mxu0 0.0
        %827 = vmatpush1.xpose.msra.mxu0 0.0
        %828 = vmatprep.subr.mxu0 0.0
        %829 = vmatpush1.xpose.msra.mxu0 0.0
        %830 = vmatprep.subr.mxu0 0.0
        %831 = vmatpush1.xpose.msra.mxu0 0.0
        %832 = vmatprep.subr.mxu0 0.0
        %833 = vmatpush1.xpose.msra.mxu0 0.0
        %834 = vmatprep.subr.mxu0 0.0
        %835 = vmatpush1.xpose.msra.mxu0 0.0
        %836 = vmatprep.subr.mxu0 0.0
        %837 = vmatpush1.xpose.msra.mxu0 0.0
        %838 = vmatprep.subr.mxu0 0.0
        %839 = vmatpush1.xpose.msra.mxu0 0.0
        %840 = vmatprep.subr.mxu0 0.0
        %841 = vmatpush1.xpose.msra.mxu0 0.0
        %842 = vmatprep.subr.mxu0 0.0
        %843 = vmatpush1.xpose.msra.mxu0 0.0
        %844 = vmatprep.subr.mxu0 0.0
        %845 = vmatpush1.xpose.msra.mxu0 0.0
        %846 = vmatprep.subr.mxu0 0.0
        %847 = vmatpush1.xpose.msra.mxu0 0.0
        %848 = vmatprep.subr.mxu0 0.0
        %849 = vmatpush1.xpose.msra.mxu0 0.0
        %850 = vmatprep.subr.mxu0 0.0
        %851 = vmatpush1.xpose.msra.mxu0 0.0
        %852 = vmatprep.subr.mxu0 0.0
        %853 = vmatpush1.xpose.msra.mxu0 0.0
        %854 = vmatprep.subr.mxu0 0.0
        %855 = vmatpush1.xpose.msra.mxu0 0.0
        %856 = vmatprep.subr.mxu0 0.0
        %857 = vmatpush1.xpose.msra.mxu0 0.0
        %858 = vmatprep.subr.mxu0 0.0
        %859 = vmatpush1.xpose.msra.mxu0 0.0
        %860 = vmatprep.subr.mxu0 0.0
        %861 = vmatpush1.xpose.msra.mxu0 0.0
        %862 = vmatprep.subr.mxu0 0.0
        %863 = vmatpush1.xpose.msra.mxu0 0.0
        %864 = vmatprep.subr.mxu0 0.0
        %865 = vmatpush1.xpose.msra.mxu0 0.0
        %866 = vmatprep.subr.mxu0 0.0
        %867 = vmatpush1.xpose.msra.mxu0 0.0
        %868 = vmatprep.subr.mxu0 0.0
        %869 = vmatpush1.xpose.msra.mxu0 0.0
        %870 = vmatprep.subr.mxu0 0.0
        %871 = vmatpush1.xpose.msra.mxu0 0.0
        %872 = vmatprep.subr.mxu0 0.0
        %873 = vmatpush1.xpose.msra.mxu0 0.0
        %874 = vmatprep.mubr.f32.mxu0 0.0
        %v875 = vand.u32 %v375, 4294901760
        %876 = vmatmul.mubr.f32.gmra.mrb[0].mxu0 %v875
        %v877 = vpop.f32.mrb[0].mxu0
        %v878 = vadd.f32 %v804, %v877
        %v879 = vpop.f32.mrb[0].mxu0
        %880 = vdwg.mxu0
        %881 = vmatprep.subr.mxu0 0.0
        %v882 = vand.u32 %v330, 4294901760
        %883 = vmatpush1.xpose.msra.mxu0 %v882
        %884 = vmatprep.subr.mxu0 0.0
        %v885 = vand.u32 %v331, 4294901760
        %886 = vmatpush1.xpose.msra.mxu0 %v885
        %887 = vmatprep.subr.mxu0 0.0
        %v888 = vand.u32 %v332, 4294901760
        %889 = vmatpush1.xpose.msra.mxu0 %v888
        %890 = vmatprep.subr.mxu0 0.0
        %891 = vmatpush1.xpose.msra.mxu0 0.0
        %892 = vmatprep.subr.mxu0 0.0
        %893 = vmatpush1.xpose.msra.mxu0 0.0
        %894 = vmatprep.subr.mxu0 0.0
        %895 = vmatpush1.xpose.msra.mxu0 0.0
        %896 = vmatprep.subr.mxu0 0.0
        %897 = vmatpush1.xpose.msra.mxu0 0.0
        %898 = vmatprep.subr.mxu0 0.0
        %899 = vmatpush1.xpose.msra.mxu0 0.0
        %900 = vmatprep.subr.mxu0 0.0
        %901 = vmatpush1.xpose.msra.mxu0 0.0
        %902 = vmatprep.subr.mxu0 0.0
        %903 = vmatpush1.xpose.msra.mxu0 0.0
        %904 = vmatprep.subr.mxu0 0.0
        %905 = vmatpush1.xpose.msra.mxu0 0.0
        %906 = vmatprep.subr.mxu0 0.0
        %907 = vmatpush1.xpose.msra.mxu0 0.0
        %908 = vmatprep.subr.mxu0 0.0
        %909 = vmatpush1.xpose.msra.mxu0 0.0
        %910 = vmatprep.subr.mxu0 0.0
        %911 = vmatpush1.xpose.msra.mxu0 0.0
        %912 = vmatprep.subr.mxu0 0.0
        %913 = vmatpush1.xpose.msra.mxu0 0.0
        %914 = vmatprep.subr.mxu0 0.0
        %915 = vmatpush1.xpose.msra.mxu0 0.0
        %916 = vmatprep.subr.mxu0 0.0
        %917 = vmatpush1.xpose.msra.mxu0 0.0
        %918 = vmatprep.subr.mxu0 0.0
        %919 = vmatpush1.xpose.msra.mxu0 0.0
        %920 = vmatprep.subr.mxu0 0.0
        %921 = vmatpush1.xpose.msra.mxu0 0.0
        %922 = vmatprep.subr.mxu0 0.0
        %923 = vmatpush1.xpose.msra.mxu0 0.0
        %924 = vmatprep.subr.mxu0 0.0
        %925 = vmatpush1.xpose.msra.mxu0 0.0
        %926 = vmatprep.subr.mxu0 0.0
        %927 = vmatpush1.xpose.msra.mxu0 0.0
        %928 = vmatprep.subr.mxu0 0.0
        %929 = vmatpush1.xpose.msra.mxu0 0.0
        %930 = vmatprep.subr.mxu0 0.0
        %931 = vmatpush1.xpose.msra.mxu0 0.0
        %932 = vmatprep.subr.mxu0 0.0
        %933 = vmatpush1.xpose.msra.mxu0 0.0
        %934 = vmatprep.subr.mxu0 0.0
        %935 = vmatpush1.xpose.msra.mxu0 0.0
        %936 = vmatprep.subr.mxu0 0.0
        %937 = vmatpush1.xpose.msra.mxu0 0.0
        %938 = vmatprep.subr.mxu0 0.0
        %939 = vmatpush1.xpose.msra.mxu0 0.0
        %940 = vmatprep.subr.mxu0 0.0
        %941 = vmatpush1.xpose.msra.mxu0 0.0
        %942 = vmatprep.subr.mxu0 0.0
        %943 = vmatpush1.xpose.msra.mxu0 0.0
        %944 = vmatprep.subr.mxu0 0.0
        %945 = vmatpush1.xpose.msra.mxu0 0.0
        %946 = vmatprep.subr.mxu0 0.0
        %947 = vmatpush1.xpose.msra.mxu0 0.0
        %948 = vmatprep.mubr.f32.mxu0 0.0
        %v949 = vand.u32 %v389, 4294901760
        %v950 = vsub.f32 %v389, %v949
        %v951 = vand.u32 %v950, 4294901760
        %v952 = vsub.f32 %v950, %v951
        %v953 = vand.u32 %v952, 4294901760
        %954 = vmatmul.mubr.f32.gmra.mrb[0].mxu0 %v953
        %v955 = vpop.f32.mrb[0].mxu0
        %v956 = vadd.f32 0.0, %v955
        %v957 = vpop.f32.mrb[0].mxu0
        %958 = vdwg.mxu0
        %959 = vmatprep.subr.mxu0 0.0
        %v960 = vand.u32 %v330, 4294901760
        %v961 = vsub.f32 %v330, %v960
        %v962 = vand.u32 %v961, 4294901760
        %v963 = vsub.f32 %v961, %v962
        %v964 = vand.u32 %v963, 4294901760
        %965 = vmatpush1.xpose.msra.mxu0 %v964
        %966 = vmatprep.subr.mxu0 0.0
        %v967 = vand.u32 %v331, 4294901760
        %v968 = vsub.f32 %v331, %v967
        %v969 = vand.u32 %v968, 4294901760
        %v970 = vsub.f32 %v968, %v969
        %v971 = vand.u32 %v970, 4294901760
        %972 = vmatpush1.xpose.msra.mxu0 %v971
        %973 = vmatprep.subr.mxu0 0.0
        %v974 = vand.u32 %v332, 4294901760
        %v975 = vsub.f32 %v332, %v974
        %v976 = vand.u32 %v975, 4294901760
        %v977 = vsub.f32 %v975, %v976
        %v978 = vand.u32 %v977, 4294901760
        %979 = vmatpush1.xpose.msra.mxu0 %v978
        %980 = vmatprep.subr.mxu0 0.0
        %981 = vmatpush1.xpose.msra.mxu0 0.0
        %982 = vmatprep.subr.mxu0 0.0
        %983 = vmatpush1.xpose.msra.mxu0 0.0
        %984 = vmatprep.subr.mxu0 0.0
        %985 = vmatpush1.xpose.msra.mxu0 0.0
        %986 = vmatprep.subr.mxu0 0.0
        %987 = vmatpush1.xpose.msra.mxu0 0.0
        %988 = vmatprep.subr.mxu0 0.0
        %989 = vmatpush1.xpose.msra.mxu0 0.0
        %990 = vmatprep.subr.mxu0 0.0
        %991 = vmatpush1.xpose.msra.mxu0 0.0
        %992 = vmatprep.subr.mxu0 0.0
        %993 = vmatpush1.xpose.msra.mxu0 0.0
        %994 = vmatprep.subr.mxu0 0.0
        %995 = vmatpush1.xpose.msra.mxu0 0.0
        %996 = vmatprep.subr.mxu0 0.0
        %997 = vmatpush1.xpose.msra.mxu0 0.0
        %998 = vmatprep.subr.mxu0 0.0
        %999 = vmatpush1.xpose.msra.mxu0 0.0
        %1000 = vmatprep.subr.mxu0 0.0
        %1001 = vmatpush1.xpose.msra.mxu0 0.0
        %1002 = vmatprep.subr.mxu0 0.0
        %1003 = vmatpush1.xpose.msra.mxu0 0.0
        %1004 = vmatprep.subr.mxu0 0.0
        %1005 = vmatpush1.xpose.msra.mxu0 0.0
        %1006 = vmatprep.subr.mxu0 0.0
        %1007 = vmatpush1.xpose.msra.mxu0 0.0
        %1008 = vmatprep.subr.mxu0 0.0
        %1009 = vmatpush1.xpose.msra.mxu0 0.0
        %1010 = vmatprep.subr.mxu0 0.0
        %1011 = vmatpush1.xpose.msra.mxu0 0.0
        %1012 = vmatprep.subr.mxu0 0.0
        %1013 = vmatpush1.xpose.msra.mxu0 0.0
        %1014 = vmatprep.subr.mxu0 0.0
        %1015 = vmatpush1.xpose.msra.mxu0 0.0
        %1016 = vmatprep.subr.mxu0 0.0
        %1017 = vmatpush1.xpose.msra.mxu0 0.0
        %1018 = vmatprep.subr.mxu0 0.0
        %1019 = vmatpush1.xpose.msra.mxu0 0.0
        %1020 = vmatprep.subr.mxu0 0.0
        %1021 = vmatpush1.xpose.msra.mxu0 0.0
        %1022 = vmatprep.subr.mxu0 0.0
        %1023 = vmatpush1.xpose.msra.mxu0 0.0
        %1024 = vmatprep.subr.mxu0 0.0
        %1025 = vmatpush1.xpose.msra.mxu0 0.0
        %1026 = vmatprep.subr.mxu0 0.0
        %1027 = vmatpush1.xpose.msra.mxu0 0.0
        %1028 = vmatprep.subr.mxu0 0.0
        %1029 = vmatpush1.xpose.msra.mxu0 0.0
        %1030 = vmatprep.subr.mxu0 0.0
        %1031 = vmatpush1.xpose.msra.mxu0 0.0
        %1032 = vmatprep.subr.mxu0 0.0
        %1033 = vmatpush1.xpose.msra.mxu0 0.0
        %1034 = vmatprep.subr.mxu0 0.0
        %1035 = vmatpush1.xpose.msra.mxu0 0.0
        %1036 = vmatprep.subr.mxu0 0.0
        %1037 = vmatpush1.xpose.msra.mxu0 0.0
        %1038 = vmatprep.mubr.f32.mxu0 0.0
        %v1039 = vand.u32 %v389, 4294901760
        %1040 = vmatmul.mubr.f32.gmra.mrb[0].mxu0 %v1039
        %v1041 = vpop.f32.mrb[0].mxu0
        %v1042 = vadd.f32 %v956, %v1041
        %v1043 = vpop.f32.mrb[0].mxu0
        %1044 = vdwg.mxu0
        %1045 = vmatprep.subr.mxu0 0.0
        %v1046 = vand.u32 %v330, 4294901760
        %v1047 = vsub.f32 %v330, %v1046
        %1048 = vmatpush1.xpose.msra.mxu0 %v1047
        %1049 = vmatprep.subr.mxu0 0.0
        %v1050 = vand.u32 %v331, 4294901760
        %v1051 = vsub.f32 %v331, %v1050
        %1052 = vmatpush1.xpose.msra.mxu0 %v1051
        %1053 = vmatprep.subr.mxu0 0.0
        %v1054 = vand.u32 %v332, 4294901760
        %v1055 = vsub.f32 %v332, %v1054
        %1056 = vmatpush1.xpose.msra.mxu0 %v1055
        %1057 = vmatprep.subr.mxu0 0.0
        %1058 = vmatpush1.xpose.msra.mxu0 0.0
        %1059 = vmatprep.subr.mxu0 0.0
        %1060 = vmatpush1.xpose.msra.mxu0 0.0
        %1061 = vmatprep.subr.mxu0 0.0
        %1062 = vmatpush1.xpose.msra.mxu0 0.0
        %1063 = vmatprep.subr.mxu0 0.0
        %1064 = vmatpush1.xpose.msra.mxu0 0.0
        %1065 = vmatprep.subr.mxu0 0.0
        %1066 = vmatpush1.xpose.msra.mxu0 0.0
        %1067 = vmatprep.subr.mxu0 0.0
        %1068 = vmatpush1.xpose.msra.mxu0 0.0
        %1069 = vmatprep.subr.mxu0 0.0
        %1070 = vmatpush1.xpose.msra.mxu0 0.0
        %1071 = vmatprep.subr.mxu0 0.0
        %1072 = vmatpush1.xpose.msra.mxu0 0.0
        %1073 = vmatprep.subr.mxu0 0.0
        %1074 = vmatpush1.xpose.msra.mxu0 0.0
        %1075 = vmatprep.subr.mxu0 0.0
        %1076 = vmatpush1.xpose.msra.mxu0 0.0
        %1077 = vmatprep.subr.mxu0 0.0
        %1078 = vmatpush1.xpose.msra.mxu0 0.0
        %1079 = vmatprep.subr.mxu0 0.0
        %1080 = vmatpush1.xpose.msra.mxu0 0.0
        %1081 = vmatprep.subr.mxu0 0.0
        %1082 = vmatpush1.xpose.msra.mxu0 0.0
        %1083 = vmatprep.subr.mxu0 0.0
        %1084 = vmatpush1.xpose.msra.mxu0 0.0
        %1085 = vmatprep.subr.mxu0 0.0
        %1086 = vmatpush1.xpose.msra.mxu0 0.0
        %1087 = vmatprep.subr.mxu0 0.0
        %1088 = vmatpush1.xpose.msra.mxu0 0.0
        %1089 = vmatprep.subr.mxu0 0.0
        %1090 = vmatpush1.xpose.msra.mxu0 0.0
        %1091 = vmatprep.subr.mxu0 0.0
        %1092 = vmatpush1.xpose.msra.mxu0 0.0
        %1093 = vmatprep.subr.mxu0 0.0
        %1094 = vmatpush1.xpose.msra.mxu0 0.0
        %1095 = vmatprep.subr.mxu0 0.0
        %1096 = vmatpush1.xpose.msra.mxu0 0.0
        %1097 = vmatprep.subr.mxu0 0.0
        %1098 = vmatpush1.xpose.msra.mxu0 0.0
        %1099 = vmatprep.subr.mxu0 0.0
        %1100 = vmatpush1.xpose.msra.mxu0 0.0
        %1101 = vmatprep.subr.mxu0 0.0
        %1102 = vmatpush1.xpose.msra.mxu0 0.0
        %1103 = vmatprep.subr.mxu0 0.0
        %1104 = vmatpush1.xpose.msra.mxu0 0.0
        %1105 = vmatprep.subr.mxu0 0.0
        %1106 = vmatpush1.xpose.msra.mxu0 0.0
        %1107 = vmatprep.subr.mxu0 0.0
        %1108 = vmatpush1.xpose.msra.mxu0 0.0
        %1109 = vmatprep.subr.mxu0 0.0
        %1110 = vmatpush1.xpose.msra.mxu0 0.0
        %1111 = vmatprep.subr.mxu0 0.0
        %1112 = vmatpush1.xpose.msra.mxu0 0.0
        %1113 = vmatprep.subr.mxu0 0.0
        %1114 = vmatpush1.xpose.msra.mxu0 0.0
        %1115 = vmatprep.mubr.f32.mxu0 0.0
        %v1116 = vand.u32 %v389, 4294901760
        %v1117 = vsub.f32 %v389, %v1116
        %1118 = vmatmul.mubr.f32.gmra.mrb[0].mxu0 %v1117
        %v1119 = vpop.f32.mrb[0].mxu0
        %v1120 = vadd.f32 %v1042, %v1119
        %v1121 = vpop.f32.mrb[0].mxu0
        %1122 = vdwg.mxu0
        %1123 = vmatprep.subr.mxu0 0.0
        %v1124 = vand.u32 %v330, 4294901760
        %1125 = vmatpush1.xpose.msra.mxu0 %v1124
        %1126 = vmatprep.subr.mxu0 0.0
        %v1127 = vand.u32 %v331, 4294901760
        %1128 = vmatpush1.xpose.msra.mxu0 %v1127
        %1129 = vmatprep.subr.mxu0 0.0
        %v1130 = vand.u32 %v332, 4294901760
        %1131 = vmatpush1.xpose.msra.mxu0 %v1130
        %1132 = vmatprep.subr.mxu0 0.0
        %1133 = vmatpush1.xpose.msra.mxu0 0.0
        %1134 = vmatprep.subr.mxu0 0.0
        %1135 = vmatpush1.xpose.msra.mxu0 0.0
        %1136 = vmatprep.subr.mxu0 0.0
        %1137 = vmatpush1.xpose.msra.mxu0 0.0
        %1138 = vmatprep.subr.mxu0 0.0
        %1139 = vmatpush1.xpose.msra.mxu0 0.0
        %1140 = vmatprep.subr.mxu0 0.0
        %1141 = vmatpush1.xpose.msra.mxu0 0.0
        %1142 = vmatprep.subr.mxu0 0.0
        %1143 = vmatpush1.xpose.msra.mxu0 0.0
        %1144 = vmatprep.subr.mxu0 0.0
        %1145 = vmatpush1.xpose.msra.mxu0 0.0
        %1146 = vmatprep.subr.mxu0 0.0
        %1147 = vmatpush1.xpose.msra.mxu0 0.0
        %1148 = vmatprep.subr.mxu0 0.0
        %1149 = vmatpush1.xpose.msra.mxu0 0.0
        %1150 = vmatprep.subr.mxu0 0.0
        %1151 = vmatpush1.xpose.msra.mxu0 0.0
        %1152 = vmatprep.subr.mxu0 0.0
        %1153 = vmatpush1.xpose.msra.mxu0 0.0
        %1154 = vmatprep.subr.mxu0 0.0
        %1155 = vmatpush1.xpose.msra.mxu0 0.0
        %1156 = vmatprep.subr.mxu0 0.0
        %1157 = vmatpush1.xpose.msra.mxu0 0.0
        %1158 = vmatprep.subr.mxu0 0.0
        %1159 = vmatpush1.xpose.msra.mxu0 0.0
        %1160 = vmatprep.subr.mxu0 0.0
        %1161 = vmatpush1.xpose.msra.mxu0 0.0
        %1162 = vmatprep.subr.mxu0 0.0
        %1163 = vmatpush1.xpose.msra.mxu0 0.0
        %1164 = vmatprep.subr.mxu0 0.0
        %1165 = vmatpush1.xpose.msra.mxu0 0.0
        %1166 = vmatprep.subr.mxu0 0.0
        %1167 = vmatpush1.xpose.msra.mxu0 0.0
        %1168 = vmatprep.subr.mxu0 0.0
        %1169 = vmatpush1.xpose.msra.mxu0 0.0
        %1170 = vmatprep.subr.mxu0 0.0
        %1171 = vmatpush1.xpose.msra.mxu0 0.0
        %1172 = vmatprep.subr.mxu0 0.0
        %1173 = vmatpush1.xpose.msra.mxu0 0.0
        %1174 = vmatprep.subr.mxu0 0.0
        %1175 = vmatpush1.xpose.msra.mxu0 0.0
        %1176 = vmatprep.subr.mxu0 0.0
        %1177 = vmatpush1.xpose.msra.mxu0 0.0
        %1178 = vmatprep.subr.mxu0 0.0
        %1179 = vmatpush1.xpose.msra.mxu0 0.0
        %1180 = vmatprep.subr.mxu0 0.0
        %1181 = vmatpush1.xpose.msra.mxu0 0.0
        %1182 = vmatprep.subr.mxu0 0.0
        %1183 = vmatpush1.xpose.msra.mxu0 0.0
        %1184 = vmatprep.subr.mxu0 0.0
        %1185 = vmatpush1.xpose.msra.mxu0 0.0
        %1186 = vmatprep.subr.mxu0 0.0
        %1187 = vmatpush1.xpose.msra.mxu0 0.0
        %1188 = vmatprep.subr.mxu0 0.0
        %1189 = vmatpush1.xpose.msra.mxu0 0.0
        %1190 = vmatprep.mubr.f32.mxu0 0.0
        %v1191 = vand.u32 %v389, 4294901760
        %v1192 = vsub.f32 %v389, %v1191
        %v1193 = vand.u32 %v1192, 4294901760
        %1194 = vmatmul.mubr.f32.gmra.mrb[0].mxu0 %v1193
        %v1195 = vpop.f32.mrb[0].mxu0
        %v1196 = vadd.f32 %v1120, %v1195
        %v1197 = vpop.f32.mrb[0].mxu0
        %1198 = vdwg.mxu0
        %1199 = vmatprep.subr.mxu0 0.0
        %v1200 = vand.u32 %v330, 4294901760
        %v1201 = vsub.f32 %v330, %v1200
        %v1202 = vand.u32 %v1201, 4294901760
        %1203 = vmatpush1.xpose.msra.mxu0 %v1202
        %1204 = vmatprep.subr.mxu0 0.0
        %v1205 = vand.u32 %v331, 4294901760
        %v1206 = vsub.f32 %v331, %v1205
        %v1207 = vand.u32 %v1206, 4294901760
        %1208 = vmatpush1.xpose.msra.mxu0 %v1207
        %1209 = vmatprep.subr.mxu0 0.0
        %v1210 = vand.u32 %v332, 4294901760
        %v1211 = vsub.f32 %v332, %v1210
        %v1212 = vand.u32 %v1211, 4294901760
        %1213 = vmatpush1.xpose.msra.mxu0 %v1212
        %1214 = vmatprep.subr.mxu0 0.0
        %1215 = vmatpush1.xpose.msra.mxu0 0.0
        %1216 = vmatprep.subr.mxu0 0.0
        %1217 = vmatpush1.xpose.msra.mxu0 0.0
        %1218 = vmatprep.subr.mxu0 0.0
        %1219 = vmatpush1.xpose.msra.mxu0 0.0
        %1220 = vmatprep.subr.mxu0 0.0
        %1221 = vmatpush1.xpose.msra.mxu0 0.0
        %1222 = vmatprep.subr.mxu0 0.0
        %1223 = vmatpush1.xpose.msra.mxu0 0.0
        %1224 = vmatprep.subr.mxu0 0.0
        %1225 = vmatpush1.xpose.msra.mxu0 0.0
        %1226 = vmatprep.subr.mxu0 0.0
        %1227 = vmatpush1.xpose.msra.mxu0 0.0
        %1228 = vmatprep.subr.mxu0 0.0
        %1229 = vmatpush1.xpose.msra.mxu0 0.0
        %1230 = vmatprep.subr.mxu0 0.0
        %1231 = vmatpush1.xpose.msra.mxu0 0.0
        %1232 = vmatprep.subr.mxu0 0.0
        %1233 = vmatpush1.xpose.msra.mxu0 0.0
        %1234 = vmatprep.subr.mxu0 0.0
        %1235 = vmatpush1.xpose.msra.mxu0 0.0
        %1236 = vmatprep.subr.mxu0 0.0
        %1237 = vmatpush1.xpose.msra.mxu0 0.0
        %1238 = vmatprep.subr.mxu0 0.0
        %1239 = vmatpush1.xpose.msra.mxu0 0.0
        %1240 = vmatprep.subr.mxu0 0.0
        %1241 = vmatpush1.xpose.msra.mxu0 0.0
        %1242 = vmatprep.subr.mxu0 0.0
        %1243 = vmatpush1.xpose.msra.mxu0 0.0
        %1244 = vmatprep.subr.mxu0 0.0
        %1245 = vmatpush1.xpose.msra.mxu0 0.0
        %1246 = vmatprep.subr.mxu0 0.0
        %1247 = vmatpush1.xpose.msra.mxu0 0.0
        %1248 = vmatprep.subr.mxu0 0.0
        %1249 = vmatpush1.xpose.msra.mxu0 0.0
        %1250 = vmatprep.subr.mxu0 0.0
        %1251 = vmatpush1.xpose.msra.mxu0 0.0
        %1252 = vmatprep.subr.mxu0 0.0
        %1253 = vmatpush1.xpose.msra.mxu0 0.0
        %1254 = vmatprep.subr.mxu0 0.0
        %1255 = vmatpush1.xpose.msra.mxu0 0.0
        %1256 = vmatprep.subr.mxu0 0.0
        %1257 = vmatpush1.xpose.msra.mxu0 0.0
        %1258 = vmatprep.subr.mxu0 0.0
        %1259 = vmatpush1.xpose.msra.mxu0 0.0
        %1260 = vmatprep.subr.mxu0 0.0
        %1261 = vmatpush1.xpose.msra.mxu0 0.0
        %1262 = vmatprep.subr.mxu0 0.0
        %1263 = vmatpush1.xpose.msra.mxu0 0.0
        %1264 = vmatprep.subr.mxu0 0.0
        %1265 = vmatpush1.xpose.msra.mxu0 0.0
        %1266 = vmatprep.subr.mxu0 0.0
        %1267 = vmatpush1.xpose.msra.mxu0 0.0
        %1268 = vmatprep.subr.mxu0 0.0
        %1269 = vmatpush1.xpose.msra.mxu0 0.0
        %1270 = vmatprep.subr.mxu0 0.0
        %1271 = vmatpush1.xpose.msra.mxu0 0.0
        %1272 = vmatprep.mubr.f32.mxu0 0.0
        %v1273 = vand.u32 %v389, 4294901760
        %1274 = vmatmul.mubr.f32.gmra.mrb[0].mxu0 %v1273
        %v1275 = vpop.f32.mrb[0].mxu0
        %v1276 = vadd.f32 %v1196, %v1275
        %v1277 = vpop.f32.mrb[0].mxu0
        %1278 = vdwg.mxu0
        %1279 = vmatprep.subr.mxu0 0.0
        %v1280 = vand.u32 %v330, 4294901760
        %1281 = vmatpush1.xpose.msra.mxu0 %v1280
        %1282 = vmatprep.subr.mxu0 0.0
        %v1283 = vand.u32 %v331, 4294901760
        %1284 = vmatpush1.xpose.msra.mxu0 %v1283
        %1285 = vmatprep.subr.mxu0 0.0
        %v1286 = vand.u32 %v332, 4294901760
        %1287 = vmatpush1.xpose.msra.mxu0 %v1286
        %1288 = vmatprep.subr.mxu0 0.0
        %1289 = vmatpush1.xpose.msra.mxu0 0.0
        %1290 = vmatprep.subr.mxu0 0.0
        %1291 = vmatpush1.xpose.msra.mxu0 0.0
        %1292 = vmatprep.subr.mxu0 0.0
        %1293 = vmatpush1.xpose.msra.mxu0 0.0
        %1294 = vmatprep.subr.mxu0 0.0
        %1295 = vmatpush1.xpose.msra.mxu0 0.0
        %1296 = vmatprep.subr.mxu0 0.0
        %1297 = vmatpush1.xpose.msra.mxu0 0.0
        %1298 = vmatprep.subr.mxu0 0.0
        %1299 = vmatpush1.xpose.msra.mxu0 0.0
        %1300 = vmatprep.subr.mxu0 0.0
        %1301 = vmatpush1.xpose.msra.mxu0 0.0
        %1302 = vmatprep.subr.mxu0 0.0
        %1303 = vmatpush1.xpose.msra.mxu0 0.0
        %1304 = vmatprep.subr.mxu0 0.0
        %1305 = vmatpush1.xpose.msra.mxu0 0.0
        %1306 = vmatprep.subr.mxu0 0.0
        %1307 = vmatpush1.xpose.msra.mxu0 0.0
        %1308 = vmatprep.subr.mxu0 0.0
        %1309 = vmatpush1.xpose.msra.mxu0 0.0
        %1310 = vmatprep.subr.mxu0 0.0
        %1311 = vmatpush1.xpose.msra.mxu0 0.0
        %1312 = vmatprep.subr.mxu0 0.0
        %1313 = vmatpush1.xpose.msra.mxu0 0.0
        %1314 = vmatprep.subr.mxu0 0.0
        %1315 = vmatpush1.xpose.msra.mxu0 0.0
        %1316 = vmatprep.subr.mxu0 0.0
        %1317 = vmatpush1.xpose.msra.mxu0 0.0
        %1318 = vmatprep.subr.mxu0 0.0
        %1319 = vmatpush1.xpose.msra.mxu0 0.0
        %1320 = vmatprep.subr.mxu0 0.0
        %1321 = vmatpush1.xpose.msra.mxu0 0.0
        %1322 = vmatprep.subr.mxu0 0.0
        %1323 = vmatpush1.xpose.msra.mxu0 0.0
        %1324 = vmatprep.subr.mxu0 0.0
        %1325 = vmatpush1.xpose.msra.mxu0 0.0
        %1326 = vmatprep.subr.mxu0 0.0
        %1327 = vmatpush1.xpose.msra.mxu0 0.0
        %1328 = vmatprep.subr.mxu0 0.0
        %1329 = vmatpush1.xpose.msra.mxu0 0.0
        %1330 = vmatprep.subr.mxu0 0.0
        %1331 = vmatpush1.xpose.msra.mxu0 0.0
        %1332 = vmatprep.subr.mxu0 0.0
        %1333 = vmatpush1.xpose.msra.mxu0 0.0
        %1334 = vmatprep.subr.mxu0 0.0
        %1335 = vmatpush1.xpose.msra.mxu0 0.0
        %1336 = vmatprep.subr.mxu0 0.0
        %1337 = vmatpush1.xpose.msra.mxu0 0.0
        %1338 = vmatprep.subr.mxu0 0.0
        %1339 = vmatpush1.xpose.msra.mxu0 0.0
        %1340 = vmatprep.subr.mxu0 0.0
        %1341 = vmatpush1.xpose.msra.mxu0 0.0
        %1342 = vmatprep.subr.mxu0 0.0
        %1343 = vmatpush1.xpose.msra.mxu0 0.0
        %1344 = vmatprep.subr.mxu0 0.0
        %1345 = vmatpush1.xpose.msra.mxu0 0.0
        %1346 = vmatprep.mubr.f32.mxu0 0.0
        %v1347 = vand.u32 %v389, 4294901760
        %1348 = vmatmul.mubr.f32.gmra.mrb[0].mxu0 %v1347
        %v1349 = vpop.f32.mrb[0].mxu0
        %v1350 = vadd.f32 %v1276, %v1349
        %v1351 = vpop.f32.mrb[0].mxu0
        %1352 = vdwg.mxu0
        %1353 = vmatprep.subr.mxu0 0.0
        %v1354 = vand.u32 %v333, 4294901760
        %1355 = vmatpush1.xpose.msra.mxu0 %v1354
        %1356 = vmatprep.subr.mxu0 0.0
        %v1357 = vand.u32 %v334, 4294901760
        %1358 = vmatpush1.xpose.msra.mxu0 %v1357
        %1359 = vmatprep.subr.mxu0 0.0
        %v1360 = vand.u32 %v335, 4294901760
        %1361 = vmatpush1.xpose.msra.mxu0 %v1360
        %1362 = vmatprep.subr.mxu0 0.0
        %1363 = vmatpush1.xpose.msra.mxu0 0.0
        %1364 = vmatprep.subr.mxu0 0.0
        %1365 = vmatpush1.xpose.msra.mxu0 0.0
        %1366 = vmatprep.subr.mxu0 0.0
        %1367 = vmatpush1.xpose.msra.mxu0 0.0
        %1368 = vmatprep.subr.mxu0 0.0
        %1369 = vmatpush1.xpose.msra.mxu0 0.0
        %1370 = vmatprep.subr.mxu0 0.0
        %1371 = vmatpush1.xpose.msra.mxu0 0.0
        %1372 = vmatprep.subr.mxu0 0.0
        %1373 = vmatpush1.xpose.msra.mxu0 0.0
        %1374 = vmatprep.subr.mxu0 0.0
        %1375 = vmatpush1.xpose.msra.mxu0 0.0
        %1376 = vmatprep.subr.mxu0 0.0
        %1377 = vmatpush1.xpose.msra.mxu0 0.0
        %1378 = vmatprep.subr.mxu0 0.0
        %1379 = vmatpush1.xpose.msra.mxu0 0.0
        %1380 = vmatprep.subr.mxu0 0.0
        %1381 = vmatpush1.xpose.msra.mxu0 0.0
        %1382 = vmatprep.subr.mxu0 0.0
        %1383 = vmatpush1.xpose.msra.mxu0 0.0
        %1384 = vmatprep.subr.mxu0 0.0
        %1385 = vmatpush1.xpose.msra.mxu0 0.0
        %1386 = vmatprep.subr.mxu0 0.0
        %1387 = vmatpush1.xpose.msra.mxu0 0.0
        %1388 = vmatprep.subr.mxu0 0.0
        %1389 = vmatpush1.xpose.msra.mxu0 0.0
        %1390 = vmatprep.subr.mxu0 0.0
        %1391 = vmatpush1.xpose.msra.mxu0 0.0
        %1392 = vmatprep.subr.mxu0 0.0
        %1393 = vmatpush1.xpose.msra.mxu0 0.0
        %1394 = vmatprep.subr.mxu0 0.0
        %1395 = vmatpush1.xpose.msra.mxu0 0.0
        %1396 = vmatprep.subr.mxu0 0.0
        %1397 = vmatpush1.xpose.msra.mxu0 0.0
        %1398 = vmatprep.subr.mxu0 0.0
        %1399 = vmatpush1.xpose.msra.mxu0 0.0
        %1400 = vmatprep.subr.mxu0 0.0
        %1401 = vmatpush1.xpose.msra.mxu0 0.0
        %1402 = vmatprep.subr.mxu0 0.0
        %1403 = vmatpush1.xpose.msra.mxu0 0.0
        %1404 = vmatprep.subr.mxu0 0.0
        %1405 = vmatpush1.xpose.msra.mxu0 0.0
        %1406 = vmatprep.subr.mxu0 0.0
        %1407 = vmatpush1.xpose.msra.mxu0 0.0
        %1408 = vmatprep.subr.mxu0 0.0
        %1409 = vmatpush1.xpose.msra.mxu0 0.0
        %1410 = vmatprep.subr.mxu0 0.0
        %1411 = vmatpush1.xpose.msra.mxu0 0.0
        %1412 = vmatprep.subr.mxu0 0.0
        %1413 = vmatpush1.xpose.msra.mxu0 0.0
        %1414 = vmatprep.subr.mxu0 0.0
        %1415 = vmatpush1.xpose.msra.mxu0 0.0
        %1416 = vmatprep.subr.mxu0 0.0
        %1417 = vmatpush1.xpose.msra.mxu0 0.0
        %1418 = vmatprep.subr.mxu0 0.0
        %1419 = vmatpush1.xpose.msra.mxu0 0.0
        %1420 = vmatprep.mubr.f32.mxu0 0.0
        %v1421 = vand.u32 %v397, 4294901760
        %v1422 = vsub.f32 %v397, %v1421
        %v1423 = vand.u32 %v1422, 4294901760
        %v1424 = vsub.f32 %v1422, %v1423
        %v1425 = vand.u32 %v1424, 4294901760
        %1426 = vmatmul.mubr.f32.gmra.mrb[0].mxu0 %v1425
        %v1427 = vpop.f32.mrb[0].mxu0
        %v1428 = vadd.f32 0.0, %v1427
        %v1429 = vpop.f32.mrb[0].mxu0
        %1430 = vdwg.mxu0
        %1431 = vmatprep.subr.mxu0 0.0
        %v1432 = vand.u32 %v333, 4294901760
        %v1433 = vsub.f32 %v333, %v1432
        %v1434 = vand.u32 %v1433, 4294901760
        %v1435 = vsub.f32 %v1433, %v1434
        %v1436 = vand.u32 %v1435, 4294901760
        %1437 = vmatpush1.xpose.msra.mxu0 %v1436
        %1438 = vmatprep.subr.mxu0 0.0
        %v1439 = vand.u32 %v334, 4294901760
        %v1440 = vsub.f32 %v334, %v1439
        %v1441 = vand.u32 %v1440, 4294901760
        %v1442 = vsub.f32 %v1440, %v1441
        %v1443 = vand.u32 %v1442, 4294901760
        %1444 = vmatpush1.xpose.msra.mxu0 %v1443
        %1445 = vmatprep.subr.mxu0 0.0
        %v1446 = vand.u32 %v335, 4294901760
        %v1447 = vsub.f32 %v335, %v1446
        %v1448 = vand.u32 %v1447, 4294901760
        %v1449 = vsub.f32 %v1447, %v1448
        %v1450 = vand.u32 %v1449, 4294901760
        %1451 = vmatpush1.xpose.msra.mxu0 %v1450
        %1452 = vmatprep.subr.mxu0 0.0
        %1453 = vmatpush1.xpose.msra.mxu0 0.0
        %1454 = vmatprep.subr.mxu0 0.0
        %1455 = vmatpush1.xpose.msra.mxu0 0.0
        %1456 = vmatprep.subr.mxu0 0.0
        %1457 = vmatpush1.xpose.msra.mxu0 0.0
        %1458 = vmatprep.subr.mxu0 0.0
        %1459 = vmatpush1.xpose.msra.mxu0 0.0
        %1460 = vmatprep.subr.mxu0 0.0
        %1461 = vmatpush1.xpose.msra.mxu0 0.0
        %1462 = vmatprep.subr.mxu0 0.0
        %1463 = vmatpush1.xpose.msra.mxu0 0.0
        %1464 = vmatprep.subr.mxu0 0.0
        %1465 = vmatpush1.xpose.msra.mxu0 0.0
        %1466 = vmatprep.subr.mxu0 0.0
        %1467 = vmatpush1.xpose.msra.mxu0 0.0
        %1468 = vmatprep.subr.mxu0 0.0
        %1469 = vmatpush1.xpose.msra.mxu0 0.0
        %1470 = vmatprep.subr.mxu0 0.0
        %1471 = vmatpush1.xpose.msra.mxu0 0.0
        %1472 = vmatprep.subr.mxu0 0.0
        %1473 = vmatpush1.xpose.msra.mxu0 0.0
        %1474 = vmatprep.subr.mxu0 0.0
        %1475 = vmatpush1.xpose.msra.mxu0 0.0
        %1476 = vmatprep.subr.mxu0 0.0
        %1477 = vmatpush1.xpose.msra.mxu0 0.0
        %1478 = vmatprep.subr.mxu0 0.0
        %1479 = vmatpush1.xpose.msra.mxu0 0.0
        %1480 = vmatprep.subr.mxu0 0.0
        %1481 = vmatpush1.xpose.msra.mxu0 0.0
        %1482 = vmatprep.subr.mxu0 0.0
        %1483 = vmatpush1.xpose.msra.mxu0 0.0
        %1484 = vmatprep.subr.mxu0 0.0
        %1485 = vmatpush1.xpose.msra.mxu0 0.0
        %1486 = vmatprep.subr.mxu0 0.0
        %1487 = vmatpush1.xpose.msra.mxu0 0.0
        %1488 = vmatprep.subr.mxu0 0.0
        %1489 = vmatpush1.xpose.msra.mxu0 0.0
        %1490 = vmatprep.subr.mxu0 0.0
        %1491 = vmatpush1.xpose.msra.mxu0 0.0
        %1492 = vmatprep.subr.mxu0 0.0
        %1493 = vmatpush1.xpose.msra.mxu0 0.0
        %1494 = vmatprep.subr.mxu0 0.0
        %1495 = vmatpush1.xpose.msra.mxu0 0.0
        %1496 = vmatprep.subr.mxu0 0.0
        %1497 = vmatpush1.xpose.msra.mxu0 0.0
        %1498 = vmatprep.subr.mxu0 0.0
        %1499 = vmatpush1.xpose.msra.mxu0 0.0
        %1500 = vmatprep.subr.mxu0 0.0
        %1501 = vmatpush1.xpose.msra.mxu0 0.0
        %1502 = vmatprep.subr.mxu0 0.0
        %1503 = vmatpush1.xpose.msra.mxu0 0.0
        %1504 = vmatprep.subr.mxu0 0.0
        %1505 = vmatpush1.xpose.msra.mxu0 0.0
        %1506 = vmatprep.subr.mxu0 0.0
        %1507 = vmatpush1.xpose.msra.mxu0 0.0
        %1508 = vmatprep.subr.mxu0 0.0
        %1509 = vmatpush1.xpose.msra.mxu0 0.0
        %1510 = vmatprep.mubr.f32.mxu0 0.0
        %v1511 = vand.u32 %v397, 4294901760
        %1512 = vmatmul.mubr.f32.gmra.mrb[0].mxu0 %v1511
        %v1513 = vpop.f32.mrb[0].mxu0
        %v1514 = vadd.f32 %v1428, %v1513
        %v1515 = vpop.f32.mrb[0].mxu0
        %1516 = vdwg.mxu0
        %1517 = vmatprep.subr.mxu0 0.0
        %v1518 = vand.u32 %v333, 4294901760
        %v1519 = vsub.f32 %v333, %v1518
        %1520 = vmatpush1.xpose.msra.mxu0 %v1519
        %1521 = vmatprep.subr.mxu0 0.0
        %v1522 = vand.u32 %v334, 4294901760
        %v1523 = vsub.f32 %v334, %v1522
        %1524 = vmatpush1.xpose.msra.mxu0 %v1523
        %1525 = vmatprep.subr.mxu0 0.0
        %v1526 = vand.u32 %v335, 4294901760
        %v1527 = vsub.f32 %v335, %v1526
        %1528 = vmatpush1.xpose.msra.mxu0 %v1527
        %1529 = vmatprep.subr.mxu0 0.0
        %1530 = vmatpush1.xpose.msra.mxu0 0.0
        %1531 = vmatprep.subr.mxu0 0.0
        %1532 = vmatpush1.xpose.msra.mxu0 0.0
        %1533 = vmatprep.subr.mxu0 0.0
        %1534 = vmatpush1.xpose.msra.mxu0 0.0
        %1535 = vmatprep.subr.mxu0 0.0
        %1536 = vmatpush1.xpose.msra.mxu0 0.0
        %1537 = vmatprep.subr.mxu0 0.0
        %1538 = vmatpush1.xpose.msra.mxu0 0.0
        %1539 = vmatprep.subr.mxu0 0.0
        %1540 = vmatpush1.xpose.msra.mxu0 0.0
        %1541 = vmatprep.subr.mxu0 0.0
        %1542 = vmatpush1.xpose.msra.mxu0 0.0
        %1543 = vmatprep.subr.mxu0 0.0
        %1544 = vmatpush1.xpose.msra.mxu0 0.0
        %1545 = vmatprep.subr.mxu0 0.0
        %1546 = vmatpush1.xpose.msra.mxu0 0.0
        %1547 = vmatprep.subr.mxu0 0.0
        %1548 = vmatpush1.xpose.msra.mxu0 0.0
        %1549 = vmatprep.subr.mxu0 0.0
        %1550 = vmatpush1.xpose.msra.mxu0 0.0
        %1551 = vmatprep.subr.mxu0 0.0
        %1552 = vmatpush1.xpose.msra.mxu0 0.0
        %1553 = vmatprep.subr.mxu0 0.0
        %1554 = vmatpush1.xpose.msra.mxu0 0.0
        %1555 = vmatprep.subr.mxu0 0.0
        %1556 = vmatpush1.xpose.msra.mxu0 0.0
        %1557 = vmatprep.subr.mxu0 0.0
        %1558 = vmatpush1.xpose.msra.mxu0 0.0
        %1559 = vmatprep.subr.mxu0 0.0
        %1560 = vmatpush1.xpose.msra.mxu0 0.0
        %1561 = vmatprep.subr.mxu0 0.0
        %1562 = vmatpush1.xpose.msra.mxu0 0.0
        %1563 = vmatprep.subr.mxu0 0.0
        %1564 = vmatpush1.xpose.msra.mxu0 0.0
        %1565 = vmatprep.subr.mxu0 0.0
        %1566 = vmatpush1.xpose.msra.mxu0 0.0
        %1567 = vmatprep.subr.mxu0 0.0
        %1568 = vmatpush1.xpose.msra.mxu0 0.0
        %1569 = vmatprep.subr.mxu0 0.0
        %1570 = vmatpush1.xpose.msra.mxu0 0.0
        %1571 = vmatprep.subr.mxu0 0.0
        %1572 = vmatpush1.xpose.msra.mxu0 0.0
        %1573 = vmatprep.subr.mxu0 0.0
        %1574 = vmatpush1.xpose.msra.mxu0 0.0
        %1575 = vmatprep.subr.mxu0 0.0
        %1576 = vmatpush1.xpose.msra.mxu0 0.0
        %1577 = vmatprep.subr.mxu0 0.0
        %1578 = vmatpush1.xpose.msra.mxu0 0.0
        %1579 = vmatprep.subr.mxu0 0.0
        %1580 = vmatpush1.xpose.msra.mxu0 0.0
        %1581 = vmatprep.subr.mxu0 0.0
        %1582 = vmatpush1.xpose.msra.mxu0 0.0
        %1583 = vmatprep.subr.mxu0 0.0
        %1584 = vmatpush1.xpose.msra.mxu0 0.0
        %1585 = vmatprep.subr.mxu0 0.0
        %1586 = vmatpush1.xpose.msra.mxu0 0.0
        %1587 = vmatprep.mubr.f32.mxu0 0.0
        %v1588 = vand.u32 %v397, 4294901760
        %v1589 = vsub.f32 %v397, %v1588
        %1590 = vmatmul.mubr.f32.gmra.mrb[0].mxu0 %v1589
        %v1591 = vpop.f32.mrb[0].mxu0
        %v1592 = vadd.f32 %v1514, %v1591
        %v1593 = vpop.f32.mrb[0].mxu0
        %1594 = vdwg.mxu0
        %1595 = vmatprep.subr.mxu0 0.0
        %v1596 = vand.u32 %v333, 4294901760
        %1597 = vmatpush1.xpose.msra.mxu0 %v1596
        %1598 = vmatprep.subr.mxu0 0.0
        %v1599 = vand.u32 %v334, 4294901760
        %1600 = vmatpush1.xpose.msra.mxu0 %v1599
        %1601 = vmatprep.subr.mxu0 0.0
        %v1602 = vand.u32 %v335, 4294901760
        %1603 = vmatpush1.xpose.msra.mxu0 %v1602
        %1604 = vmatprep.subr.mxu0 0.0
        %1605 = vmatpush1.xpose.msra.mxu0 0.0
        %1606 = vmatprep.subr.mxu0 0.0
        %1607 = vmatpush1.xpose.msra.mxu0 0.0
        %1608 = vmatprep.subr.mxu0 0.0
        %1609 = vmatpush1.xpose.msra.mxu0 0.0
        %1610 = vmatprep.subr.mxu0 0.0
        %1611 = vmatpush1.xpose.msra.mxu0 0.0
        %1612 = vmatprep.subr.mxu0 0.0
        %1613 = vmatpush1.xpose.msra.mxu0 0.0
        %1614 = vmatprep.subr.mxu0 0.0
        %1615 = vmatpush1.xpose.msra.mxu0 0.0
        %1616 = vmatprep.subr.mxu0 0.0
        %1617 = vmatpush1.xpose.msra.mxu0 0.0
        %1618 = vmatprep.subr.mxu0 0.0
        %1619 = vmatpush1.xpose.msra.mxu0 0.0
        %1620 = vmatprep.subr.mxu0 0.0
        %1621 = vmatpush1.xpose.msra.mxu0 0.0
        %1622 = vmatprep.subr.mxu0 0.0
        %1623 = vmatpush1.xpose.msra.mxu0 0.0
        %1624 = vmatprep.subr.mxu0 0.0
        %1625 = vmatpush1.xpose.msra.mxu0 0.0
        %1626 = vmatprep.subr.mxu0 0.0
        %1627 = vmatpush1.xpose.msra.mxu0 0.0
        %1628 = vmatprep.subr.mxu0 0.0
        %1629 = vmatpush1.xpose.msra.mxu0 0.0
        %1630 = vmatprep.subr.mxu0 0.0
        %1631 = vmatpush1.xpose.msra.mxu0 0.0
        %1632 = vmatprep.subr.mxu0 0.0
        %1633 = vmatpush1.xpose.msra.mxu0 0.0
        %1634 = vmatprep.subr.mxu0 0.0
        %1635 = vmatpush1.xpose.msra.mxu0 0.0
        %1636 = vmatprep.subr.mxu0 0.0
        %1637 = vmatpush1.xpose.msra.mxu0 0.0
        %1638 = vmatprep.subr.mxu0 0.0
        %1639 = vmatpush1.xpose.msra.mxu0 0.0
        %1640 = vmatprep.subr.mxu0 0.0
        %1641 = vmatpush1.xpose.msra.mxu0 0.0
        %1642 = vmatprep.subr.mxu0 0.0
        %1643 = vmatpush1.xpose.msra.mxu0 0.0
        %1644 = vmatprep.subr.mxu0 0.0
        %1645 = vmatpush1.xpose.msra.mxu0 0.0
        %1646 = vmatprep.subr.mxu0 0.0
        %1647 = vmatpush1.xpose.msra.mxu0 0.0
        %1648 = vmatprep.subr.mxu0 0.0
        %1649 = vmatpush1.xpose.msra.mxu0 0.0
        %1650 = vmatprep.subr.mxu0 0.0
        %1651 = vmatpush1.xpose.msra.mxu0 0.0
        %1652 = vmatprep.subr.mxu0 0.0
        %1653 = vmatpush1.xpose.msra.mxu0 0.0
        %1654 = vmatprep.subr.mxu0 0.0
        %1655 = vmatpush1.xpose.msra.mxu0 0.0
        %1656 = vmatprep.subr.mxu0 0.0
        %1657 = vmatpush1.xpose.msra.mxu0 0.0
        %1658 = vmatprep.subr.mxu0 0.0
        %1659 = vmatpush1.xpose.msra.mxu0 0.0
        %1660 = vmatprep.subr.mxu0 0.0
        %1661 = vmatpush1.xpose.msra.mxu0 0.0
        %1662 = vmatprep.mubr.f32.mxu0 0.0
        %v1663 = vand.u32 %v397, 4294901760
        %v1664 = vsub.f32 %v397, %v1663
        %v1665 = vand.u32 %v1664, 4294901760
        %1666 = vmatmul.mubr.f32.gmra.mrb[0].mxu0 %v1665
        %v1667 = vpop.f32.mrb[0].mxu0
        %v1668 = vadd.f32 %v1592, %v1667
        %v1669 = vpop.f32.mrb[0].mxu0
        %1670 = vdwg.mxu0
        %1671 = vmatprep.subr.mxu0 0.0
        %v1672 = vand.u32 %v333, 4294901760
        %v1673 = vsub.f32 %v333, %v1672
        %v1674 = vand.u32 %v1673, 4294901760
        %1675 = vmatpush1.xpose.msra.mxu0 %v1674
        %1676 = vmatprep.subr.mxu0 0.0
        %v1677 = vand.u32 %v334, 4294901760
        %v1678 = vsub.f32 %v334, %v1677
        %v1679 = vand.u32 %v1678, 4294901760
        %1680 = vmatpush1.xpose.msra.mxu0 %v1679
        %1681 = vmatprep.subr.mxu0 0.0
        %v1682 = vand.u32 %v335, 4294901760
        %v1683 = vsub.f32 %v335, %v1682
        %v1684 = vand.u32 %v1683, 4294901760
        %1685 = vmatpush1.xpose.msra.mxu0 %v1684
        %1686 = vmatprep.subr.mxu0 0.0
        %1687 = vmatpush1.xpose.msra.mxu0 0.0
        %1688 = vmatprep.subr.mxu0 0.0
        %1689 = vmatpush1.xpose.msra.mxu0 0.0
        %1690 = vmatprep.subr.mxu0 0.0
        %1691 = vmatpush1.xpose.msra.mxu0 0.0
        %1692 = vmatprep.subr.mxu0 0.0
        %1693 = vmatpush1.xpose.msra.mxu0 0.0
        %1694 = vmatprep.subr.mxu0 0.0
        %1695 = vmatpush1.xpose.msra.mxu0 0.0
        %1696 = vmatprep.subr.mxu0 0.0
        %1697 = vmatpush1.xpose.msra.mxu0 0.0
        %1698 = vmatprep.subr.mxu0 0.0
        %1699 = vmatpush1.xpose.msra.mxu0 0.0
        %1700 = vmatprep.subr.mxu0 0.0
        %1701 = vmatpush1.xpose.msra.mxu0 0.0
        %1702 = vmatprep.subr.mxu0 0.0
        %1703 = vmatpush1.xpose.msra.mxu0 0.0
        %1704 = vmatprep.subr.mxu0 0.0
        %1705 = vmatpush1.xpose.msra.mxu0 0.0
        %1706 = vmatprep.subr.mxu0 0.0
        %1707 = vmatpush1.xpose.msra.mxu0 0.0
        %1708 = vmatprep.subr.mxu0 0.0
        %1709 = vmatpush1.xpose.msra.mxu0 0.0
        %1710 = vmatprep.subr.mxu0 0.0
        %1711 = vmatpush1.xpose.msra.mxu0 0.0
        %1712 = vmatprep.subr.mxu0 0.0
        %1713 = vmatpush1.xpose.msra.mxu0 0.0
        %1714 = vmatprep.subr.mxu0 0.0
        %1715 = vmatpush1.xpose.msra.mxu0 0.0
        %1716 = vmatprep.subr.mxu0 0.0
        %1717 = vmatpush1.xpose.msra.mxu0 0.0
        %1718 = vmatprep.subr.mxu0 0.0
        %1719 = vmatpush1.xpose.msra.mxu0 0.0
        %1720 = vmatprep.subr.mxu0 0.0
        %1721 = vmatpush1.xpose.msra.mxu0 0.0
        %1722 = vmatprep.subr.mxu0 0.0
        %1723 = vmatpush1.xpose.msra.mxu0 0.0
        %1724 = vmatprep.subr.mxu0 0.0
        %1725 = vmatpush1.xpose.msra.mxu0 0.0
        %1726 = vmatprep.subr.mxu0 0.0
        %1727 = vmatpush1.xpose.msra.mxu0 0.0
        %1728 = vmatprep.subr.mxu0 0.0
        %1729 = vmatpush1.xpose.msra.mxu0 0.0
        %1730 = vmatprep.subr.mxu0 0.0
        %1731 = vmatpush1.xpose.msra.mxu0 0.0
        %1732 = vmatprep.subr.mxu0 0.0
        %1733 = vmatpush1.xpose.msra.mxu0 0.0
        %1734 = vmatprep.subr.mxu0 0.0
        %1735 = vmatpush1.xpose.msra.mxu0 0.0
        %1736 = vmatprep.subr.mxu0 0.0
        %1737 = vmatpush1.xpose.msra.mxu0 0.0
        %1738 = vmatprep.subr.mxu0 0.0
        %1739 = vmatpush1.xpose.msra.mxu0 0.0
        %1740 = vmatprep.subr.mxu0 0.0
        %1741 = vmatpush1.xpose.msra.mxu0 0.0
        %1742 = vmatprep.subr.mxu0 0.0
        %1743 = vmatpush1.xpose.msra.mxu0 0.0
        %1744 = vmatprep.mubr.f32.mxu0 0.0
        %v1745 = vand.u32 %v397, 4294901760
        %1746 = vmatmul.mubr.f32.gmra.mrb[0].mxu0 %v1745
        %v1747 = vpop.f32.mrb[0].mxu0
        %v1748 = vadd.f32 %v1668, %v1747
        %v1749 = vpop.f32.mrb[0].mxu0
        %1750 = vdwg.mxu0
        %1751 = vmatprep.subr.mxu0 0.0
        %v1752 = vand.u32 %v333, 4294901760
        %1753 = vmatpush1.xpose.msra.mxu0 %v1752
        %1754 = vmatprep.subr.mxu0 0.0
        %v1755 = vand.u32 %v334, 4294901760
        %1756 = vmatpush1.xpose.msra.mxu0 %v1755
        %1757 = vmatprep.subr.mxu0 0.0
        %v1758 = vand.u32 %v335, 4294901760
        %1759 = vmatpush1.xpose.msra.mxu0 %v1758
        %1760 = vmatprep.subr.mxu0 0.0
        %1761 = vmatpush1.xpose.msra.mxu0 0.0
        %1762 = vmatprep.subr.mxu0 0.0
        %1763 = vmatpush1.xpose.msra.mxu0 0.0
        %1764 = vmatprep.subr.mxu0 0.0
        %1765 = vmatpush1.xpose.msra.mxu0 0.0
        %1766 = vmatprep.subr.mxu0 0.0
        %1767 = vmatpush1.xpose.msra.mxu0 0.0
        %1768 = vmatprep.subr.mxu0 0.0
        %1769 = vmatpush1.xpose.msra.mxu0 0.0
        %1770 = vmatprep.subr.mxu0 0.0
        %1771 = vmatpush1.xpose.msra.mxu0 0.0
        %1772 = vmatprep.subr.mxu0 0.0
        %1773 = vmatpush1.xpose.msra.mxu0 0.0
        %1774 = vmatprep.subr.mxu0 0.0
        %1775 = vmatpush1.xpose.msra.mxu0 0.0
        %1776 = vmatprep.subr.mxu0 0.0
        %1777 = vmatpush1.xpose.msra.mxu0 0.0
        %1778 = vmatprep.subr.mxu0 0.0
        %1779 = vmatpush1.xpose.msra.mxu0 0.0
        %1780 = vmatprep.subr.mxu0 0.0
        %1781 = vmatpush1.xpose.msra.mxu0 0.0
        %1782 = vmatprep.subr.mxu0 0.0
        %1783 = vmatpush1.xpose.msra.mxu0 0.0
        %1784 = vmatprep.subr.mxu0 0.0
        %1785 = vmatpush1.xpose.msra.mxu0 0.0
        %1786 = vmatprep.subr.mxu0 0.0
        %1787 = vmatpush1.xpose.msra.mxu0 0.0
        %1788 = vmatprep.subr.mxu0 0.0
        %1789 = vmatpush1.xpose.msra.mxu0 0.0
        %1790 = vmatprep.subr.mxu0 0.0
        %1791 = vmatpush1.xpose.msra.mxu0 0.0
        %1792 = vmatprep.subr.mxu0 0.0
        %1793 = vmatpush1.xpose.msra.mxu0 0.0
        %1794 = vmatprep.subr.mxu0 0.0
        %1795 = vmatpush1.xpose.msra.mxu0 0.0
        %1796 = vmatprep.subr.mxu0 0.0
        %1797 = vmatpush1.xpose.msra.mxu0 0.0
        %1798 = vmatprep.subr.mxu0 0.0
        %1799 = vmatpush1.xpose.msra.mxu0 0.0
        %1800 = vmatprep.subr.mxu0 0.0
        %1801 = vmatpush1.xpose.msra.mxu0 0.0
        %1802 = vmatprep.subr.mxu0 0.0
        %1803 = vmatpush1.xpose.msra.mxu0 0.0
        %1804 = vmatprep.subr.mxu0 0.0
        %1805 = vmatpush1.xpose.msra.mxu0 0.0
        %1806 = vmatprep.subr.mxu0 0.0
        %1807 = vmatpush1.xpose.msra.mxu0 0.0
        %1808 = vmatprep.subr.mxu0 0.0
        %1809 = vmatpush1.xpose.msra.mxu0 0.0
        %1810 = vmatprep.subr.mxu0 0.0
        %1811 = vmatpush1.xpose.msra.mxu0 0.0
        %1812 = vmatprep.subr.mxu0 0.0
        %1813 = vmatpush1.xpose.msra.mxu0 0.0
        %1814 = vmatprep.subr.mxu0 0.0
        %1815 = vmatpush1.xpose.msra.mxu0 0.0
        %1816 = vmatprep.subr.mxu0 0.0
        %1817 = vmatpush1.xpose.msra.mxu0 0.0
        %1818 = vmatprep.mubr.f32.mxu0 0.0
        %v1819 = vand.u32 %v397, 4294901760
        %1820 = vmatmul.mubr.f32.gmra.mrb[0].mxu0 %v1819
        %v1821 = vpop.f32.mrb[0].mxu0
        %v1822 = vadd.f32 %v1748, %v1821
        %v1823 = vpop.f32.mrb[0].mxu0
        %1824 = vdwg.mxu0
        %1825 = vmatprep.subr.mxu0 0.0
        %v1826 = vand.u32 %v336, 4294901760
        %1827 = vmatpush1.xpose.msra.mxu0 %v1826
        %1828 = vmatprep.subr.mxu0 0.0
        %v1829 = vand.u32 %v337, 4294901760
        %1830 = vmatpush1.xpose.msra.mxu0 %v1829
        %1831 = vmatprep.subr.mxu0 0.0
        %v1832 = vand.u32 %v338, 4294901760
        %1833 = vmatpush1.xpose.msra.mxu0 %v1832
        %1834 = vmatprep.subr.mxu0 0.0
        %1835 = vmatpush1.xpose.msra.mxu0 0.0
        %1836 = vmatprep.subr.mxu0 0.0
        %1837 = vmatpush1.xpose.msra.mxu0 0.0
        %1838 = vmatprep.subr.mxu0 0.0
        %1839 = vmatpush1.xpose.msra.mxu0 0.0
        %1840 = vmatprep.subr.mxu0 0.0
        %1841 = vmatpush1.xpose.msra.mxu0 0.0
        %1842 = vmatprep.subr.mxu0 0.0
        %1843 = vmatpush1.xpose.msra.mxu0 0.0
        %1844 = vmatprep.subr.mxu0 0.0
        %1845 = vmatpush1.xpose.msra.mxu0 0.0
        %1846 = vmatprep.subr.mxu0 0.0
        %1847 = vmatpush1.xpose.msra.mxu0 0.0
        %1848 = vmatprep.subr.mxu0 0.0
        %1849 = vmatpush1.xpose.msra.mxu0 0.0
        %1850 = vmatprep.subr.mxu0 0.0
        %1851 = vmatpush1.xpose.msra.mxu0 0.0
        %1852 = vmatprep.subr.mxu0 0.0
        %1853 = vmatpush1.xpose.msra.mxu0 0.0
        %1854 = vmatprep.subr.mxu0 0.0
        %1855 = vmatpush1.xpose.msra.mxu0 0.0
        %1856 = vmatprep.subr.mxu0 0.0
        %1857 = vmatpush1.xpose.msra.mxu0 0.0
        %1858 = vmatprep.subr.mxu0 0.0
        %1859 = vmatpush1.xpose.msra.mxu0 0.0
        %1860 = vmatprep.subr.mxu0 0.0
        %1861 = vmatpush1.xpose.msra.mxu0 0.0
        %1862 = vmatprep.subr.mxu0 0.0
        %1863 = vmatpush1.xpose.msra.mxu0 0.0
        %1864 = vmatprep.subr.mxu0 0.0
        %1865 = vmatpush1.xpose.msra.mxu0 0.0
        %1866 = vmatprep.subr.mxu0 0.0
        %1867 = vmatpush1.xpose.msra.mxu0 0.0
        %1868 = vmatprep.subr.mxu0 0.0
        %1869 = vmatpush1.xpose.msra.mxu0 0.0
        %1870 = vmatprep.subr.mxu0 0.0
        %1871 = vmatpush1.xpose.msra.mxu0 0.0
        %1872 = vmatprep.subr.mxu0 0.0
        %1873 = vmatpush1.xpose.msra.mxu0 0.0
        %1874 = vmatprep.subr.mxu0 0.0
        %1875 = vmatpush1.xpose.msra.mxu0 0.0
        %1876 = vmatprep.subr.mxu0 0.0
        %1877 = vmatpush1.xpose.msra.mxu0 0.0
        %1878 = vmatprep.subr.mxu0 0.0
        %1879 = vmatpush1.xpose.msra.mxu0 0.0
        %1880 = vmatprep.subr.mxu0 0.0
        %1881 = vmatpush1.xpose.msra.mxu0 0.0
        %1882 = vmatprep.subr.mxu0 0.0
        %1883 = vmatpush1.xpose.msra.mxu0 0.0
        %1884 = vmatprep.subr.mxu0 0.0
        %1885 = vmatpush1.xpose.msra.mxu0 0.0
        %1886 = vmatprep.subr.mxu0 0.0
        %1887 = vmatpush1.xpose.msra.mxu0 0.0
        %1888 = vmatprep.subr.mxu0 0.0
        %1889 = vmatpush1.xpose.msra.mxu0 0.0
        %1890 = vmatprep.subr.mxu0 0.0
        %1891 = vmatpush1.xpose.msra.mxu0 0.0
        %1892 = vmatprep.mubr.f32.mxu0 0.0
        %v1893 = vand.u32 %v399, 4294901760
        %v1894 = vsub.f32 %v399, %v1893
        %v1895 = vand.u32 %v1894, 4294901760
        %v1896 = vsub.f32 %v1894, %v1895
        %v1897 = vand.u32 %v1896, 4294901760
        %1898 = vmatmul.mubr.f32.gmra.mrb[0].mxu0 %v1897
        %v1899 = vpop.f32.mrb[0].mxu0
        %v1900 = vadd.f32 0.0, %v1899
        %v1901 = vpop.f32.mrb[0].mxu0
        %1902 = vdwg.mxu0
        %1903 = vmatprep.subr.mxu0 0.0
        %v1904 = vand.u32 %v336, 4294901760
        %v1905 = vsub.f32 %v336, %v1904
        %v1906 = vand.u32 %v1905, 4294901760
        %v1907 = vsub.f32 %v1905, %v1906
        %v1908 = vand.u32 %v1907, 4294901760
        %1909 = vmatpush1.xpose.msra.mxu0 %v1908
        %1910 = vmatprep.subr.mxu0 0.0
        %v1911 = vand.u32 %v337, 4294901760
        %v1912 = vsub.f32 %v337, %v1911
        %v1913 = vand.u32 %v1912, 4294901760
        %v1914 = vsub.f32 %v1912, %v1913
        %v1915 = vand.u32 %v1914, 4294901760
        %1916 = vmatpush1.xpose.msra.mxu0 %v1915
        %1917 = vmatprep.subr.mxu0 0.0
        %v1918 = vand.u32 %v338, 4294901760
        %v1919 = vsub.f32 %v338, %v1918
        %v1920 = vand.u32 %v1919, 4294901760
        %v1921 = vsub.f32 %v1919, %v1920
        %v1922 = vand.u32 %v1921, 4294901760
        %1923 = vmatpush1.xpose.msra.mxu0 %v1922
        %1924 = vmatprep.subr.mxu0 0.0
        %1925 = vmatpush1.xpose.msra.mxu0 0.0
        %1926 = vmatprep.subr.mxu0 0.0
        %1927 = vmatpush1.xpose.msra.mxu0 0.0
        %1928 = vmatprep.subr.mxu0 0.0
        %1929 = vmatpush1.xpose.msra.mxu0 0.0
        %1930 = vmatprep.subr.mxu0 0.0
        %1931 = vmatpush1.xpose.msra.mxu0 0.0
        %1932 = vmatprep.subr.mxu0 0.0
        %1933 = vmatpush1.xpose.msra.mxu0 0.0
        %1934 = vmatprep.subr.mxu0 0.0
        %1935 = vmatpush1.xpose.msra.mxu0 0.0
        %1936 = vmatprep.subr.mxu0 0.0
        %1937 = vmatpush1.xpose.msra.mxu0 0.0
        %1938 = vmatprep.subr.mxu0 0.0
        %1939 = vmatpush1.xpose.msra.mxu0 0.0
        %1940 = vmatprep.subr.mxu0 0.0
        %1941 = vmatpush1.xpose.msra.mxu0 0.0
        %1942 = vmatprep.subr.mxu0 0.0
        %1943 = vmatpush1.xpose.msra.mxu0 0.0
        %1944 = vmatprep.subr.mxu0 0.0
        %1945 = vmatpush1.xpose.msra.mxu0 0.0
        %1946 = vmatprep.subr.mxu0 0.0
        %1947 = vmatpush1.xpose.msra.mxu0 0.0
        %1948 = vmatprep.subr.mxu0 0.0
        %1949 = vmatpush1.xpose.msra.mxu0 0.0
        %1950 = vmatprep.subr.mxu0 0.0
        %1951 = vmatpush1.xpose.msra.mxu0 0.0
        %1952 = vmatprep.subr.mxu0 0.0
        %1953 = vmatpush1.xpose.msra.mxu0 0.0
        %1954 = vmatprep.subr.mxu0 0.0
        %1955 = vmatpush1.xpose.msra.mxu0 0.0
        %1956 = vmatprep.subr.mxu0 0.0
        %1957 = vmatpush1.xpose.msra.mxu0 0.0
        %1958 = vmatprep.subr.mxu0 0.0
        %1959 = vmatpush1.xpose.msra.mxu0 0.0
        %1960 = vmatprep.subr.mxu0 0.0
        %1961 = vmatpush1.xpose.msra.mxu0 0.0
        %1962 = vmatprep.subr.mxu0 0.0
        %1963 = vmatpush1.xpose.msra.mxu0 0.0
        %1964 = vmatprep.subr.mxu0 0.0
        %1965 = vmatpush1.xpose.msra.mxu0 0.0
        %1966 = vmatprep.subr.mxu0 0.0
        %1967 = vmatpush1.xpose.msra.mxu0 0.0
        %1968 = vmatprep.subr.mxu0 0.0
        %1969 = vmatpush1.xpose.msra.mxu0 0.0
        %1970 = vmatprep.subr.mxu0 0.0
        %1971 = vmatpush1.xpose.msra.mxu0 0.0
        %1972 = vmatprep.subr.mxu0 0.0
        %1973 = vmatpush1.xpose.msra.mxu0 0.0
        %1974 = vmatprep.subr.mxu0 0.0
        %1975 = vmatpush1.xpose.msra.mxu0 0.0
        %1976 = vmatprep.subr.mxu0 0.0
        %1977 = vmatpush1.xpose.msra.mxu0 0.0
        %1978 = vmatprep.subr.mxu0 0.0
        %1979 = vmatpush1.xpose.msra.mxu0 0.0
        %1980 = vmatprep.subr.mxu0 0.0
        %1981 = vmatpush1.xpose.msra.mxu0 0.0
        %1982 = vmatprep.mubr.f32.mxu0 0.0
        %v1983 = vand.u32 %v399, 4294901760
        %1984 = vmatmul.mubr.f32.gmra.mrb[0].mxu0 %v1983
        %v1985 = vpop.f32.mrb[0].mxu0
        %v1986 = vadd.f32 %v1900, %v1985
        %v1987 = vpop.f32.mrb[0].mxu0
        %1988 = vdwg.mxu0
        %1989 = vmatprep.subr.mxu0 0.0
        %v1990 = vand.u32 %v336, 4294901760
        %v1991 = vsub.f32 %v336, %v1990
        %1992 = vmatpush1.xpose.msra.mxu0 %v1991
        %1993 = vmatprep.subr.mxu0 0.0
        %v1994 = vand.u32 %v337, 4294901760
        %v1995 = vsub.f32 %v337, %v1994
        %1996 = vmatpush1.xpose.msra.mxu0 %v1995
        %1997 = vmatprep.subr.mxu0 0.0
        %v1998 = vand.u32 %v338, 4294901760
        %v1999 = vsub.f32 %v338, %v1998
        %2000 = vmatpush1.xpose.msra.mxu0 %v1999
        %2001 = vmatprep.subr.mxu0 0.0
        %2002 = vmatpush1.xpose.msra.mxu0 0.0
        %2003 = vmatprep.subr.mxu0 0.0
        %2004 = vmatpush1.xpose.msra.mxu0 0.0
        %2005 = vmatprep.subr.mxu0 0.0
        %2006 = vmatpush1.xpose.msra.mxu0 0.0
        %2007 = vmatprep.subr.mxu0 0.0
        %2008 = vmatpush1.xpose.msra.mxu0 0.0
        %2009 = vmatprep.subr.mxu0 0.0
        %2010 = vmatpush1.xpose.msra.mxu0 0.0
        %2011 = vmatprep.subr.mxu0 0.0
        %2012 = vmatpush1.xpose.msra.mxu0 0.0
        %2013 = vmatprep.subr.mxu0 0.0
        %2014 = vmatpush1.xpose.msra.mxu0 0.0
        %2015 = vmatprep.subr.mxu0 0.0
        %2016 = vmatpush1.xpose.msra.mxu0 0.0
        %2017 = vmatprep.subr.mxu0 0.0
        %2018 = vmatpush1.xpose.msra.mxu0 0.0
        %2019 = vmatprep.subr.mxu0 0.0
        %2020 = vmatpush1.xpose.msra.mxu0 0.0
        %2021 = vmatprep.subr.mxu0 0.0
        %2022 = vmatpush1.xpose.msra.mxu0 0.0
        %2023 = vmatprep.subr.mxu0 0.0
        %2024 = vmatpush1.xpose.msra.mxu0 0.0
        %2025 = vmatprep.subr.mxu0 0.0
        %2026 = vmatpush1.xpose.msra.mxu0 0.0
        %2027 = vmatprep.subr.mxu0 0.0
        %2028 = vmatpush1.xpose.msra.mxu0 0.0
        %2029 = vmatprep.subr.mxu0 0.0
        %2030 = vmatpush1.xpose.msra.mxu0 0.0
        %2031 = vmatprep.subr.mxu0 0.0
        %2032 = vmatpush1.xpose.msra.mxu0 0.0
        %2033 = vmatprep.subr.mxu0 0.0
        %2034 = vmatpush1.xpose.msra.mxu0 0.0
        %2035 = vmatprep.subr.mxu0 0.0
        %2036 = vmatpush1.xpose.msra.mxu0 0.0
        %2037 = vmatprep.subr.mxu0 0.0
        %2038 = vmatpush1.xpose.msra.mxu0 0.0
        %2039 = vmatprep.subr.mxu0 0.0
        %2040 = vmatpush1.xpose.msra.mxu0 0.0
        %2041 = vmatprep.subr.mxu0 0.0
        %2042 = vmatpush1.xpose.msra.mxu0 0.0
        %2043 = vmatprep.subr.mxu0 0.0
        %2044 = vmatpush1.xpose.msra.mxu0 0.0
        %2045 = vmatprep.subr.mxu0 0.0
        %2046 = vmatpush1.xpose.msra.mxu0 0.0
        %2047 = vmatprep.subr.mxu0 0.0
        %2048 = vmatpush1.xpose.msra.mxu0 0.0
        %2049 = vmatprep.subr.mxu0 0.0
        %2050 = vmatpush1.xpose.msra.mxu0 0.0
        %2051 = vmatprep.subr.mxu0 0.0
        %2052 = vmatpush1.xpose.msra.mxu0 0.0
        %2053 = vmatprep.subr.mxu0 0.0
        %2054 = vmatpush1.xpose.msra.mxu0 0.0
        %2055 = vmatprep.subr.mxu0 0.0
        %2056 = vmatpush1.xpose.msra.mxu0 0.0
        %2057 = vmatprep.subr.mxu0 0.0
        %2058 = vmatpush1.xpose.msra.mxu0 0.0
        %2059 = vmatprep.mubr.f32.mxu0 0.0
        %v2060 = vand.u32 %v399, 4294901760
        %v2061 = vsub.f32 %v399, %v2060
        %2062 = vmatmul.mubr.f32.gmra.mrb[0].mxu0 %v2061
        %v2063 = vpop.f32.mrb[0].mxu0
        %v2064 = vadd.f32 %v1986, %v2063
        %v2065 = vpop.f32.mrb[0].mxu0
        %2066 = vdwg.mxu0
        %2067 = vmatprep.subr.mxu0 0.0
        %v2068 = vand.u32 %v336, 4294901760
        %2069 = vmatpush1.xpose.msra.mxu0 %v2068
        %2070 = vmatprep.subr.mxu0 0.0
        %v2071 = vand.u32 %v337, 4294901760
        %2072 = vmatpush1.xpose.msra.mxu0 %v2071
        %2073 = vmatprep.subr.mxu0 0.0
        %v2074 = vand.u32 %v338, 4294901760
        %2075 = vmatpush1.xpose.msra.mxu0 %v2074
        %2076 = vmatprep.subr.mxu0 0.0
        %2077 = vmatpush1.xpose.msra.mxu0 0.0
        %2078 = vmatprep.subr.mxu0 0.0
        %2079 = vmatpush1.xpose.msra.mxu0 0.0
        %2080 = vmatprep.subr.mxu0 0.0
        %2081 = vmatpush1.xpose.msra.mxu0 0.0
        %2082 = vmatprep.subr.mxu0 0.0
        %2083 = vmatpush1.xpose.msra.mxu0 0.0
        %2084 = vmatprep.subr.mxu0 0.0
        %2085 = vmatpush1.xpose.msra.mxu0 0.0
        %2086 = vmatprep.subr.mxu0 0.0
        %2087 = vmatpush1.xpose.msra.mxu0 0.0
        %2088 = vmatprep.subr.mxu0 0.0
        %2089 = vmatpush1.xpose.msra.mxu0 0.0
        %2090 = vmatprep.subr.mxu0 0.0
        %2091 = vmatpush1.xpose.msra.mxu0 0.0
        %2092 = vmatprep.subr.mxu0 0.0
        %2093 = vmatpush1.xpose.msra.mxu0 0.0
        %2094 = vmatprep.subr.mxu0 0.0
        %2095 = vmatpush1.xpose.msra.mxu0 0.0
        %2096 = vmatprep.subr.mxu0 0.0
        %2097 = vmatpush1.xpose.msra.mxu0 0.0
        %2098 = vmatprep.subr.mxu0 0.0
        %2099 = vmatpush1.xpose.msra.mxu0 0.0
        %2100 = vmatprep.subr.mxu0 0.0
        %2101 = vmatpush1.xpose.msra.mxu0 0.0
        %2102 = vmatprep.subr.mxu0 0.0
        %2103 = vmatpush1.xpose.msra.mxu0 0.0
        %2104 = vmatprep.subr.mxu0 0.0
        %2105 = vmatpush1.xpose.msra.mxu0 0.0
        %2106 = vmatprep.subr.mxu0 0.0
        %2107 = vmatpush1.xpose.msra.mxu0 0.0
        %2108 = vmatprep.subr.mxu0 0.0
        %2109 = vmatpush1.xpose.msra.mxu0 0.0
        %2110 = vmatprep.subr.mxu0 0.0
        %2111 = vmatpush1.xpose.msra.mxu0 0.0
        %2112 = vmatprep.subr.mxu0 0.0
        %2113 = vmatpush1.xpose.msra.mxu0 0.0
        %2114 = vmatprep.subr.mxu0 0.0
        %2115 = vmatpush1.xpose.msra.mxu0 0.0
        %2116 = vmatprep.subr.mxu0 0.0
        %2117 = vmatpush1.xpose.msra.mxu0 0.0
        %2118 = vmatprep.subr.mxu0 0.0
        %2119 = vmatpush1.xpose.msra.mxu0 0.0
        %2120 = vmatprep.subr.mxu0 0.0
        %2121 = vmatpush1.xpose.msra.mxu0 0.0
        %2122 = vmatprep.subr.mxu0 0.0
        %2123 = vmatpush1.xpose.msra.mxu0 0.0
        %2124 = vmatprep.subr.mxu0 0.0
        %2125 = vmatpush1.xpose.msra.mxu0 0.0
        %2126 = vmatprep.subr.mxu0 0.0
        %2127 = vmatpush1.xpose.msra.mxu0 0.0
        %2128 = vmatprep.subr.mxu0 0.0
        %2129 = vmatpush1.xpose.msra.mxu0 0.0
        %2130 = vmatprep.subr.mxu0 0.0
        %2131 = vmatpush1.xpose.msra.mxu0 0.0
        %2132 = vmatprep.subr.mxu0 0.0
        %2133 = vmatpush1.xpose.msra.mxu0 0.0
        %2134 = vmatprep.mubr.f32.mxu0 0.0
        %v2135 = vand.u32 %v399, 4294901760
        %v2136 = vsub.f32 %v399, %v2135
        %v2137 = vand.u32 %v2136, 4294901760
        %2138 = vmatmul.mubr.f32.gmra.mrb[0].mxu0 %v2137
        %v2139 = vpop.f32.mrb[0].mxu0
        %v2140 = vadd.f32 %v2064, %v2139
        %v2141 = vpop.f32.mrb[0].mxu0
        %2142 = vdwg.mxu0
        %2143 = vmatprep.subr.mxu0 0.0
        %v2144 = vand.u32 %v336, 4294901760
        %v2145 = vsub.f32 %v336, %v2144
        %v2146 = vand.u32 %v2145, 4294901760
        %2147 = vmatpush1.xpose.msra.mxu0 %v2146
        %2148 = vmatprep.subr.mxu0 0.0
        %v2149 = vand.u32 %v337, 4294901760
        %v2150 = vsub.f32 %v337, %v2149
        %v2151 = vand.u32 %v2150, 4294901760
        %2152 = vmatpush1.xpose.msra.mxu0 %v2151
        %2153 = vmatprep.subr.mxu0 0.0
        %v2154 = vand.u32 %v338, 4294901760
        %v2155 = vsub.f32 %v338, %v2154
        %v2156 = vand.u32 %v2155, 4294901760
        %2157 = vmatpush1.xpose.msra.mxu0 %v2156
        %2158 = vmatprep.subr.mxu0 0.0
        %2159 = vmatpush1.xpose.msra.mxu0 0.0
        %2160 = vmatprep.subr.mxu0 0.0
        %2161 = vmatpush1.xpose.msra.mxu0 0.0
        %2162 = vmatprep.subr.mxu0 0.0
        %2163 = vmatpush1.xpose.msra.mxu0 0.0
        %2164 = vmatprep.subr.mxu0 0.0
        %2165 = vmatpush1.xpose.msra.mxu0 0.0
        %2166 = vmatprep.subr.mxu0 0.0
        %2167 = vmatpush1.xpose.msra.mxu0 0.0
        %2168 = vmatprep.subr.mxu0 0.0
        %2169 = vmatpush1.xpose.msra.mxu0 0.0
        %2170 = vmatprep.subr.mxu0 0.0
        %2171 = vmatpush1.xpose.msra.mxu0 0.0
        %2172 = vmatprep.subr.mxu0 0.0
        %2173 = vmatpush1.xpose.msra.mxu0 0.0
        %2174 = vmatprep.subr.mxu0 0.0
        %2175 = vmatpush1.xpose.msra.mxu0 0.0
        %2176 = vmatprep.subr.mxu0 0.0
        %2177 = vmatpush1.xpose.msra.mxu0 0.0
        %2178 = vmatprep.subr.mxu0 0.0
        %2179 = vmatpush1.xpose.msra.mxu0 0.0
        %2180 = vmatprep.subr.mxu0 0.0
        %2181 = vmatpush1.xpose.msra.mxu0 0.0
        %2182 = vmatprep.subr.mxu0 0.0
        %2183 = vmatpush1.xpose.msra.mxu0 0.0
        %2184 = vmatprep.subr.mxu0 0.0
        %2185 = vmatpush1.xpose.msra.mxu0 0.0
        %2186 = vmatprep.subr.mxu0 0.0
        %2187 = vmatpush1.xpose.msra.mxu0 0.0
        %2188 = vmatprep.subr.mxu0 0.0
        %2189 = vmatpush1.xpose.msra.mxu0 0.0
        %2190 = vmatprep.subr.mxu0 0.0
        %2191 = vmatpush1.xpose.msra.mxu0 0.0
        %2192 = vmatprep.subr.mxu0 0.0
        %2193 = vmatpush1.xpose.msra.mxu0 0.0
        %2194 = vmatprep.subr.mxu0 0.0
        %2195 = vmatpush1.xpose.msra.mxu0 0.0
        %2196 = vmatprep.subr.mxu0 0.0
        %2197 = vmatpush1.xpose.msra.mxu0 0.0
        %2198 = vmatprep.subr.mxu0 0.0
        %2199 = vmatpush1.xpose.msra.mxu0 0.0
        %2200 = vmatprep.subr.mxu0 0.0
        %2201 = vmatpush1.xpose.msra.mxu0 0.0
        %2202 = vmatprep.subr.mxu0 0.0
        %2203 = vmatpush1.xpose.msra.mxu0 0.0
        %2204 = vmatprep.subr.mxu0 0.0
        %2205 = vmatpush1.xpose.msra.mxu0 0.0
        %2206 = vmatprep.subr.mxu0 0.0
        %2207 = vmatpush1.xpose.msra.mxu0 0.0
        %2208 = vmatprep.subr.mxu0 0.0
        %2209 = vmatpush1.xpose.msra.mxu0 0.0
        %2210 = vmatprep.subr.mxu0 0.0
        %2211 = vmatpush1.xpose.msra.mxu0 0.0
        %2212 = vmatprep.subr.mxu0 0.0
        %2213 = vmatpush1.xpose.msra.mxu0 0.0
        %2214 = vmatprep.subr.mxu0 0.0
        %2215 = vmatpush1.xpose.msra.mxu0 0.0
        %2216 = vmatprep.mubr.f32.mxu0 0.0
        %v2217 = vand.u32 %v399, 4294901760
        %2218 = vmatmul.mubr.f32.gmra.mrb[0].mxu0 %v2217
        %v2219 = vpop.f32.mrb[0].mxu0
        %v2220 = vadd.f32 %v2140, %v2219
        %v2221 = vpop.f32.mrb[0].mxu0
        %2222 = vdwg.mxu0
        %2223 = vmatprep.subr.mxu0 0.0
        %v2224 = vand.u32 %v336, 4294901760
        %2225 = vmatpush1.xpose.msra.mxu0 %v2224
        %2226 = vmatprep.subr.mxu0 0.0
        %v2227 = vand.u32 %v337, 4294901760
        %2228 = vmatpush1.xpose.msra.mxu0 %v2227
        %2229 = vmatprep.subr.mxu0 0.0
        %v2230 = vand.u32 %v338, 4294901760
        %2231 = vmatpush1.xpose.msra.mxu0 %v2230
        %2232 = vmatprep.subr.mxu0 0.0
        %2233 = vmatpush1.xpose.msra.mxu0 0.0
        %2234 = vmatprep.subr.mxu0 0.0
        %2235 = vmatpush1.xpose.msra.mxu0 0.0
        %2236 = vmatprep.subr.mxu0 0.0
        %2237 = vmatpush1.xpose.msra.mxu0 0.0
        %2238 = vmatprep.subr.mxu0 0.0
        %2239 = vmatpush1.xpose.msra.mxu0 0.0
        %2240 = vmatprep.subr.mxu0 0.0
        %2241 = vmatpush1.xpose.msra.mxu0 0.0
        %2242 = vmatprep.subr.mxu0 0.0
        %2243 = vmatpush1.xpose.msra.mxu0 0.0
        %2244 = vmatprep.subr.mxu0 0.0
        %2245 = vmatpush1.xpose.msra.mxu0 0.0
        %2246 = vmatprep.subr.mxu0 0.0
        %2247 = vmatpush1.xpose.msra.mxu0 0.0
        %2248 = vmatprep.subr.mxu0 0.0
        %2249 = vmatpush1.xpose.msra.mxu0 0.0
        %2250 = vmatprep.subr.mxu0 0.0
        %2251 = vmatpush1.xpose.msra.mxu0 0.0
        %2252 = vmatprep.subr.mxu0 0.0
        %2253 = vmatpush1.xpose.msra.mxu0 0.0
        %2254 = vmatprep.subr.mxu0 0.0
        %2255 = vmatpush1.xpose.msra.mxu0 0.0
        %2256 = vmatprep.subr.mxu0 0.0
        %2257 = vmatpush1.xpose.msra.mxu0 0.0
        %2258 = vmatprep.subr.mxu0 0.0
        %2259 = vmatpush1.xpose.msra.mxu0 0.0
        %2260 = vmatprep.subr.mxu0 0.0
        %2261 = vmatpush1.xpose.msra.mxu0 0.0
        %2262 = vmatprep.subr.mxu0 0.0
        %2263 = vmatpush1.xpose.msra.mxu0 0.0
        %2264 = vmatprep.subr.mxu0 0.0
        %2265 = vmatpush1.xpose.msra.mxu0 0.0
        %2266 = vmatprep.subr.mxu0 0.0
        %2267 = vmatpush1.xpose.msra.mxu0 0.0
        %2268 = vmatprep.subr.mxu0 0.0
        %2269 = vmatpush1.xpose.msra.mxu0 0.0
        %2270 = vmatprep.subr.mxu0 0.0
        %2271 = vmatpush1.xpose.msra.mxu0 0.0
        %2272 = vmatprep.subr.mxu0 0.0
        %2273 = vmatpush1.xpose.msra.mxu0 0.0
        %2274 = vmatprep.subr.mxu0 0.0
        %2275 = vmatpush1.xpose.msra.mxu0 0.0
        %2276 = vmatprep.subr.mxu0 0.0
        %2277 = vmatpush1.xpose.msra.mxu0 0.0
        %2278 = vmatprep.subr.mxu0 0.0
        %2279 = vmatpush1.xpose.msra.mxu0 0.0
        %2280 = vmatprep.subr.mxu0 0.0
        %2281 = vmatpush1.xpose.msra.mxu0 0.0
        %2282 = vmatprep.subr.mxu0 0.0
        %2283 = vmatpush1.xpose.msra.mxu0 0.0
        %2284 = vmatprep.subr.mxu0 0.0
        %2285 = vmatpush1.xpose.msra.mxu0 0.0
        %2286 = vmatprep.subr.mxu0 0.0
        %2287 = vmatpush1.xpose.msra.mxu0 0.0
        %2288 = vmatprep.subr.mxu0 0.0
        %2289 = vmatpush1.xpose.msra.mxu0 0.0
        %2290 = vmatprep.mubr.f32.mxu0 0.0
        %v2291 = vand.u32 %v399, 4294901760
        %2292 = vmatmul.mubr.f32.gmra.mrb[0].mxu0 %v2291
        %v2293 = vpop.f32.mrb[0].mxu0
        %v2294 = vadd.f32 %v2220, %v2293
        %v2295 = vpop.f32.mrb[0].mxu0
        %2296 = vdwg.mxu0
        %2297 = vmatprep.subr.mxu0 0.0
        %v2298 = vand.u32 %v339, 4294901760
        %2299 = vmatpush1.xpose.msra.mxu0 %v2298
        %2300 = vmatprep.subr.mxu0 0.0
        %v2301 = vand.u32 %v340, 4294901760
        %2302 = vmatpush1.xpose.msra.mxu0 %v2301
        %2303 = vmatprep.subr.mxu0 0.0
        %v2304 = vand.u32 %v341, 4294901760
        %2305 = vmatpush1.xpose.msra.mxu0 %v2304
        %2306 = vmatprep.subr.mxu0 0.0
        %2307 = vmatpush1.xpose.msra.mxu0 0.0
        %2308 = vmatprep.subr.mxu0 0.0
        %2309 = vmatpush1.xpose.msra.mxu0 0.0
        %2310 = vmatprep.subr.mxu0 0.0
        %2311 = vmatpush1.xpose.msra.mxu0 0.0
        %2312 = vmatprep.subr.mxu0 0.0
        %2313 = vmatpush1.xpose.msra.mxu0 0.0
        %2314 = vmatprep.subr.mxu0 0.0
        %2315 = vmatpush1.xpose.msra.mxu0 0.0
        %2316 = vmatprep.subr.mxu0 0.0
        %2317 = vmatpush1.xpose.msra.mxu0 0.0
        %2318 = vmatprep.subr.mxu0 0.0
        %2319 = vmatpush1.xpose.msra.mxu0 0.0
        %2320 = vmatprep.subr.mxu0 0.0
        %2321 = vmatpush1.xpose.msra.mxu0 0.0
        %2322 = vmatprep.subr.mxu0 0.0
        %2323 = vmatpush1.xpose.msra.mxu0 0.0
        %2324 = vmatprep.subr.mxu0 0.0
        %2325 = vmatpush1.xpose.msra.mxu0 0.0
        %2326 = vmatprep.subr.mxu0 0.0
        %2327 = vmatpush1.xpose.msra.mxu0 0.0
        %2328 = vmatprep.subr.mxu0 0.0
        %2329 = vmatpush1.xpose.msra.mxu0 0.0
        %2330 = vmatprep.subr.mxu0 0.0
        %2331 = vmatpush1.xpose.msra.mxu0 0.0
        %2332 = vmatprep.subr.mxu0 0.0
        %2333 = vmatpush1.xpose.msra.mxu0 0.0
        %2334 = vmatprep.subr.mxu0 0.0
        %2335 = vmatpush1.xpose.msra.mxu0 0.0
        %2336 = vmatprep.subr.mxu0 0.0
        %2337 = vmatpush1.xpose.msra.mxu0 0.0
        %2338 = vmatprep.subr.mxu0 0.0
        %2339 = vmatpush1.xpose.msra.mxu0 0.0
        %2340 = vmatprep.subr.mxu0 0.0
        %2341 = vmatpush1.xpose.msra.mxu0 0.0
        %2342 = vmatprep.subr.mxu0 0.0
        %2343 = vmatpush1.xpose.msra.mxu0 0.0
        %2344 = vmatprep.subr.mxu0 0.0
        %2345 = vmatpush1.xpose.msra.mxu0 0.0
        %2346 = vmatprep.subr.mxu0 0.0
        %2347 = vmatpush1.xpose.msra.mxu0 0.0
        %2348 = vmatprep.subr.mxu0 0.0
        %2349 = vmatpush1.xpose.msra.mxu0 0.0
        %2350 = vmatprep.subr.mxu0 0.0
        %2351 = vmatpush1.xpose.msra.mxu0 0.0
        %2352 = vmatprep.subr.mxu0 0.0
        %2353 = vmatpush1.xpose.msra.mxu0 0.0
        %2354 = vmatprep.subr.mxu0 0.0
        %2355 = vmatpush1.xpose.msra.mxu0 0.0
        %2356 = vmatprep.subr.mxu0 0.0
        %2357 = vmatpush1.xpose.msra.mxu0 0.0
        %2358 = vmatprep.subr.mxu0 0.0
        %2359 = vmatpush1.xpose.msra.mxu0 0.0
        %2360 = vmatprep.subr.mxu0 0.0
        %2361 = vmatpush1.xpose.msra.mxu0 0.0
        %2362 = vmatprep.subr.mxu0 0.0
        %2363 = vmatpush1.xpose.msra.mxu0 0.0
        %2364 = vmatprep.mubr.f32.mxu0 0.0
        %v2365 = vand.u32 %v382, 4294901760
        %v2366 = vsub.f32 %v382, %v2365
        %v2367 = vand.u32 %v2366, 4294901760
        %v2368 = vsub.f32 %v2366, %v2367
        %v2369 = vand.u32 %v2368, 4294901760
        %2370 = vmatmul.mubr.f32.gmra.mrb[0].mxu0 %v2369
        %v2371 = vpop.f32.mrb[0].mxu0
        %v2372 = vadd.f32 0.0, %v2371
        %v2373 = vpop.f32.mrb[0].mxu0
        %2374 = vdwg.mxu0
        %2375 = vmatprep.subr.mxu0 0.0
        %v2376 = vand.u32 %v339, 4294901760
        %v2377 = vsub.f32 %v339, %v2376
        %v2378 = vand.u32 %v2377, 4294901760
        %v2379 = vsub.f32 %v2377, %v2378
        %v2380 = vand.u32 %v2379, 4294901760
        %2381 = vmatpush1.xpose.msra.mxu0 %v2380
        %2382 = vmatprep.subr.mxu0 0.0
        %v2383 = vand.u32 %v340, 4294901760
        %v2384 = vsub.f32 %v340, %v2383
        %v2385 = vand.u32 %v2384, 4294901760
        %v2386 = vsub.f32 %v2384, %v2385
        %v2387 = vand.u32 %v2386, 4294901760
        %2388 = vmatpush1.xpose.msra.mxu0 %v2387
        %2389 = vmatprep.subr.mxu0 0.0
        %v2390 = vand.u32 %v341, 4294901760
        %v2391 = vsub.f32 %v341, %v2390
        %v2392 = vand.u32 %v2391, 4294901760
        %v2393 = vsub.f32 %v2391, %v2392
        %v2394 = vand.u32 %v2393, 4294901760
        %2395 = vmatpush1.xpose.msra.mxu0 %v2394
        %2396 = vmatprep.subr.mxu0 0.0
        %2397 = vmatpush1.xpose.msra.mxu0 0.0
        %2398 = vmatprep.subr.mxu0 0.0
        %2399 = vmatpush1.xpose.msra.mxu0 0.0
        %2400 = vmatprep.subr.mxu0 0.0
        %2401 = vmatpush1.xpose.msra.mxu0 0.0
        %2402 = vmatprep.subr.mxu0 0.0
        %2403 = vmatpush1.xpose.msra.mxu0 0.0
        %2404 = vmatprep.subr.mxu0 0.0
        %2405 = vmatpush1.xpose.msra.mxu0 0.0
        %2406 = vmatprep.subr.mxu0 0.0
        %2407 = vmatpush1.xpose.msra.mxu0 0.0
        %2408 = vmatprep.subr.mxu0 0.0
        %2409 = vmatpush1.xpose.msra.mxu0 0.0
        %2410 = vmatprep.subr.mxu0 0.0
        %2411 = vmatpush1.xpose.msra.mxu0 0.0
        %2412 = vmatprep.subr.mxu0 0.0
        %2413 = vmatpush1.xpose.msra.mxu0 0.0
        %2414 = vmatprep.subr.mxu0 0.0
        %2415 = vmatpush1.xpose.msra.mxu0 0.0
        %2416 = vmatprep.subr.mxu0 0.0
        %2417 = vmatpush1.xpose.msra.mxu0 0.0
        %2418 = vmatprep.subr.mxu0 0.0
        %2419 = vmatpush1.xpose.msra.mxu0 0.0
        %2420 = vmatprep.subr.mxu0 0.0
        %2421 = vmatpush1.xpose.msra.mxu0 0.0
        %2422 = vmatprep.subr.mxu0 0.0
        %2423 = vmatpush1.xpose.msra.mxu0 0.0
        %2424 = vmatprep.subr.mxu0 0.0
        %2425 = vmatpush1.xpose.msra.mxu0 0.0
        %2426 = vmatprep.subr.mxu0 0.0
        %2427 = vmatpush1.xpose.msra.mxu0 0.0
        %2428 = vmatprep.subr.mxu0 0.0
        %2429 = vmatpush1.xpose.msra.mxu0 0.0
        %2430 = vmatprep.subr.mxu0 0.0
        %2431 = vmatpush1.xpose.msra.mxu0 0.0
        %2432 = vmatprep.subr.mxu0 0.0
        %2433 = vmatpush1.xpose.msra.mxu0 0.0
        %2434 = vmatprep.subr.mxu0 0.0
        %2435 = vmatpush1.xpose.msra.mxu0 0.0
        %2436 = vmatprep.subr.mxu0 0.0
        %2437 = vmatpush1.xpose.msra.mxu0 0.0
        %2438 = vmatprep.subr.mxu0 0.0
        %2439 = vmatpush1.xpose.msra.mxu0 0.0
        %2440 = vmatprep.subr.mxu0 0.0
        %2441 = vmatpush1.xpose.msra.mxu0 0.0
        %2442 = vmatprep.subr.mxu0 0.0
        %2443 = vmatpush1.xpose.msra.mxu0 0.0
        %2444 = vmatprep.subr.mxu0 0.0
        %2445 = vmatpush1.xpose.msra.mxu0 0.0
        %2446 = vmatprep.subr.mxu0 0.0
        %2447 = vmatpush1.xpose.msra.mxu0 0.0
        %2448 = vmatprep.subr.mxu0 0.0
        %2449 = vmatpush1.xpose.msra.mxu0 0.0
        %2450 = vmatprep.subr.mxu0 0.0
        %2451 = vmatpush1.xpose.msra.mxu0 0.0
        %2452 = vmatprep.subr.mxu0 0.0
        %2453 = vmatpush1.xpose.msra.mxu0 0.0
        %2454 = vmatprep.mubr.f32.mxu0 0.0
        %v2455 = vand.u32 %v382, 4294901760
        %2456 = vmatmul.mubr.f32.gmra.mrb[0].mxu0 %v2455
        %v2457 = vpop.f32.mrb[0].mxu0
        %v2458 = vadd.f32 %v2372, %v2457
        %v2459 = vpop.f32.mrb[0].mxu0
        %2460 = vdwg.mxu0
        %2461 = vmatprep.subr.mxu0 0.0
        %v2462 = vand.u32 %v339, 4294901760
        %v2463 = vsub.f32 %v339, %v2462
        %2464 = vmatpush1.xpose.msra.mxu0 %v2463
        %2465 = vmatprep.subr.mxu0 0.0
        %v2466 = vand.u32 %v340, 4294901760
        %v2467 = vsub.f32 %v340, %v2466
        %2468 = vmatpush1.xpose.msra.mxu0 %v2467
        %2469 = vmatprep.subr.mxu0 0.0
        %v2470 = vand.u32 %v341, 4294901760
        %v2471 = vsub.f32 %v341, %v2470
        %2472 = vmatpush1.xpose.msra.mxu0 %v2471
        %2473 = vmatprep.subr.mxu0 0.0
        %2474 = vmatpush1.xpose.msra.mxu0 0.0
        %2475 = vmatprep.subr.mxu0 0.0
        %2476 = vmatpush1.xpose.msra.mxu0 0.0
        %2477 = vmatprep.subr.mxu0 0.0
        %2478 = vmatpush1.xpose.msra.mxu0 0.0
        %2479 = vmatprep.subr.mxu0 0.0
        %2480 = vmatpush1.xpose.msra.mxu0 0.0
        %2481 = vmatprep.subr.mxu0 0.0
        %2482 = vmatpush1.xpose.msra.mxu0 0.0
        %2483 = vmatprep.subr.mxu0 0.0
        %2484 = vmatpush1.xpose.msra.mxu0 0.0
        %2485 = vmatprep.subr.mxu0 0.0
        %2486 = vmatpush1.xpose.msra.mxu0 0.0
        %2487 = vmatprep.subr.mxu0 0.0
        %2488 = vmatpush1.xpose.msra.mxu0 0.0
        %2489 = vmatprep.subr.mxu0 0.0
        %2490 = vmatpush1.xpose.msra.mxu0 0.0
        %2491 = vmatprep.subr.mxu0 0.0
        %2492 = vmatpush1.xpose.msra.mxu0 0.0
        %2493 = vmatprep.subr.mxu0 0.0
        %2494 = vmatpush1.xpose.msra.mxu0 0.0
        %2495 = vmatprep.subr.mxu0 0.0
        %2496 = vmatpush1.xpose.msra.mxu0 0.0
        %2497 = vmatprep.subr.mxu0 0.0
        %2498 = vmatpush1.xpose.msra.mxu0 0.0
        %2499 = vmatprep.subr.mxu0 0.0
        %2500 = vmatpush1.xpose.msra.mxu0 0.0
        %2501 = vmatprep.subr.mxu0 0.0
        %2502 = vmatpush1.xpose.msra.mxu0 0.0
        %2503 = vmatprep.subr.mxu0 0.0
        %2504 = vmatpush1.xpose.msra.mxu0 0.0
        %2505 = vmatprep.subr.mxu0 0.0
        %2506 = vmatpush1.xpose.msra.mxu0 0.0
        %2507 = vmatprep.subr.mxu0 0.0
        %2508 = vmatpush1.xpose.msra.mxu0 0.0
        %2509 = vmatprep.subr.mxu0 0.0
        %2510 = vmatpush1.xpose.msra.mxu0 0.0
        %2511 = vmatprep.subr.mxu0 0.0
        %2512 = vmatpush1.xpose.msra.mxu0 0.0
        %2513 = vmatprep.subr.mxu0 0.0
        %2514 = vmatpush1.xpose.msra.mxu0 0.0
        %2515 = vmatprep.subr.mxu0 0.0
        %2516 = vmatpush1.xpose.msra.mxu0 0.0
        %2517 = vmatprep.subr.mxu0 0.0
        %2518 = vmatpush1.xpose.msra.mxu0 0.0
        %2519 = vmatprep.subr.mxu0 0.0
        %2520 = vmatpush1.xpose.msra.mxu0 0.0
        %2521 = vmatprep.subr.mxu0 0.0
        %2522 = vmatpush1.xpose.msra.mxu0 0.0
        %2523 = vmatprep.subr.mxu0 0.0
        %2524 = vmatpush1.xpose.msra.mxu0 0.0
        %2525 = vmatprep.subr.mxu0 0.0
        %2526 = vmatpush1.xpose.msra.mxu0 0.0
        %2527 = vmatprep.subr.mxu0 0.0
        %2528 = vmatpush1.xpose.msra.mxu0 0.0
        %2529 = vmatprep.subr.mxu0 0.0
        %2530 = vmatpush1.xpose.msra.mxu0 0.0
        %2531 = vmatprep.mubr.f32.mxu0 0.0
        %v2532 = vand.u32 %v382, 4294901760
        %v2533 = vsub.f32 %v382, %v2532
        %2534 = vmatmul.mubr.f32.gmra.mrb[0].mxu0 %v2533
        %v2535 = vpop.f32.mrb[0].mxu0
        %v2536 = vadd.f32 %v2458, %v2535
        %v2537 = vpop.f32.mrb[0].mxu0
        %2538 = vdwg.mxu0
        %2539 = vmatprep.subr.mxu0 0.0
        %v2540 = vand.u32 %v339, 4294901760
        %2541 = vmatpush1.xpose.msra.mxu0 %v2540
        %2542 = vmatprep.subr.mxu0 0.0
        %v2543 = vand.u32 %v340, 4294901760
        %2544 = vmatpush1.xpose.msra.mxu0 %v2543
        %2545 = vmatprep.subr.mxu0 0.0
        %v2546 = vand.u32 %v341, 4294901760
        %2547 = vmatpush1.xpose.msra.mxu0 %v2546
        %2548 = vmatprep.subr.mxu0 0.0
        %2549 = vmatpush1.xpose.msra.mxu0 0.0
        %2550 = vmatprep.subr.mxu0 0.0
        %2551 = vmatpush1.xpose.msra.mxu0 0.0
        %2552 = vmatprep.subr.mxu0 0.0
        %2553 = vmatpush1.xpose.msra.mxu0 0.0
        %2554 = vmatprep.subr.mxu0 0.0
        %2555 = vmatpush1.xpose.msra.mxu0 0.0
        %2556 = vmatprep.subr.mxu0 0.0
        %2557 = vmatpush1.xpose.msra.mxu0 0.0
        %2558 = vmatprep.subr.mxu0 0.0
        %2559 = vmatpush1.xpose.msra.mxu0 0.0
        %2560 = vmatprep.subr.mxu0 0.0
        %2561 = vmatpush1.xpose.msra.mxu0 0.0
        %2562 = vmatprep.subr.mxu0 0.0
        %2563 = vmatpush1.xpose.msra.mxu0 0.0
        %2564 = vmatprep.subr.mxu0 0.0
        %2565 = vmatpush1.xpose.msra.mxu0 0.0
        %2566 = vmatprep.subr.mxu0 0.0
        %2567 = vmatpush1.xpose.msra.mxu0 0.0
        %2568 = vmatprep.subr.mxu0 0.0
        %2569 = vmatpush1.xpose.msra.mxu0 0.0
        %2570 = vmatprep.subr.mxu0 0.0
        %2571 = vmatpush1.xpose.msra.mxu0 0.0
        %2572 = vmatprep.subr.mxu0 0.0
        %2573 = vmatpush1.xpose.msra.mxu0 0.0
        %2574 = vmatprep.subr.mxu0 0.0
        %2575 = vmatpush1.xpose.msra.mxu0 0.0
        %2576 = vmatprep.subr.mxu0 0.0
        %2577 = vmatpush1.xpose.msra.mxu0 0.0
        %2578 = vmatprep.subr.mxu0 0.0
        %2579 = vmatpush1.xpose.msra.mxu0 0.0
        %2580 = vmatprep.subr.mxu0 0.0
        %2581 = vmatpush1.xpose.msra.mxu0 0.0
        %2582 = vmatprep.subr.mxu0 0.0
        %2583 = vmatpush1.xpose.msra.mxu0 0.0
        %2584 = vmatprep.subr.mxu0 0.0
        %2585 = vmatpush1.xpose.msra.mxu0 0.0
        %2586 = vmatprep.subr.mxu0 0.0
        %2587 = vmatpush1.xpose.msra.mxu0 0.0
        %2588 = vmatprep.subr.mxu0 0.0
        %2589 = vmatpush1.xpose.msra.mxu0 0.0
        %2590 = vmatprep.subr.mxu0 0.0
        %2591 = vmatpush1.xpose.msra.mxu0 0.0
        %2592 = vmatprep.subr.mxu0 0.0
        %2593 = vmatpush1.xpose.msra.mxu0 0.0
        %2594 = vmatprep.subr.mxu0 0.0
        %2595 = vmatpush1.xpose.msra.mxu0 0.0
        %2596 = vmatprep.subr.mxu0 0.0
        %2597 = vmatpush1.xpose.msra.mxu0 0.0
        %2598 = vmatprep.subr.mxu0 0.0
        %2599 = vmatpush1.xpose.msra.mxu0 0.0
        %2600 = vmatprep.subr.mxu0 0.0
        %2601 = vmatpush1.xpose.msra.mxu0 0.0
        %2602 = vmatprep.subr.mxu0 0.0
        %2603 = vmatpush1.xpose.msra.mxu0 0.0
        %2604 = vmatprep.subr.mxu0 0.0
        %2605 = vmatpush1.xpose.msra.mxu0 0.0
        %2606 = vmatprep.mubr.f32.mxu0 0.0
        %v2607 = vand.u32 %v382, 4294901760
        %v2608 = vsub.f32 %v382, %v2607
        %v2609 = vand.u32 %v2608, 4294901760
        %2610 = vmatmul.mubr.f32.gmra.mrb[0].mxu0 %v2609
        %v2611 = vpop.f32.mrb[0].mxu0
        %v2612 = vadd.f32 %v2536, %v2611
        %v2613 = vpop.f32.mrb[0].mxu0
        %2614 = vdwg.mxu0
        %2615 = vmatprep.subr.mxu0 0.0
        %v2616 = vand.u32 %v339, 4294901760
        %v2617 = vsub.f32 %v339, %v2616
        %v2618 = vand.u32 %v2617, 4294901760
        %2619 = vmatpush1.xpose.msra.mxu0 %v2618
        %2620 = vmatprep.subr.mxu0 0.0
        %v2621 = vand.u32 %v340, 4294901760
        %v2622 = vsub.f32 %v340, %v2621
        %v2623 = vand.u32 %v2622, 4294901760
        %2624 = vmatpush1.xpose.msra.mxu0 %v2623
        %2625 = vmatprep.subr.mxu0 0.0
        %v2626 = vand.u32 %v341, 4294901760
        %v2627 = vsub.f32 %v341, %v2626
        %v2628 = vand.u32 %v2627, 4294901760
        %2629 = vmatpush1.xpose.msra.mxu0 %v2628
        %2630 = vmatprep.subr.mxu0 0.0
        %2631 = vmatpush1.xpose.msra.mxu0 0.0
        %2632 = vmatprep.subr.mxu0 0.0
        %2633 = vmatpush1.xpose.msra.mxu0 0.0
        %2634 = vmatprep.subr.mxu0 0.0
        %2635 = vmatpush1.xpose.msra.mxu0 0.0
        %2636 = vmatprep.subr.mxu0 0.0
        %2637 = vmatpush1.xpose.msra.mxu0 0.0
        %2638 = vmatprep.subr.mxu0 0.0
        %2639 = vmatpush1.xpose.msra.mxu0 0.0
        %2640 = vmatprep.subr.mxu0 0.0
        %2641 = vmatpush1.xpose.msra.mxu0 0.0
        %2642 = vmatprep.subr.mxu0 0.0
        %2643 = vmatpush1.xpose.msra.mxu0 0.0
        %2644 = vmatprep.subr.mxu0 0.0
        %2645 = vmatpush1.xpose.msra.mxu0 0.0
        %2646 = vmatprep.subr.mxu0 0.0
        %2647 = vmatpush1.xpose.msra.mxu0 0.0
        %2648 = vmatprep.subr.mxu0 0.0
        %2649 = vmatpush1.xpose.msra.mxu0 0.0
        %2650 = vmatprep.subr.mxu0 0.0
        %2651 = vmatpush1.xpose.msra.mxu0 0.0
        %2652 = vmatprep.subr.mxu0 0.0
        %2653 = vmatpush1.xpose.msra.mxu0 0.0
        %2654 = vmatprep.subr.mxu0 0.0
        %2655 = vmatpush1.xpose.msra.mxu0 0.0
        %2656 = vmatprep.subr.mxu0 0.0
        %2657 = vmatpush1.xpose.msra.mxu0 0.0
        %2658 = vmatprep.subr.mxu0 0.0
        %2659 = vmatpush1.xpose.msra.mxu0 0.0
        %2660 = vmatprep.subr.mxu0 0.0
        %2661 = vmatpush1.xpose.msra.mxu0 0.0
        %2662 = vmatprep.subr.mxu0 0.0
        %2663 = vmatpush1.xpose.msra.mxu0 0.0
        %2664 = vmatprep.subr.mxu0 0.0
        %2665 = vmatpush1.xpose.msra.mxu0 0.0
        %2666 = vmatprep.subr.mxu0 0.0
        %2667 = vmatpush1.xpose.msra.mxu0 0.0
        %2668 = vmatprep.subr.mxu0 0.0
        %2669 = vmatpush1.xpose.msra.mxu0 0.0
        %2670 = vmatprep.subr.mxu0 0.0
        %2671 = vmatpush1.xpose.msra.mxu0 0.0
        %2672 = vmatprep.subr.mxu0 0.0
        %2673 = vmatpush1.xpose.msra.mxu0 0.0
        %2674 = vmatprep.subr.mxu0 0.0
        %2675 = vmatpush1.xpose.msra.mxu0 0.0
        %2676 = vmatprep.subr.mxu0 0.0
        %2677 = vmatpush1.xpose.msra.mxu0 0.0
        %2678 = vmatprep.subr.mxu0 0.0
        %2679 = vmatpush1.xpose.msra.mxu0 0.0
        %2680 = vmatprep.subr.mxu0 0.0
        %2681 = vmatpush1.xpose.msra.mxu0 0.0
        %2682 = vmatprep.subr.mxu0 0.0
        %2683 = vmatpush1.xpose.msra.mxu0 0.0
        %2684 = vmatprep.subr.mxu0 0.0
        %2685 = vmatpush1.xpose.msra.mxu0 0.0
        %2686 = vmatprep.subr.mxu0 0.0
        %2687 = vmatpush1.xpose.msra.mxu0 0.0
        %2688 = vmatprep.mubr.f32.mxu0 0.0
        %v2689 = vand.u32 %v382, 4294901760
        %2690 = vmatmul.mubr.f32.gmra.mrb[0].mxu0 %v2689
        %v2691 = vpop.f32.mrb[0].mxu0
        %v2692 = vadd.f32 %v2612, %v2691
        %v2693 = vpop.f32.mrb[0].mxu0
        %2694 = vdwg.mxu0
        %2695 = vmatprep.subr.mxu0 0.0
        %v2696 = vand.u32 %v339, 4294901760
        %2697 = vmatpush1.xpose.msra.mxu0 %v2696
        %2698 = vmatprep.subr.mxu0 0.0
        %v2699 = vand.u32 %v340, 4294901760
        %2700 = vmatpush1.xpose.msra.mxu0 %v2699
        %2701 = vmatprep.subr.mxu0 0.0
        %v2702 = vand.u32 %v341, 4294901760
        %2703 = vmatpush1.xpose.msra.mxu0 %v2702
        %2704 = vmatprep.subr.mxu0 0.0
        %2705 = vmatpush1.xpose.msra.mxu0 0.0
        %2706 = vmatprep.subr.mxu0 0.0
        %2707 = vmatpush1.xpose.msra.mxu0 0.0
        %2708 = vmatprep.subr.mxu0 0.0
        %2709 = vmatpush1.xpose.msra.mxu0 0.0
        %2710 = vmatprep.subr.mxu0 0.0
        %2711 = vmatpush1.xpose.msra.mxu0 0.0
        %2712 = vmatprep.subr.mxu0 0.0
        %2713 = vmatpush1.xpose.msra.mxu0 0.0
        %2714 = vmatprep.subr.mxu0 0.0
        %2715 = vmatpush1.xpose.msra.mxu0 0.0
        %2716 = vmatprep.subr.mxu0 0.0
        %2717 = vmatpush1.xpose.msra.mxu0 0.0
        %2718 = vmatprep.subr.mxu0 0.0
        %2719 = vmatpush1.xpose.msra.mxu0 0.0
        %2720 = vmatprep.subr.mxu0 0.0
        %2721 = vmatpush1.xpose.msra.mxu0 0.0
        %2722 = vmatprep.subr.mxu0 0.0
        %2723 = vmatpush1.xpose.msra.mxu0 0.0
        %2724 = vmatprep.subr.mxu0 0.0
        %2725 = vmatpush1.xpose.msra.mxu0 0.0
        %2726 = vmatprep.subr.mxu0 0.0
        %2727 = vmatpush1.xpose.msra.mxu0 0.0
        %2728 = vmatprep.subr.mxu0 0.0
        %2729 = vmatpush1.xpose.msra.mxu0 0.0
        %2730 = vmatprep.subr.mxu0 0.0
        %2731 = vmatpush1.xpose.msra.mxu0 0.0
        %2732 = vmatprep.subr.mxu0 0.0
        %2733 = vmatpush1.xpose.msra.mxu0 0.0
        %2734 = vmatprep.subr.mxu0 0.0
        %2735 = vmatpush1.xpose.msra.mxu0 0.0
        %2736 = vmatprep.subr.mxu0 0.0
        %2737 = vmatpush1.xpose.msra.mxu0 0.0
        %2738 = vmatprep.subr.mxu0 0.0
        %2739 = vmatpush1.xpose.msra.mxu0 0.0
        %2740 = vmatprep.subr.mxu0 0.0
        %2741 = vmatpush1.xpose.msra.mxu0 0.0
        %2742 = vmatprep.subr.mxu0 0.0
        %2743 = vmatpush1.xpose.msra.mxu0 0.0
        %2744 = vmatprep.subr.mxu0 0.0
        %2745 = vmatpush1.xpose.msra.mxu0 0.0
        %2746 = vmatprep.subr.mxu0 0.0
        %2747 = vmatpush1.xpose.msra.mxu0 0.0
        %2748 = vmatprep.subr.mxu0 0.0
        %2749 = vmatpush1.xpose.msra.mxu0 0.0
        %2750 = vmatprep.subr.mxu0 0.0
        %2751 = vmatpush1.xpose.msra.mxu0 0.0
        %2752 = vmatprep.subr.mxu0 0.0
        %2753 = vmatpush1.xpose.msra.mxu0 0.0
        %2754 = vmatprep.subr.mxu0 0.0
        %2755 = vmatpush1.xpose.msra.mxu0 0.0
        %2756 = vmatprep.subr.mxu0 0.0
        %2757 = vmatpush1.xpose.msra.mxu0 0.0
        %2758 = vmatprep.subr.mxu0 0.0
        %2759 = vmatpush1.xpose.msra.mxu0 0.0
        %2760 = vmatprep.subr.mxu0 0.0
        %2761 = vmatpush1.xpose.msra.mxu0 0.0
        %2762 = vmatprep.mubr.f32.mxu0 0.0
        %v2763 = vand.u32 %v382, 4294901760
        %2764 = vmatmul.mubr.f32.gmra.mrb[0].mxu0 %v2763
        %v2765 = vpop.f32.mrb[0].mxu0
        %v2766 = vadd.f32 %v2692, %v2765
        %v2767 = vpop.f32.mrb[0].mxu0
        %2768 = vdwg.mxu0
        %2769 = vmatprep.subr.mxu0 0.0
        %v2770 = vand.u32 %v342, 4294901760
        %2771 = vmatpush1.xpose.msra.mxu0 %v2770
        %2772 = vmatprep.subr.mxu0 0.0
        %v2773 = vand.u32 %v343, 4294901760
        %2774 = vmatpush1.xpose.msra.mxu0 %v2773
        %2775 = vmatprep.subr.mxu0 0.0
        %v2776 = vand.u32 %v344, 4294901760
        %2777 = vmatpush1.xpose.msra.mxu0 %v2776
        %2778 = vmatprep.subr.mxu0 0.0
        %2779 = vmatpush1.xpose.msra.mxu0 0.0
        %2780 = vmatprep.subr.mxu0 0.0
        %2781 = vmatpush1.xpose.msra.mxu0 0.0
        %2782 = vmatprep.subr.mxu0 0.0
        %2783 = vmatpush1.xpose.msra.mxu0 0.0
        %2784 = vmatprep.subr.mxu0 0.0
        %2785 = vmatpush1.xpose.msra.mxu0 0.0
        %2786 = vmatprep.subr.mxu0 0.0
        %2787 = vmatpush1.xpose.msra.mxu0 0.0
        %2788 = vmatprep.subr.mxu0 0.0
        %2789 = vmatpush1.xpose.msra.mxu0 0.0
        %2790 = vmatprep.subr.mxu0 0.0
        %2791 = vmatpush1.xpose.msra.mxu0 0.0
        %2792 = vmatprep.subr.mxu0 0.0
        %2793 = vmatpush1.xpose.msra.mxu0 0.0
        %2794 = vmatprep.subr.mxu0 0.0
        %2795 = vmatpush1.xpose.msra.mxu0 0.0
        %2796 = vmatprep.subr.mxu0 0.0
        %2797 = vmatpush1.xpose.msra.mxu0 0.0
        %2798 = vmatprep.subr.mxu0 0.0
        %2799 = vmatpush1.xpose.msra.mxu0 0.0
        %2800 = vmatprep.subr.mxu0 0.0
        %2801 = vmatpush1.xpose.msra.mxu0 0.0
        %2802 = vmatprep.subr.mxu0 0.0
        %2803 = vmatpush1.xpose.msra.mxu0 0.0
        %2804 = vmatprep.subr.mxu0 0.0
        %2805 = vmatpush1.xpose.msra.mxu0 0.0
        %2806 = vmatprep.subr.mxu0 0.0
        %2807 = vmatpush1.xpose.msra.mxu0 0.0
        %2808 = vmatprep.subr.mxu0 0.0
        %2809 = vmatpush1.xpose.msra.mxu0 0.0
        %2810 = vmatprep.subr.mxu0 0.0
        %2811 = vmatpush1.xpose.msra.mxu0 0.0
        %2812 = vmatprep.subr.mxu0 0.0
        %2813 = vmatpush1.xpose.msra.mxu0 0.0
        %2814 = vmatprep.subr.mxu0 0.0
        %2815 = vmatpush1.xpose.msra.mxu0 0.0
        %2816 = vmatprep.subr.mxu0 0.0
        %2817 = vmatpush1.xpose.msra.mxu0 0.0
        %2818 = vmatprep.subr.mxu0 0.0
        %2819 = vmatpush1.xpose.msra.mxu0 0.0
        %2820 = vmatprep.subr.mxu0 0.0
        %2821 = vmatpush1.xpose.msra.mxu0 0.0
        %2822 = vmatprep.subr.mxu0 0.0
        %2823 = vmatpush1.xpose.msra.mxu0 0.0
        %2824 = vmatprep.subr.mxu0 0.0
        %2825 = vmatpush1.xpose.msra.mxu0 0.0
        %2826 = vmatprep.subr.mxu0 0.0
        %2827 = vmatpush1.xpose.msra.mxu0 0.0
        %2828 = vmatprep.subr.mxu0 0.0
        %2829 = vmatpush1.xpose.msra.mxu0 0.0
        %2830 = vmatprep.subr.mxu0 0.0
        %2831 = vmatpush1.xpose.msra.mxu0 0.0
        %2832 = vmatprep.subr.mxu0 0.0
        %2833 = vmatpush1.xpose.msra.mxu0 0.0
        %2834 = vmatprep.subr.mxu0 0.0
        %2835 = vmatpush1.xpose.msra.mxu0 0.0
        %2836 = vmatprep.mubr.f32.mxu0 0.0
        %v2837 = vand.u32 %v396, 4294901760
        %v2838 = vsub.f32 %v396, %v2837
        %v2839 = vand.u32 %v2838, 4294901760
        %v2840 = vsub.f32 %v2838, %v2839
        %v2841 = vand.u32 %v2840, 4294901760
        %2842 = vmatmul.mubr.f32.gmra.mrb[0].mxu0 %v2841
        %v2843 = vpop.f32.mrb[0].mxu0
        %v2844 = vadd.f32 0.0, %v2843
        %v2845 = vpop.f32.mrb[0].mxu0
        %2846 = vdwg.mxu0
        %2847 = vmatprep.subr.mxu0 0.0
        %v2848 = vand.u32 %v342, 4294901760
        %v2849 = vsub.f32 %v342, %v2848
        %v2850 = vand.u32 %v2849, 4294901760
        %v2851 = vsub.f32 %v2849, %v2850
        %v2852 = vand.u32 %v2851, 4294901760
        %2853 = vmatpush1.xpose.msra.mxu0 %v2852
        %2854 = vmatprep.subr.mxu0 0.0
        %v2855 = vand.u32 %v343, 4294901760
        %v2856 = vsub.f32 %v343, %v2855
        %v2857 = vand.u32 %v2856, 4294901760
        %v2858 = vsub.f32 %v2856, %v2857
        %v2859 = vand.u32 %v2858, 4294901760
        %2860 = vmatpush1.xpose.msra.mxu0 %v2859
        %2861 = vmatprep.subr.mxu0 0.0
        %v2862 = vand.u32 %v344, 4294901760
        %v2863 = vsub.f32 %v344, %v2862
        %v2864 = vand.u32 %v2863, 4294901760
        %v2865 = vsub.f32 %v2863, %v2864
        %v2866 = vand.u32 %v2865, 4294901760
        %2867 = vmatpush1.xpose.msra.mxu0 %v2866
        %2868 = vmatprep.subr.mxu0 0.0
        %2869 = vmatpush1.xpose.msra.mxu0 0.0
        %2870 = vmatprep.subr.mxu0 0.0
        %2871 = vmatpush1.xpose.msra.mxu0 0.0
        %2872 = vmatprep.subr.mxu0 0.0
        %2873 = vmatpush1.xpose.msra.mxu0 0.0
        %2874 = vmatprep.subr.mxu0 0.0
        %2875 = vmatpush1.xpose.msra.mxu0 0.0
        %2876 = vmatprep.subr.mxu0 0.0
        %2877 = vmatpush1.xpose.msra.mxu0 0.0
        %2878 = vmatprep.subr.mxu0 0.0
        %2879 = vmatpush1.xpose.msra.mxu0 0.0
        %2880 = vmatprep.subr.mxu0 0.0
        %2881 = vmatpush1.xpose.msra.mxu0 0.0
        %2882 = vmatprep.subr.mxu0 0.0
        %2883 = vmatpush1.xpose.msra.mxu0 0.0
        %2884 = vmatprep.subr.mxu0 0.0
        %2885 = vmatpush1.xpose.msra.mxu0 0.0
        %2886 = vmatprep.subr.mxu0 0.0
        %2887 = vmatpush1.xpose.msra.mxu0 0.0
        %2888 = vmatprep.subr.mxu0 0.0
        %2889 = vmatpush1.xpose.msra.mxu0 0.0
        %2890 = vmatprep.subr.mxu0 0.0
        %2891 = vmatpush1.xpose.msra.mxu0 0.0
        %2892 = vmatprep.subr.mxu0 0.0
        %2893 = vmatpush1.xpose.msra.mxu0 0.0
        %2894 = vmatprep.subr.mxu0 0.0
        %2895 = vmatpush1.xpose.msra.mxu0 0.0
        %2896 = vmatprep.subr.mxu0 0.0
        %2897 = vmatpush1.xpose.msra.mxu0 0.0
        %2898 = vmatprep.subr.mxu0 0.0
        %2899 = vmatpush1.xpose.msra.mxu0 0.0
        %2900 = vmatprep.subr.mxu0 0.0
        %2901 = vmatpush1.xpose.msra.mxu0 0.0
        %2902 = vmatprep.subr.mxu0 0.0
        %2903 = vmatpush1.xpose.msra.mxu0 0.0
        %2904 = vmatprep.subr.mxu0 0.0
        %2905 = vmatpush1.xpose.msra.mxu0 0.0
        %2906 = vmatprep.subr.mxu0 0.0
        %2907 = vmatpush1.xpose.msra.mxu0 0.0
        %2908 = vmatprep.subr.mxu0 0.0
        %2909 = vmatpush1.xpose.msra.mxu0 0.0
        %2910 = vmatprep.subr.mxu0 0.0
        %2911 = vmatpush1.xpose.msra.mxu0 0.0
        %2912 = vmatprep.subr.mxu0 0.0
        %2913 = vmatpush1.xpose.msra.mxu0 0.0
        %2914 = vmatprep.subr.mxu0 0.0
        %2915 = vmatpush1.xpose.msra.mxu0 0.0
        %2916 = vmatprep.subr.mxu0 0.0
        %2917 = vmatpush1.xpose.msra.mxu0 0.0
        %2918 = vmatprep.subr.mxu0 0.0
        %2919 = vmatpush1.xpose.msra.mxu0 0.0
        %2920 = vmatprep.subr.mxu0 0.0
        %2921 = vmatpush1.xpose.msra.mxu0 0.0
        %2922 = vmatprep.subr.mxu0 0.0
        %2923 = vmatpush1.xpose.msra.mxu0 0.0
        %2924 = vmatprep.subr.mxu0 0.0
        %2925 = vmatpush1.xpose.msra.mxu0 0.0
        %2926 = vmatprep.mubr.f32.mxu0 0.0
        %v2927 = vand.u32 %v396, 4294901760
        %2928 = vmatmul.mubr.f32.gmra.mrb[0].mxu0 %v2927
        %v2929 = vpop.f32.mrb[0].mxu0
        %v2930 = vadd.f32 %v2844, %v2929
        %v2931 = vpop.f32.mrb[0].mxu0
        %2932 = vdwg.mxu0
        %2933 = vmatprep.subr.mxu0 0.0
        %v2934 = vand.u32 %v342, 4294901760
        %v2935 = vsub.f32 %v342, %v2934
        %2936 = vmatpush1.xpose.msra.mxu0 %v2935
        %2937 = vmatprep.subr.mxu0 0.0
        %v2938 = vand.u32 %v343, 4294901760
        %v2939 = vsub.f32 %v343, %v2938
        %2940 = vmatpush1.xpose.msra.mxu0 %v2939
        %2941 = vmatprep.subr.mxu0 0.0
        %v2942 = vand.u32 %v344, 4294901760
        %v2943 = vsub.f32 %v344, %v2942
        %2944 = vmatpush1.xpose.msra.mxu0 %v2943
        %2945 = vmatprep.subr.mxu0 0.0
        %2946 = vmatpush1.xpose.msra.mxu0 0.0
        %2947 = vmatprep.subr.mxu0 0.0
        %2948 = vmatpush1.xpose.msra.mxu0 0.0
        %2949 = vmatprep.subr.mxu0 0.0
        %2950 = vmatpush1.xpose.msra.mxu0 0.0
        %2951 = vmatprep.subr.mxu0 0.0
        %2952 = vmatpush1.xpose.msra.mxu0 0.0
        %2953 = vmatprep.subr.mxu0 0.0
        %2954 = vmatpush1.xpose.msra.mxu0 0.0
        %2955 = vmatprep.subr.mxu0 0.0
        %2956 = vmatpush1.xpose.msra.mxu0 0.0
        %2957 = vmatprep.subr.mxu0 0.0
        %2958 = vmatpush1.xpose.msra.mxu0 0.0
        %2959 = vmatprep.subr.mxu0 0.0
        %2960 = vmatpush1.xpose.msra.mxu0 0.0
        %2961 = vmatprep.subr.mxu0 0.0
        %2962 = vmatpush1.xpose.msra.mxu0 0.0
        %2963 = vmatprep.subr.mxu0 0.0
        %2964 = vmatpush1.xpose.msra.mxu0 0.0
        %2965 = vmatprep.subr.mxu0 0.0
        %2966 = vmatpush1.xpose.msra.mxu0 0.0
        %2967 = vmatprep.subr.mxu0 0.0
        %2968 = vmatpush1.xpose.msra.mxu0 0.0
        %2969 = vmatprep.subr.mxu0 0.0
        %2970 = vmatpush1.xpose.msra.mxu0 0.0
        %2971 = vmatprep.subr.mxu0 0.0
        %2972 = vmatpush1.xpose.msra.mxu0 0.0
        %2973 = vmatprep.subr.mxu0 0.0
        %2974 = vmatpush1.xpose.msra.mxu0 0.0
        %2975 = vmatprep.subr.mxu0 0.0
        %2976 = vmatpush1.xpose.msra.mxu0 0.0
        %2977 = vmatprep.subr.mxu0 0.0
        %2978 = vmatpush1.xpose.msra.mxu0 0.0
        %2979 = vmatprep.subr.mxu0 0.0
        %2980 = vmatpush1.xpose.msra.mxu0 0.0
        %2981 = vmatprep.subr.mxu0 0.0
        %2982 = vmatpush1.xpose.msra.mxu0 0.0
        %2983 = vmatprep.subr.mxu0 0.0
        %2984 = vmatpush1.xpose.msra.mxu0 0.0
        %2985 = vmatprep.subr.mxu0 0.0
        %2986 = vmatpush1.xpose.msra.mxu0 0.0
        %2987 = vmatprep.subr.mxu0 0.0
        %2988 = vmatpush1.xpose.msra.mxu0 0.0
        %2989 = vmatprep.subr.mxu0 0.0
        %2990 = vmatpush1.xpose.msra.mxu0 0.0
        %2991 = vmatprep.subr.mxu0 0.0
        %2992 = vmatpush1.xpose.msra.mxu0 0.0
        %2993 = vmatprep.subr.mxu0 0.0
        %2994 = vmatpush1.xpose.msra.mxu0 0.0
        %2995 = vmatprep.subr.mxu0 0.0
        %2996 = vmatpush1.xpose.msra.mxu0 0.0
        %2997 = vmatprep.subr.mxu0 0.0
        %2998 = vmatpush1.xpose.msra.mxu0 0.0
        %2999 = vmatprep.subr.mxu0 0.0
        %3000 = vmatpush1.xpose.msra.mxu0 0.0
        %3001 = vmatprep.subr.mxu0 0.0
        %3002 = vmatpush1.xpose.msra.mxu0 0.0
        %3003 = vmatprep.mubr.f32.mxu0 0.0
        %v3004 = vand.u32 %v396, 4294901760
        %v3005 = vsub.f32 %v396, %v3004
        %3006 = vmatmul.mubr.f32.gmra.mrb[0].mxu0 %v3005
        %v3007 = vpop.f32.mrb[0].mxu0
        %v3008 = vadd.f32 %v2930, %v3007
        %v3009 = vpop.f32.mrb[0].mxu0
        %3010 = vdwg.mxu0
        %3011 = vmatprep.subr.mxu0 0.0
        %v3012 = vand.u32 %v342, 4294901760
        %3013 = vmatpush1.xpose.msra.mxu0 %v3012
        %3014 = vmatprep.subr.mxu0 0.0
        %v3015 = vand.u32 %v343, 4294901760
        %3016 = vmatpush1.xpose.msra.mxu0 %v3015
        %3017 = vmatprep.subr.mxu0 0.0
        %v3018 = vand.u32 %v344, 4294901760
        %3019 = vmatpush1.xpose.msra.mxu0 %v3018
        %3020 = vmatprep.subr.mxu0 0.0
        %3021 = vmatpush1.xpose.msra.mxu0 0.0
        %3022 = vmatprep.subr.mxu0 0.0
        %3023 = vmatpush1.xpose.msra.mxu0 0.0
        %3024 = vmatprep.subr.mxu0 0.0
        %3025 = vmatpush1.xpose.msra.mxu0 0.0
        %3026 = vmatprep.subr.mxu0 0.0
        %3027 = vmatpush1.xpose.msra.mxu0 0.0
        %3028 = vmatprep.subr.mxu0 0.0
        %3029 = vmatpush1.xpose.msra.mxu0 0.0
        %3030 = vmatprep.subr.mxu0 0.0
        %3031 = vmatpush1.xpose.msra.mxu0 0.0
        %3032 = vmatprep.subr.mxu0 0.0
        %3033 = vmatpush1.xpose.msra.mxu0 0.0
        %3034 = vmatprep.subr.mxu0 0.0
        %3035 = vmatpush1.xpose.msra.mxu0 0.0
        %3036 = vmatprep.subr.mxu0 0.0
        %3037 = vmatpush1.xpose.msra.mxu0 0.0
        %3038 = vmatprep.subr.mxu0 0.0
        %3039 = vmatpush1.xpose.msra.mxu0 0.0
        %3040 = vmatprep.subr.mxu0 0.0
        %3041 = vmatpush1.xpose.msra.mxu0 0.0
        %3042 = vmatprep.subr.mxu0 0.0
        %3043 = vmatpush1.xpose.msra.mxu0 0.0
        %3044 = vmatprep.subr.mxu0 0.0
        %3045 = vmatpush1.xpose.msra.mxu0 0.0
        %3046 = vmatprep.subr.mxu0 0.0
        %3047 = vmatpush1.xpose.msra.mxu0 0.0
        %3048 = vmatprep.subr.mxu0 0.0
        %3049 = vmatpush1.xpose.msra.mxu0 0.0
        %3050 = vmatprep.subr.mxu0 0.0
        %3051 = vmatpush1.xpose.msra.mxu0 0.0
        %3052 = vmatprep.subr.mxu0 0.0
        %3053 = vmatpush1.xpose.msra.mxu0 0.0
        %3054 = vmatprep.subr.mxu0 0.0
        %3055 = vmatpush1.xpose.msra.mxu0 0.0
        %3056 = vmatprep.subr.mxu0 0.0
        %3057 = vmatpush1.xpose.msra.mxu0 0.0
        %3058 = vmatprep.subr.mxu0 0.0
        %3059 = vmatpush1.xpose.msra.mxu0 0.0
        %3060 = vmatprep.subr.mxu0 0.0
        %3061 = vmatpush1.xpose.msra.mxu0 0.0
        %3062 = vmatprep.subr.mxu0 0.0
        %3063 = vmatpush1.xpose.msra.mxu0 0.0
        %3064 = vmatprep.subr.mxu0 0.0
        %3065 = vmatpush1.xpose.msra.mxu0 0.0
        %3066 = vmatprep.subr.mxu0 0.0
        %3067 = vmatpush1.xpose.msra.mxu0 0.0
        %3068 = vmatprep.subr.mxu0 0.0
        %3069 = vmatpush1.xpose.msra.mxu0 0.0
        %3070 = vmatprep.subr.mxu0 0.0
        %3071 = vmatpush1.xpose.msra.mxu0 0.0
        %3072 = vmatprep.subr.mxu0 0.0
        %3073 = vmatpush1.xpose.msra.mxu0 0.0
        %3074 = vmatprep.subr.mxu0 0.0
        %3075 = vmatpush1.xpose.msra.mxu0 0.0
        %3076 = vmatprep.subr.mxu0 0.0
        %3077 = vmatpush1.xpose.msra.mxu0 0.0
        %3078 = vmatprep.mubr.f32.mxu0 0.0
        %v3079 = vand.u32 %v396, 4294901760
        %v3080 = vsub.f32 %v396, %v3079
        %v3081 = vand.u32 %v3080, 4294901760
        %3082 = vmatmul.mubr.f32.gmra.mrb[0].mxu0 %v3081
        %v3083 = vpop.f32.mrb[0].mxu0
        %v3084 = vadd.f32 %v3008, %v3083
        %v3085 = vpop.f32.mrb[0].mxu0
        %3086 = vdwg.mxu0
        %3087 = vmatprep.subr.mxu0 0.0
        %v3088 = vand.u32 %v342, 4294901760
        %v3089 = vsub.f32 %v342, %v3088
        %v3090 = vand.u32 %v3089, 4294901760
        %3091 = vmatpush1.xpose.msra.mxu0 %v3090
        %3092 = vmatprep.subr.mxu0 0.0
        %v3093 = vand.u32 %v343, 4294901760
        %v3094 = vsub.f32 %v343, %v3093
        %v3095 = vand.u32 %v3094, 4294901760
        %3096 = vmatpush1.xpose.msra.mxu0 %v3095
        %3097 = vmatprep.subr.mxu0 0.0
        %v3098 = vand.u32 %v344, 4294901760
        %v3099 = vsub.f32 %v344, %v3098
        %v3100 = vand.u32 %v3099, 4294901760
        %3101 = vmatpush1.xpose.msra.mxu0 %v3100
        %3102 = vmatprep.subr.mxu0 0.0
        %3103 = vmatpush1.xpose.msra.mxu0 0.0
        %3104 = vmatprep.subr.mxu0 0.0
        %3105 = vmatpush1.xpose.msra.mxu0 0.0
        %3106 = vmatprep.subr.mxu0 0.0
        %3107 = vmatpush1.xpose.msra.mxu0 0.0
        %3108 = vmatprep.subr.mxu0 0.0
        %3109 = vmatpush1.xpose.msra.mxu0 0.0
        %3110 = vmatprep.subr.mxu0 0.0
        %3111 = vmatpush1.xpose.msra.mxu0 0.0
        %3112 = vmatprep.subr.mxu0 0.0
        %3113 = vmatpush1.xpose.msra.mxu0 0.0
        %3114 = vmatprep.subr.mxu0 0.0
        %3115 = vmatpush1.xpose.msra.mxu0 0.0
        %3116 = vmatprep.subr.mxu0 0.0
        %3117 = vmatpush1.xpose.msra.mxu0 0.0
        %3118 = vmatprep.subr.mxu0 0.0
        %3119 = vmatpush1.xpose.msra.mxu0 0.0
        %3120 = vmatprep.subr.mxu0 0.0
        %3121 = vmatpush1.xpose.msra.mxu0 0.0
        %3122 = vmatprep.subr.mxu0 0.0
        %3123 = vmatpush1.xpose.msra.mxu0 0.0
        %3124 = vmatprep.subr.mxu0 0.0
        %3125 = vmatpush1.xpose.msra.mxu0 0.0
        %3126 = vmatprep.subr.mxu0 0.0
        %3127 = vmatpush1.xpose.msra.mxu0 0.0
        %3128 = vmatprep.subr.mxu0 0.0
        %3129 = vmatpush1.xpose.msra.mxu0 0.0
        %3130 = vmatprep.subr.mxu0 0.0
        %3131 = vmatpush1.xpose.msra.mxu0 0.0
        %3132 = vmatprep.subr.mxu0 0.0
        %3133 = vmatpush1.xpose.msra.mxu0 0.0
        %3134 = vmatprep.subr.mxu0 0.0
        %3135 = vmatpush1.xpose.msra.mxu0 0.0
        %3136 = vmatprep.subr.mxu0 0.0
        %3137 = vmatpush1.xpose.msra.mxu0 0.0
        %3138 = vmatprep.subr.mxu0 0.0
        %3139 = vmatpush1.xpose.msra.mxu0 0.0
        %3140 = vmatprep.subr.mxu0 0.0
        %3141 = vmatpush1.xpose.msra.mxu0 0.0
        %3142 = vmatprep.subr.mxu0 0.0
        %3143 = vmatpush1.xpose.msra.mxu0 0.0
        %3144 = vmatprep.subr.mxu0 0.0
        %3145 = vmatpush1.xpose.msra.mxu0 0.0
        %3146 = vmatprep.subr.mxu0 0.0
        %3147 = vmatpush1.xpose.msra.mxu0 0.0
        %3148 = vmatprep.subr.mxu0 0.0
        %3149 = vmatpush1.xpose.msra.mxu0 0.0
        %3150 = vmatprep.subr.mxu0 0.0
        %3151 = vmatpush1.xpose.msra.mxu0 0.0
        %3152 = vmatprep.subr.mxu0 0.0
        %3153 = vmatpush1.xpose.msra.mxu0 0.0
        %3154 = vmatprep.subr.mxu0 0.0
        %3155 = vmatpush1.xpose.msra.mxu0 0.0
        %3156 = vmatprep.subr.mxu0 0.0
        %3157 = vmatpush1.xpose.msra.mxu0 0.0
        %3158 = vmatprep.subr.mxu0 0.0
        %3159 = vmatpush1.xpose.msra.mxu0 0.0
        %3160 = vmatprep.mubr.f32.mxu0 0.0
        %v3161 = vand.u32 %v396, 4294901760
        %3162 = vmatmul.mubr.f32.gmra.mrb[0].mxu0 %v3161
        %v3163 = vpop.f32.mrb[0].mxu0
        %v3164 = vadd.f32 %v3084, %v3163
        %v3165 = vpop.f32.mrb[0].mxu0
        %3166 = vdwg.mxu0
        %3167 = vmatprep.subr.mxu0 0.0
        %v3168 = vand.u32 %v342, 4294901760
        %3169 = vmatpush1.xpose.msra.mxu0 %v3168
        %3170 = vmatprep.subr.mxu0 0.0
        %v3171 = vand.u32 %v343, 4294901760
        %3172 = vmatpush1.xpose.msra.mxu0 %v3171
        %3173 = vmatprep.subr.mxu0 0.0
        %v3174 = vand.u32 %v344, 4294901760
        %3175 = vmatpush1.xpose.msra.mxu0 %v3174
        %3176 = vmatprep.subr.mxu0 0.0
        %3177 = vmatpush1.xpose.msra.mxu0 0.0
        %3178 = vmatprep.subr.mxu0 0.0
        %3179 = vmatpush1.xpose.msra.mxu0 0.0
        %3180 = vmatprep.subr.mxu0 0.0
        %3181 = vmatpush1.xpose.msra.mxu0 0.0
        %3182 = vmatprep.subr.mxu0 0.0
        %3183 = vmatpush1.xpose.msra.mxu0 0.0
        %3184 = vmatprep.subr.mxu0 0.0
        %3185 = vmatpush1.xpose.msra.mxu0 0.0
        %3186 = vmatprep.subr.mxu0 0.0
        %3187 = vmatpush1.xpose.msra.mxu0 0.0
        %3188 = vmatprep.subr.mxu0 0.0
        %3189 = vmatpush1.xpose.msra.mxu0 0.0
        %3190 = vmatprep.subr.mxu0 0.0
        %3191 = vmatpush1.xpose.msra.mxu0 0.0
        %3192 = vmatprep.subr.mxu0 0.0
        %3193 = vmatpush1.xpose.msra.mxu0 0.0
        %3194 = vmatprep.subr.mxu0 0.0
        %3195 = vmatpush1.xpose.msra.mxu0 0.0
        %3196 = vmatprep.subr.mxu0 0.0
        %3197 = vmatpush1.xpose.msra.mxu0 0.0
        %3198 = vmatprep.subr.mxu0 0.0
        %3199 = vmatpush1.xpose.msra.mxu0 0.0
        %3200 = vmatprep.subr.mxu0 0.0
        %3201 = vmatpush1.xpose.msra.mxu0 0.0
        %3202 = vmatprep.subr.mxu0 0.0
        %3203 = vmatpush1.xpose.msra.mxu0 0.0
        %3204 = vmatprep.subr.mxu0 0.0
        %3205 = vmatpush1.xpose.msra.mxu0 0.0
        %3206 = vmatprep.subr.mxu0 0.0
        %3207 = vmatpush1.xpose.msra.mxu0 0.0
        %3208 = vmatprep.subr.mxu0 0.0
        %3209 = vmatpush1.xpose.msra.mxu0 0.0
        %3210 = vmatprep.subr.mxu0 0.0
        %3211 = vmatpush1.xpose.msra.mxu0 0.0
        %3212 = vmatprep.subr.mxu0 0.0
        %3213 = vmatpush1.xpose.msra.mxu0 0.0
        %3214 = vmatprep.subr.mxu0 0.0
        %3215 = vmatpush1.xpose.msra.mxu0 0.0
        %3216 = vmatprep.subr.mxu0 0.0
        %3217 = vmatpush1.xpose.msra.mxu0 0.0
        %3218 = vmatprep.subr.mxu0 0.0
        %3219 = vmatpush1.xpose.msra.mxu0 0.0
        %3220 = vmatprep.subr.mxu0 0.0
        %3221 = vmatpush1.xpose.msra.mxu0 0.0
        %3222 = vmatprep.subr.mxu0 0.0
        %3223 = vmatpush1.xpose.msra.mxu0 0.0
        %3224 = vmatprep.subr.mxu0 0.0
        %3225 = vmatpush1.xpose.msra.mxu0 0.0
        %3226 = vmatprep.subr.mxu0 0.0
        %3227 = vmatpush1.xpose.msra.mxu0 0.0
        %3228 = vmatprep.subr.mxu0 0.0
        %3229 = vmatpush1.xpose.msra.mxu0 0.0
        %3230 = vmatprep.subr.mxu0 0.0
        %3231 = vmatpush1.xpose.msra.mxu0 0.0
        %3232 = vmatprep.subr.mxu0 0.0
        %3233 = vmatpush1.xpose.msra.mxu0 0.0
        %3234 = vmatprep.mubr.f32.mxu0 0.0
        %v3235 = vand.u32 %v396, 4294901760
        %3236 = vmatmul.mubr.f32.gmra.mrb[0].mxu0 %v3235
        %v3237 = vpop.f32.mrb[0].mxu0
        %v3238 = vadd.f32 %v3164, %v3237
        %v3239 = vpop.f32.mrb[0].mxu0
        %3240 = vdwg.mxu0
        %3241 = vmatprep.subr.mxu0 0.0
        %v3242 = vand.u32 %v345, 4294901760
        %3243 = vmatpush1.xpose.msra.mxu0 %v3242
        %3244 = vmatprep.subr.mxu0 0.0
        %v3245 = vand.u32 %v346, 4294901760
        %3246 = vmatpush1.xpose.msra.mxu0 %v3245
        %3247 = vmatprep.subr.mxu0 0.0
        %v3248 = vand.u32 %v347, 4294901760
        %3249 = vmatpush1.xpose.msra.mxu0 %v3248
        %3250 = vmatprep.subr.mxu0 0.0
        %3251 = vmatpush1.xpose.msra.mxu0 0.0
        %3252 = vmatprep.subr.mxu0 0.0
        %3253 = vmatpush1.xpose.msra.mxu0 0.0
        %3254 = vmatprep.subr.mxu0 0.0
        %3255 = vmatpush1.xpose.msra.mxu0 0.0
        %3256 = vmatprep.subr.mxu0 0.0
        %3257 = vmatpush1.xpose.msra.mxu0 0.0
        %3258 = vmatprep.subr.mxu0 0.0
        %3259 = vmatpush1.xpose.msra.mxu0 0.0
        %3260 = vmatprep.subr.mxu0 0.0
        %3261 = vmatpush1.xpose.msra.mxu0 0.0
        %3262 = vmatprep.subr.mxu0 0.0
        %3263 = vmatpush1.xpose.msra.mxu0 0.0
        %3264 = vmatprep.subr.mxu0 0.0
        %3265 = vmatpush1.xpose.msra.mxu0 0.0
        %3266 = vmatprep.subr.mxu0 0.0
        %3267 = vmatpush1.xpose.msra.mxu0 0.0
        %3268 = vmatprep.subr.mxu0 0.0
        %3269 = vmatpush1.xpose.msra.mxu0 0.0
        %3270 = vmatprep.subr.mxu0 0.0
        %3271 = vmatpush1.xpose.msra.mxu0 0.0
        %3272 = vmatprep.subr.mxu0 0.0
        %3273 = vmatpush1.xpose.msra.mxu0 0.0
        %3274 = vmatprep.subr.mxu0 0.0
        %3275 = vmatpush1.xpose.msra.mxu0 0.0
        %3276 = vmatprep.subr.mxu0 0.0
        %3277 = vmatpush1.xpose.msra.mxu0 0.0
        %3278 = vmatprep.subr.mxu0 0.0
        %3279 = vmatpush1.xpose.msra.mxu0 0.0
        %3280 = vmatprep.subr.mxu0 0.0
        %3281 = vmatpush1.xpose.msra.mxu0 0.0
        %3282 = vmatprep.subr.mxu0 0.0
        %3283 = vmatpush1.xpose.msra.mxu0 0.0
        %3284 = vmatprep.subr.mxu0 0.0
        %3285 = vmatpush1.xpose.msra.mxu0 0.0
        %3286 = vmatprep.subr.mxu0 0.0
        %3287 = vmatpush1.xpose.msra.mxu0 0.0
        %3288 = vmatprep.subr.mxu0 0.0
        %3289 = vmatpush1.xpose.msra.mxu0 0.0
        %3290 = vmatprep.subr.mxu0 0.0
        %3291 = vmatpush1.xpose.msra.mxu0 0.0
        %3292 = vmatprep.subr.mxu0 0.0
        %3293 = vmatpush1.xpose.msra.mxu0 0.0
        %3294 = vmatprep.subr.mxu0 0.0
        %3295 = vmatpush1.xpose.msra.mxu0 0.0
        %3296 = vmatprep.subr.mxu0 0.0
        %3297 = vmatpush1.xpose.msra.mxu0 0.0
        %3298 = vmatprep.subr.mxu0 0.0
        %3299 = vmatpush1.xpose.msra.mxu0 0.0
        %3300 = vmatprep.subr.mxu0 0.0
        %3301 = vmatpush1.xpose.msra.mxu0 0.0
        %3302 = vmatprep.subr.mxu0 0.0
        %3303 = vmatpush1.xpose.msra.mxu0 0.0
        %3304 = vmatprep.subr.mxu0 0.0
        %3305 = vmatpush1.xpose.msra.mxu0 0.0
        %3306 = vmatprep.subr.mxu0 0.0
        %3307 = vmatpush1.xpose.msra.mxu0 0.0
        %3308 = vmatprep.mubr.f32.mxu0 0.0
        %v3309 = vand.u32 %v398, 4294901760
        %v3310 = vsub.f32 %v398, %v3309
        %v3311 = vand.u32 %v3310, 4294901760
        %v3312 = vsub.f32 %v3310, %v3311
        %v3313 = vand.u32 %v3312, 4294901760
        %3314 = vmatmul.mubr.f32.gmra.mrb[0].mxu0 %v3313
        %v3315 = vpop.f32.mrb[0].mxu0
        %v3316 = vadd.f32 0.0, %v3315
        %v3317 = vpop.f32.mrb[0].mxu0
        %3318 = vdwg.mxu0
        %3319 = vmatprep.subr.mxu0 0.0
        %v3320 = vand.u32 %v345, 4294901760
        %v3321 = vsub.f32 %v345, %v3320
        %v3322 = vand.u32 %v3321, 4294901760
        %v3323 = vsub.f32 %v3321, %v3322
        %v3324 = vand.u32 %v3323, 4294901760
        %3325 = vmatpush1.xpose.msra.mxu0 %v3324
        %3326 = vmatprep.subr.mxu0 0.0
        %v3327 = vand.u32 %v346, 4294901760
        %v3328 = vsub.f32 %v346, %v3327
        %v3329 = vand.u32 %v3328, 4294901760
        %v3330 = vsub.f32 %v3328, %v3329
        %v3331 = vand.u32 %v3330, 4294901760
        %3332 = vmatpush1.xpose.msra.mxu0 %v3331
        %3333 = vmatprep.subr.mxu0 0.0
        %v3334 = vand.u32 %v347, 4294901760
        %v3335 = vsub.f32 %v347, %v3334
        %v3336 = vand.u32 %v3335, 4294901760
        %v3337 = vsub.f32 %v3335, %v3336
        %v3338 = vand.u32 %v3337, 4294901760
        %3339 = vmatpush1.xpose.msra.mxu0 %v3338
        %3340 = vmatprep.subr.mxu0 0.0
        %3341 = vmatpush1.xpose.msra.mxu0 0.0
        %3342 = vmatprep.subr.mxu0 0.0
        %3343 = vmatpush1.xpose.msra.mxu0 0.0
        %3344 = vmatprep.subr.mxu0 0.0
        %3345 = vmatpush1.xpose.msra.mxu0 0.0
        %3346 = vmatprep.subr.mxu0 0.0
        %3347 = vmatpush1.xpose.msra.mxu0 0.0
        %3348 = vmatprep.subr.mxu0 0.0
        %3349 = vmatpush1.xpose.msra.mxu0 0.0
        %3350 = vmatprep.subr.mxu0 0.0
        %3351 = vmatpush1.xpose.msra.mxu0 0.0
        %3352 = vmatprep.subr.mxu0 0.0
        %3353 = vmatpush1.xpose.msra.mxu0 0.0
        %3354 = vmatprep.subr.mxu0 0.0
        %3355 = vmatpush1.xpose.msra.mxu0 0.0
        %3356 = vmatprep.subr.mxu0 0.0
        %3357 = vmatpush1.xpose.msra.mxu0 0.0
        %3358 = vmatprep.subr.mxu0 0.0
        %3359 = vmatpush1.xpose.msra.mxu0 0.0
        %3360 = vmatprep.subr.mxu0 0.0
        %3361 = vmatpush1.xpose.msra.mxu0 0.0
        %3362 = vmatprep.subr.mxu0 0.0
        %3363 = vmatpush1.xpose.msra.mxu0 0.0
        %3364 = vmatprep.subr.mxu0 0.0
        %3365 = vmatpush1.xpose.msra.mxu0 0.0
        %3366 = vmatprep.subr.mxu0 0.0
        %3367 = vmatpush1.xpose.msra.mxu0 0.0
        %3368 = vmatprep.subr.mxu0 0.0
        %3369 = vmatpush1.xpose.msra.mxu0 0.0
        %3370 = vmatprep.subr.mxu0 0.0
        %3371 = vmatpush1.xpose.msra.mxu0 0.0
        %3372 = vmatprep.subr.mxu0 0.0
        %3373 = vmatpush1.xpose.msra.mxu0 0.0
        %3374 = vmatprep.subr.mxu0 0.0
        %3375 = vmatpush1.xpose.msra.mxu0 0.0
        %3376 = vmatprep.subr.mxu0 0.0
        %3377 = vmatpush1.xpose.msra.mxu0 0.0
        %3378 = vmatprep.subr.mxu0 0.0
        %3379 = vmatpush1.xpose.msra.mxu0 0.0
        %3380 = vmatprep.subr.mxu0 0.0
        %3381 = vmatpush1.xpose.msra.mxu0 0.0
        %3382 = vmatprep.subr.mxu0 0.0
        %3383 = vmatpush1.xpose.msra.mxu0 0.0
        %3384 = vmatprep.subr.mxu0 0.0
        %3385 = vmatpush1.xpose.msra.mxu0 0.0
        %3386 = vmatprep.subr.mxu0 0.0
        %3387 = vmatpush1.xpose.msra.mxu0 0.0
        %3388 = vmatprep.subr.mxu0 0.0
        %3389 = vmatpush1.xpose.msra.mxu0 0.0
        %3390 = vmatprep.subr.mxu0 0.0
        %3391 = vmatpush1.xpose.msra.mxu0 0.0
        %3392 = vmatprep.subr.mxu0 0.0
        %3393 = vmatpush1.xpose.msra.mxu0 0.0
        %3394 = vmatprep.subr.mxu0 0.0
        %3395 = vmatpush1.xpose.msra.mxu0 0.0
        %3396 = vmatprep.subr.mxu0 0.0
        %3397 = vmatpush1.xpose.msra.mxu0 0.0
        %3398 = vmatprep.mubr.f32.mxu0 0.0
        %v3399 = vand.u32 %v398, 4294901760
        %3400 = vmatmul.mubr.f32.gmra.mrb[0].mxu0 %v3399
        %v3401 = vpop.f32.mrb[0].mxu0
        %v3402 = vadd.f32 %v3316, %v3401
        %v3403 = vpop.f32.mrb[0].mxu0
        %3404 = vdwg.mxu0
        %3405 = vmatprep.subr.mxu0 0.0
        %v3406 = vand.u32 %v345, 4294901760
        %v3407 = vsub.f32 %v345, %v3406
        %3408 = vmatpush1.xpose.msra.mxu0 %v3407
        %3409 = vmatprep.subr.mxu0 0.0
        %v3410 = vand.u32 %v346, 4294901760
        %v3411 = vsub.f32 %v346, %v3410
        %3412 = vmatpush1.xpose.msra.mxu0 %v3411
        %3413 = vmatprep.subr.mxu0 0.0
        %v3414 = vand.u32 %v347, 4294901760
        %v3415 = vsub.f32 %v347, %v3414
        %3416 = vmatpush1.xpose.msra.mxu0 %v3415
        %3417 = vmatprep.subr.mxu0 0.0
        %3418 = vmatpush1.xpose.msra.mxu0 0.0
        %3419 = vmatprep.subr.mxu0 0.0
        %3420 = vmatpush1.xpose.msra.mxu0 0.0
        %3421 = vmatprep.subr.mxu0 0.0
        %3422 = vmatpush1.xpose.msra.mxu0 0.0
        %3423 = vmatprep.subr.mxu0 0.0
        %3424 = vmatpush1.xpose.msra.mxu0 0.0
        %3425 = vmatprep.subr.mxu0 0.0
        %3426 = vmatpush1.xpose.msra.mxu0 0.0
        %3427 = vmatprep.subr.mxu0 0.0
        %3428 = vmatpush1.xpose.msra.mxu0 0.0
        %3429 = vmatprep.subr.mxu0 0.0
        %3430 = vmatpush1.xpose.msra.mxu0 0.0
        %3431 = vmatprep.subr.mxu0 0.0
        %3432 = vmatpush1.xpose.msra.mxu0 0.0
        %3433 = vmatprep.subr.mxu0 0.0
        %3434 = vmatpush1.xpose.msra.mxu0 0.0
        %3435 = vmatprep.subr.mxu0 0.0
        %3436 = vmatpush1.xpose.msra.mxu0 0.0
        %3437 = vmatprep.subr.mxu0 0.0
        %3438 = vmatpush1.xpose.msra.mxu0 0.0
        %3439 = vmatprep.subr.mxu0 0.0
        %3440 = vmatpush1.xpose.msra.mxu0 0.0
        %3441 = vmatprep.subr.mxu0 0.0
        %3442 = vmatpush1.xpose.msra.mxu0 0.0
        %3443 = vmatprep.subr.mxu0 0.0
        %3444 = vmatpush1.xpose.msra.mxu0 0.0
        %3445 = vmatprep.subr.mxu0 0.0
        %3446 = vmatpush1.xpose.msra.mxu0 0.0
        %3447 = vmatprep.subr.mxu0 0.0
        %3448 = vmatpush1.xpose.msra.mxu0 0.0
        %3449 = vmatprep.subr.mxu0 0.0
        %3450 = vmatpush1.xpose.msra.mxu0 0.0
        %3451 = vmatprep.subr.mxu0 0.0
        %3452 = vmatpush1.xpose.msra.mxu0 0.0
        %3453 = vmatprep.subr.mxu0 0.0
        %3454 = vmatpush1.xpose.msra.mxu0 0.0
        %3455 = vmatprep.subr.mxu0 0.0
        %3456 = vmatpush1.xpose.msra.mxu0 0.0
        %3457 = vmatprep.subr.mxu0 0.0
        %3458 = vmatpush1.xpose.msra.mxu0 0.0
        %3459 = vmatprep.subr.mxu0 0.0
        %3460 = vmatpush1.xpose.msra.mxu0 0.0
        %3461 = vmatprep.subr.mxu0 0.0
        %3462 = vmatpush1.xpose.msra.mxu0 0.0
        %3463 = vmatprep.subr.mxu0 0.0
        %3464 = vmatpush1.xpose.msra.mxu0 0.0
        %3465 = vmatprep.subr.mxu0 0.0
        %3466 = vmatpush1.xpose.msra.mxu0 0.0
        %3467 = vmatprep.subr.mxu0 0.0
        %3468 = vmatpush1.xpose.msra.mxu0 0.0
        %3469 = vmatprep.subr.mxu0 0.0
        %3470 = vmatpush1.xpose.msra.mxu0 0.0
        %3471 = vmatprep.subr.mxu0 0.0
        %3472 = vmatpush1.xpose.msra.mxu0 0.0
        %3473 = vmatprep.subr.mxu0 0.0
        %3474 = vmatpush1.xpose.msra.mxu0 0.0
        %3475 = vmatprep.mubr.f32.mxu0 0.0
        %v3476 = vand.u32 %v398, 4294901760
        %v3477 = vsub.f32 %v398, %v3476
        %3478 = vmatmul.mubr.f32.gmra.mrb[0].mxu0 %v3477
        %v3479 = vpop.f32.mrb[0].mxu0
        %v3480 = vadd.f32 %v3402, %v3479
        %v3481 = vpop.f32.mrb[0].mxu0
        %3482 = vdwg.mxu0
        %3483 = vmatprep.subr.mxu0 0.0
        %v3484 = vand.u32 %v345, 4294901760
        %3485 = vmatpush1.xpose.msra.mxu0 %v3484
        %3486 = vmatprep.subr.mxu0 0.0
        %v3487 = vand.u32 %v346, 4294901760
        %3488 = vmatpush1.xpose.msra.mxu0 %v3487
        %3489 = vmatprep.subr.mxu0 0.0
        %v3490 = vand.u32 %v347, 4294901760
        %3491 = vmatpush1.xpose.msra.mxu0 %v3490
        %3492 = vmatprep.subr.mxu0 0.0
        %3493 = vmatpush1.xpose.msra.mxu0 0.0
        %3494 = vmatprep.subr.mxu0 0.0
        %3495 = vmatpush1.xpose.msra.mxu0 0.0
        %3496 = vmatprep.subr.mxu0 0.0
        %3497 = vmatpush1.xpose.msra.mxu0 0.0
        %3498 = vmatprep.subr.mxu0 0.0
        %3499 = vmatpush1.xpose.msra.mxu0 0.0
        %3500 = vmatprep.subr.mxu0 0.0
        %3501 = vmatpush1.xpose.msra.mxu0 0.0
        %3502 = vmatprep.subr.mxu0 0.0
        %3503 = vmatpush1.xpose.msra.mxu0 0.0
        %3504 = vmatprep.subr.mxu0 0.0
        %3505 = vmatpush1.xpose.msra.mxu0 0.0
        %3506 = vmatprep.subr.mxu0 0.0
        %3507 = vmatpush1.xpose.msra.mxu0 0.0
        %3508 = vmatprep.subr.mxu0 0.0
        %3509 = vmatpush1.xpose.msra.mxu0 0.0
        %3510 = vmatprep.subr.mxu0 0.0
        %3511 = vmatpush1.xpose.msra.mxu0 0.0
        %3512 = vmatprep.subr.mxu0 0.0
        %3513 = vmatpush1.xpose.msra.mxu0 0.0
        %3514 = vmatprep.subr.mxu0 0.0
        %3515 = vmatpush1.xpose.msra.mxu0 0.0
        %3516 = vmatprep.subr.mxu0 0.0
        %3517 = vmatpush1.xpose.msra.mxu0 0.0
        %3518 = vmatprep.subr.mxu0 0.0
        %3519 = vmatpush1.xpose.msra.mxu0 0.0
        %3520 = vmatprep.subr.mxu0 0.0
        %3521 = vmatpush1.xpose.msra.mxu0 0.0
        %3522 = vmatprep.subr.mxu0 0.0
        %3523 = vmatpush1.xpose.msra.mxu0 0.0
        %3524 = vmatprep.subr.mxu0 0.0
        %3525 = vmatpush1.xpose.msra.mxu0 0.0
        %3526 = vmatprep.subr.mxu0 0.0
        %3527 = vmatpush1.xpose.msra.mxu0 0.0
        %3528 = vmatprep.subr.mxu0 0.0
        %3529 = vmatpush1.xpose.msra.mxu0 0.0
        %3530 = vmatprep.subr.mxu0 0.0
        %3531 = vmatpush1.xpose.msra.mxu0 0.0
        %3532 = vmatprep.subr.mxu0 0.0
        %3533 = vmatpush1.xpose.msra.mxu0 0.0
        %3534 = vmatprep.subr.mxu0 0.0
        %3535 = vmatpush1.xpose.msra.mxu0 0.0
        %3536 = vmatprep.subr.mxu0 0.0
        %3537 = vmatpush1.xpose.msra.mxu0 0.0
        %3538 = vmatprep.subr.mxu0 0.0
        %3539 = vmatpush1.xpose.msra.mxu0 0.0
        %3540 = vmatprep.subr.mxu0 0.0
        %3541 = vmatpush1.xpose.msra.mxu0 0.0
        %3542 = vmatprep.subr.mxu0 0.0
        %3543 = vmatpush1.xpose.msra.mxu0 0.0
        %3544 = vmatprep.subr.mxu0 0.0
        %3545 = vmatpush1.xpose.msra.mxu0 0.0
        %3546 = vmatprep.subr.mxu0 0.0
        %3547 = vmatpush1.xpose.msra.mxu0 0.0
        %3548 = vmatprep.subr.mxu0 0.0
        %3549 = vmatpush1.xpose.msra.mxu0 0.0
        %3550 = vmatprep.mubr.f32.mxu0 0.0
        %v3551 = vand.u32 %v398, 4294901760
        %v3552 = vsub.f32 %v398, %v3551
        %v3553 = vand.u32 %v3552, 4294901760
        %3554 = vmatmul.mubr.f32.gmra.mrb[0].mxu0 %v3553
        %v3555 = vpop.f32.mrb[0].mxu0
        %v3556 = vadd.f32 %v3480, %v3555
        %v3557 = vpop.f32.mrb[0].mxu0
        %3558 = vdwg.mxu0
        %3559 = vmatprep.subr.mxu0 0.0
        %v3560 = vand.u32 %v345, 4294901760
        %v3561 = vsub.f32 %v345, %v3560
        %v3562 = vand.u32 %v3561, 4294901760
        %3563 = vmatpush1.xpose.msra.mxu0 %v3562
        %3564 = vmatprep.subr.mxu0 0.0
        %v3565 = vand.u32 %v346, 4294901760
        %v3566 = vsub.f32 %v346, %v3565
        %v3567 = vand.u32 %v3566, 4294901760
        %3568 = vmatpush1.xpose.msra.mxu0 %v3567
        %3569 = vmatprep.subr.mxu0 0.0
        %v3570 = vand.u32 %v347, 4294901760
        %v3571 = vsub.f32 %v347, %v3570
        %v3572 = vand.u32 %v3571, 4294901760
        %3573 = vmatpush1.xpose.msra.mxu0 %v3572
        %3574 = vmatprep.subr.mxu0 0.0
        %3575 = vmatpush1.xpose.msra.mxu0 0.0
        %3576 = vmatprep.subr.mxu0 0.0
        %3577 = vmatpush1.xpose.msra.mxu0 0.0
        %3578 = vmatprep.subr.mxu0 0.0
        %3579 = vmatpush1.xpose.msra.mxu0 0.0
        %3580 = vmatprep.subr.mxu0 0.0
        %3581 = vmatpush1.xpose.msra.mxu0 0.0
        %3582 = vmatprep.subr.mxu0 0.0
        %3583 = vmatpush1.xpose.msra.mxu0 0.0
        %3584 = vmatprep.subr.mxu0 0.0
        %3585 = vmatpush1.xpose.msra.mxu0 0.0
        %3586 = vmatprep.subr.mxu0 0.0
        %3587 = vmatpush1.xpose.msra.mxu0 0.0
        %3588 = vmatprep.subr.mxu0 0.0
        %3589 = vmatpush1.xpose.msra.mxu0 0.0
        %3590 = vmatprep.subr.mxu0 0.0
        %3591 = vmatpush1.xpose.msra.mxu0 0.0
        %3592 = vmatprep.subr.mxu0 0.0
        %3593 = vmatpush1.xpose.msra.mxu0 0.0
        %3594 = vmatprep.subr.mxu0 0.0
        %3595 = vmatpush1.xpose.msra.mxu0 0.0
        %3596 = vmatprep.subr.mxu0 0.0
        %3597 = vmatpush1.xpose.msra.mxu0 0.0
        %3598 = vmatprep.subr.mxu0 0.0
        %3599 = vmatpush1.xpose.msra.mxu0 0.0
        %3600 = vmatprep.subr.mxu0 0.0
        %3601 = vmatpush1.xpose.msra.mxu0 0.0
        %3602 = vmatprep.subr.mxu0 0.0
        %3603 = vmatpush1.xpose.msra.mxu0 0.0
        %3604 = vmatprep.subr.mxu0 0.0
        %3605 = vmatpush1.xpose.msra.mxu0 0.0
        %3606 = vmatprep.subr.mxu0 0.0
        %3607 = vmatpush1.xpose.msra.mxu0 0.0
        %3608 = vmatprep.subr.mxu0 0.0
        %3609 = vmatpush1.xpose.msra.mxu0 0.0
        %3610 = vmatprep.subr.mxu0 0.0
        %3611 = vmatpush1.xpose.msra.mxu0 0.0
        %3612 = vmatprep.subr.mxu0 0.0
        %3613 = vmatpush1.xpose.msra.mxu0 0.0
        %3614 = vmatprep.subr.mxu0 0.0
        %3615 = vmatpush1.xpose.msra.mxu0 0.0
        %3616 = vmatprep.subr.mxu0 0.0
        %3617 = vmatpush1.xpose.msra.mxu0 0.0
        %3618 = vmatprep.subr.mxu0 0.0
        %3619 = vmatpush1.xpose.msra.mxu0 0.0
        %3620 = vmatprep.subr.mxu0 0.0
        %3621 = vmatpush1.xpose.msra.mxu0 0.0
        %3622 = vmatprep.subr.mxu0 0.0
        %3623 = vmatpush1.xpose.msra.mxu0 0.0
        %3624 = vmatprep.subr.mxu0 0.0
        %3625 = vmatpush1.xpose.msra.mxu0 0.0
        %3626 = vmatprep.subr.mxu0 0.0
        %3627 = vmatpush1.xpose.msra.mxu0 0.0
        %3628 = vmatprep.subr.mxu0 0.0
        %3629 = vmatpush1.xpose.msra.mxu0 0.0
        %3630 = vmatprep.subr.mxu0 0.0
        %3631 = vmatpush1.xpose.msra.mxu0 0.0
        %3632 = vmatprep.mubr.f32.mxu0 0.0
        %v3633 = vand.u32 %v398, 4294901760
        %3634 = vmatmul.mubr.f32.gmra.mrb[0].mxu0 %v3633
        %v3635 = vpop.f32.mrb[0].mxu0
        %v3636 = vadd.f32 %v3556, %v3635
        %v3637 = vpop.f32.mrb[0].mxu0
        %3638 = vdwg.mxu0
        %3639 = vmatprep.subr.mxu0 0.0
        %v3640 = vand.u32 %v345, 4294901760
        %3641 = vmatpush1.xpose.msra.mxu0 %v3640
        %3642 = vmatprep.subr.mxu0 0.0
        %v3643 = vand.u32 %v346, 4294901760
        %3644 = vmatpush1.xpose.msra.mxu0 %v3643
        %3645 = vmatprep.subr.mxu0 0.0
        %v3646 = vand.u32 %v347, 4294901760
        %3647 = vmatpush1.xpose.msra.mxu0 %v3646
        %3648 = vmatprep.subr.mxu0 0.0
        %3649 = vmatpush1.xpose.msra.mxu0 0.0
        %3650 = vmatprep.subr.mxu0 0.0
        %3651 = vmatpush1.xpose.msra.mxu0 0.0
        %3652 = vmatprep.subr.mxu0 0.0
        %3653 = vmatpush1.xpose.msra.mxu0 0.0
        %3654 = vmatprep.subr.mxu0 0.0
        %3655 = vmatpush1.xpose.msra.mxu0 0.0
        %3656 = vmatprep.subr.mxu0 0.0
        %3657 = vmatpush1.xpose.msra.mxu0 0.0
        %3658 = vmatprep.subr.mxu0 0.0
        %3659 = vmatpush1.xpose.msra.mxu0 0.0
        %3660 = vmatprep.subr.mxu0 0.0
        %3661 = vmatpush1.xpose.msra.mxu0 0.0
        %3662 = vmatprep.subr.mxu0 0.0
        %3663 = vmatpush1.xpose.msra.mxu0 0.0
        %3664 = vmatprep.subr.mxu0 0.0
        %3665 = vmatpush1.xpose.msra.mxu0 0.0
        %3666 = vmatprep.subr.mxu0 0.0
        %3667 = vmatpush1.xpose.msra.mxu0 0.0
        %3668 = vmatprep.subr.mxu0 0.0
        %3669 = vmatpush1.xpose.msra.mxu0 0.0
        %3670 = vmatprep.subr.mxu0 0.0
        %3671 = vmatpush1.xpose.msra.mxu0 0.0
        %3672 = vmatprep.subr.mxu0 0.0
        %3673 = vmatpush1.xpose.msra.mxu0 0.0
        %3674 = vmatprep.subr.mxu0 0.0
        %3675 = vmatpush1.xpose.msra.mxu0 0.0
        %3676 = vmatprep.subr.mxu0 0.0
        %3677 = vmatpush1.xpose.msra.mxu0 0.0
        %3678 = vmatprep.subr.mxu0 0.0
        %3679 = vmatpush1.xpose.msra.mxu0 0.0
        %3680 = vmatprep.subr.mxu0 0.0
        %3681 = vmatpush1.xpose.msra.mxu0 0.0
        %3682 = vmatprep.subr.mxu0 0.0
        %3683 = vmatpush1.xpose.msra.mxu0 0.0
        %3684 = vmatprep.subr.mxu0 0.0
        %3685 = vmatpush1.xpose.msra.mxu0 0.0
        %3686 = vmatprep.subr.mxu0 0.0
        %3687 = vmatpush1.xpose.msra.mxu0 0.0
        %3688 = vmatprep.subr.mxu0 0.0
        %3689 = vmatpush1.xpose.msra.mxu0 0.0
        %3690 = vmatprep.subr.mxu0 0.0
        %3691 = vmatpush1.xpose.msra.mxu0 0.0
        %3692 = vmatprep.subr.mxu0 0.0
        %3693 = vmatpush1.xpose.msra.mxu0 0.0
        %3694 = vmatprep.subr.mxu0 0.0
        %3695 = vmatpush1.xpose.msra.mxu0 0.0
        %3696 = vmatprep.subr.mxu0 0.0
        %3697 = vmatpush1.xpose.msra.mxu0 0.0
        %3698 = vmatprep.subr.mxu0 0.0
        %3699 = vmatpush1.xpose.msra.mxu0 0.0
        %3700 = vmatprep.subr.mxu0 0.0
        %3701 = vmatpush1.xpose.msra.mxu0 0.0
        %3702 = vmatprep.subr.mxu0 0.0
        %3703 = vmatpush1.xpose.msra.mxu0 0.0
        %3704 = vmatprep.subr.mxu0 0.0
        %3705 = vmatpush1.xpose.msra.mxu0 0.0
        %3706 = vmatprep.mubr.f32.mxu0 0.0
        %v3707 = vand.u32 %v398, 4294901760
        %3708 = vmatmul.mubr.f32.gmra.mrb[0].mxu0 %v3707
        %v3709 = vpop.f32.mrb[0].mxu0
        %v3710 = vadd.f32 %v3636, %v3709
        %v3711 = vpop.f32.mrb[0].mxu0
        %3712 = vdwg.mxu0
        %3713 = vmatprep.subr.mxu0 0.0
        %v3714 = vand.u32 %v348, 4294901760
        %3715 = vmatpush1.xpose.msra.mxu0 %v3714
        %3716 = vmatprep.subr.mxu0 0.0
        %v3717 = vand.u32 %v349, 4294901760
        %3718 = vmatpush1.xpose.msra.mxu0 %v3717
        %3719 = vmatprep.subr.mxu0 0.0
        %v3720 = vand.u32 %v350, 4294901760
        %3721 = vmatpush1.xpose.msra.mxu0 %v3720
        %3722 = vmatprep.subr.mxu0 0.0
        %3723 = vmatpush1.xpose.msra.mxu0 0.0
        %3724 = vmatprep.subr.mxu0 0.0
        %3725 = vmatpush1.xpose.msra.mxu0 0.0
        %3726 = vmatprep.subr.mxu0 0.0
        %3727 = vmatpush1.xpose.msra.mxu0 0.0
        %3728 = vmatprep.subr.mxu0 0.0
        %3729 = vmatpush1.xpose.msra.mxu0 0.0
        %3730 = vmatprep.subr.mxu0 0.0
        %3731 = vmatpush1.xpose.msra.mxu0 0.0
        %3732 = vmatprep.subr.mxu0 0.0
        %3733 = vmatpush1.xpose.msra.mxu0 0.0
        %3734 = vmatprep.subr.mxu0 0.0
        %3735 = vmatpush1.xpose.msra.mxu0 0.0
        %3736 = vmatprep.subr.mxu0 0.0
        %3737 = vmatpush1.xpose.msra.mxu0 0.0
        %3738 = vmatprep.subr.mxu0 0.0
        %3739 = vmatpush1.xpose.msra.mxu0 0.0
        %3740 = vmatprep.subr.mxu0 0.0
        %3741 = vmatpush1.xpose.msra.mxu0 0.0
        %3742 = vmatprep.subr.mxu0 0.0
        %3743 = vmatpush1.xpose.msra.mxu0 0.0
        %3744 = vmatprep.subr.mxu0 0.0
        %3745 = vmatpush1.xpose.msra.mxu0 0.0
        %3746 = vmatprep.subr.mxu0 0.0
        %3747 = vmatpush1.xpose.msra.mxu0 0.0
        %3748 = vmatprep.subr.mxu0 0.0
        %3749 = vmatpush1.xpose.msra.mxu0 0.0
        %3750 = vmatprep.subr.mxu0 0.0
        %3751 = vmatpush1.xpose.msra.mxu0 0.0
        %3752 = vmatprep.subr.mxu0 0.0
        %3753 = vmatpush1.xpose.msra.mxu0 0.0
        %3754 = vmatprep.subr.mxu0 0.0
        %3755 = vmatpush1.xpose.msra.mxu0 0.0
        %3756 = vmatprep.subr.mxu0 0.0
        %3757 = vmatpush1.xpose.msra.mxu0 0.0
        %3758 = vmatprep.subr.mxu0 0.0
        %3759 = vmatpush1.xpose.msra.mxu0 0.0
        %3760 = vmatprep.subr.mxu0 0.0
        %3761 = vmatpush1.xpose.msra.mxu0 0.0
        %3762 = vmatprep.subr.mxu0 0.0
        %3763 = vmatpush1.xpose.msra.mxu0 0.0
        %3764 = vmatprep.subr.mxu0 0.0
        %3765 = vmatpush1.xpose.msra.mxu0 0.0
        %3766 = vmatprep.subr.mxu0 0.0
        %3767 = vmatpush1.xpose.msra.mxu0 0.0
        %3768 = vmatprep.subr.mxu0 0.0
        %3769 = vmatpush1.xpose.msra.mxu0 0.0
        %3770 = vmatprep.subr.mxu0 0.0
        %3771 = vmatpush1.xpose.msra.mxu0 0.0
        %3772 = vmatprep.subr.mxu0 0.0
        %3773 = vmatpush1.xpose.msra.mxu0 0.0
        %3774 = vmatprep.subr.mxu0 0.0
        %3775 = vmatpush1.xpose.msra.mxu0 0.0
        %3776 = vmatprep.subr.mxu0 0.0
        %3777 = vmatpush1.xpose.msra.mxu0 0.0
        %3778 = vmatprep.subr.mxu0 0.0
        %3779 = vmatpush1.xpose.msra.mxu0 0.0
        %3780 = vmatprep.mubr.f32.mxu0 0.0
        %v3781 = vand.u32 %v400, 4294901760
        %v3782 = vsub.f32 %v400, %v3781
        %v3783 = vand.u32 %v3782, 4294901760
        %v3784 = vsub.f32 %v3782, %v3783
        %v3785 = vand.u32 %v3784, 4294901760
        %3786 = vmatmul.mubr.f32.gmra.mrb[0].mxu0 %v3785
        %v3787 = vpop.f32.mrb[0].mxu0
        %v3788 = vadd.f32 0.0, %v3787
        %v3789 = vpop.f32.mrb[0].mxu0
        %3790 = vdwg.mxu0
        %3791 = vmatprep.subr.mxu0 0.0
        %v3792 = vand.u32 %v348, 4294901760
        %v3793 = vsub.f32 %v348, %v3792
        %v3794 = vand.u32 %v3793, 4294901760
        %v3795 = vsub.f32 %v3793, %v3794
        %v3796 = vand.u32 %v3795, 4294901760
        %3797 = vmatpush1.xpose.msra.mxu0 %v3796
        %3798 = vmatprep.subr.mxu0 0.0
        %v3799 = vand.u32 %v349, 4294901760
        %v3800 = vsub.f32 %v349, %v3799
        %v3801 = vand.u32 %v3800, 4294901760
        %v3802 = vsub.f32 %v3800, %v3801
        %v3803 = vand.u32 %v3802, 4294901760
        %3804 = vmatpush1.xpose.msra.mxu0 %v3803
        %3805 = vmatprep.subr.mxu0 0.0
        %v3806 = vand.u32 %v350, 4294901760
        %v3807 = vsub.f32 %v350, %v3806
        %v3808 = vand.u32 %v3807, 4294901760
        %v3809 = vsub.f32 %v3807, %v3808
        %v3810 = vand.u32 %v3809, 4294901760
        %3811 = vmatpush1.xpose.msra.mxu0 %v3810
        %3812 = vmatprep.subr.mxu0 0.0
        %3813 = vmatpush1.xpose.msra.mxu0 0.0
        %3814 = vmatprep.subr.mxu0 0.0
        %3815 = vmatpush1.xpose.msra.mxu0 0.0
        %3816 = vmatprep.subr.mxu0 0.0
        %3817 = vmatpush1.xpose.msra.mxu0 0.0
        %3818 = vmatprep.subr.mxu0 0.0
        %3819 = vmatpush1.xpose.msra.mxu0 0.0
        %3820 = vmatprep.subr.mxu0 0.0
        %3821 = vmatpush1.xpose.msra.mxu0 0.0
        %3822 = vmatprep.subr.mxu0 0.0
        %3823 = vmatpush1.xpose.msra.mxu0 0.0
        %3824 = vmatprep.subr.mxu0 0.0
        %3825 = vmatpush1.xpose.msra.mxu0 0.0
        %3826 = vmatprep.subr.mxu0 0.0
        %3827 = vmatpush1.xpose.msra.mxu0 0.0
        %3828 = vmatprep.subr.mxu0 0.0
        %3829 = vmatpush1.xpose.msra.mxu0 0.0
        %3830 = vmatprep.subr.mxu0 0.0
        %3831 = vmatpush1.xpose.msra.mxu0 0.0
        %3832 = vmatprep.subr.mxu0 0.0
        %3833 = vmatpush1.xpose.msra.mxu0 0.0
        %3834 = vmatprep.subr.mxu0 0.0
        %3835 = vmatpush1.xpose.msra.mxu0 0.0
        %3836 = vmatprep.subr.mxu0 0.0
        %3837 = vmatpush1.xpose.msra.mxu0 0.0
        %3838 = vmatprep.subr.mxu0 0.0
        %3839 = vmatpush1.xpose.msra.mxu0 0.0
        %3840 = vmatprep.subr.mxu0 0.0
        %3841 = vmatpush1.xpose.msra.mxu0 0.0
        %3842 = vmatprep.subr.mxu0 0.0
        %3843 = vmatpush1.xpose.msra.mxu0 0.0
        %3844 = vmatprep.subr.mxu0 0.0
        %3845 = vmatpush1.xpose.msra.mxu0 0.0
        %3846 = vmatprep.subr.mxu0 0.0
        %3847 = vmatpush1.xpose.msra.mxu0 0.0
        %3848 = vmatprep.subr.mxu0 0.0
        %3849 = vmatpush1.xpose.msra.mxu0 0.0
        %3850 = vmatprep.subr.mxu0 0.0
        %3851 = vmatpush1.xpose.msra.mxu0 0.0
        %3852 = vmatprep.subr.mxu0 0.0
        %3853 = vmatpush1.xpose.msra.mxu0 0.0
        %3854 = vmatprep.subr.mxu0 0.0
        %3855 = vmatpush1.xpose.msra.mxu0 0.0
        %3856 = vmatprep.subr.mxu0 0.0
        %3857 = vmatpush1.xpose.msra.mxu0 0.0
        %3858 = vmatprep.subr.mxu0 0.0
        %3859 = vmatpush1.xpose.msra.mxu0 0.0
        %3860 = vmatprep.subr.mxu0 0.0
        %3861 = vmatpush1.xpose.msra.mxu0 0.0
        %3862 = vmatprep.subr.mxu0 0.0
        %3863 = vmatpush1.xpose.msra.mxu0 0.0
        %3864 = vmatprep.subr.mxu0 0.0
        %3865 = vmatpush1.xpose.msra.mxu0 0.0
        %3866 = vmatprep.subr.mxu0 0.0
        %3867 = vmatpush1.xpose.msra.mxu0 0.0
        %3868 = vmatprep.subr.mxu0 0.0
        %3869 = vmatpush1.xpose.msra.mxu0 0.0
        %3870 = vmatprep.mubr.f32.mxu0 0.0
        %v3871 = vand.u32 %v400, 4294901760
        %3872 = vmatmul.mubr.f32.gmra.mrb[0].mxu0 %v3871
        %v3873 = vpop.f32.mrb[0].mxu0
        %v3874 = vadd.f32 %v3788, %v3873
        %v3875 = vpop.f32.mrb[0].mxu0
        %3876 = vdwg.mxu0
        %3877 = vmatprep.subr.mxu0 0.0
        %v3878 = vand.u32 %v348, 4294901760
        %v3879 = vsub.f32 %v348, %v3878
        %3880 = vmatpush1.xpose.msra.mxu0 %v3879
        %3881 = vmatprep.subr.mxu0 0.0
        %v3882 = vand.u32 %v349, 4294901760
        %v3883 = vsub.f32 %v349, %v3882
        %3884 = vmatpush1.xpose.msra.mxu0 %v3883
        %3885 = vmatprep.subr.mxu0 0.0
        %v3886 = vand.u32 %v350, 4294901760
        %v3887 = vsub.f32 %v350, %v3886
        %3888 = vmatpush1.xpose.msra.mxu0 %v3887
        %3889 = vmatprep.subr.mxu0 0.0
        %3890 = vmatpush1.xpose.msra.mxu0 0.0
        %3891 = vmatprep.subr.mxu0 0.0
        %3892 = vmatpush1.xpose.msra.mxu0 0.0
        %3893 = vmatprep.subr.mxu0 0.0
        %3894 = vmatpush1.xpose.msra.mxu0 0.0
        %3895 = vmatprep.subr.mxu0 0.0
        %3896 = vmatpush1.xpose.msra.mxu0 0.0
        %3897 = vmatprep.subr.mxu0 0.0
        %3898 = vmatpush1.xpose.msra.mxu0 0.0
        %3899 = vmatprep.subr.mxu0 0.0
        %3900 = vmatpush1.xpose.msra.mxu0 0.0
        %3901 = vmatprep.subr.mxu0 0.0
        %3902 = vmatpush1.xpose.msra.mxu0 0.0
        %3903 = vmatprep.subr.mxu0 0.0
        %3904 = vmatpush1.xpose.msra.mxu0 0.0
        %3905 = vmatprep.subr.mxu0 0.0
        %3906 = vmatpush1.xpose.msra.mxu0 0.0
        %3907 = vmatprep.subr.mxu0 0.0
        %3908 = vmatpush1.xpose.msra.mxu0 0.0
        %3909 = vmatprep.subr.mxu0 0.0
        %3910 = vmatpush1.xpose.msra.mxu0 0.0
        %3911 = vmatprep.subr.mxu0 0.0
        %3912 = vmatpush1.xpose.msra.mxu0 0.0
        %3913 = vmatprep.subr.mxu0 0.0
        %3914 = vmatpush1.xpose.msra.mxu0 0.0
        %3915 = vmatprep.subr.mxu0 0.0
        %3916 = vmatpush1.xpose.msra.mxu0 0.0
        %3917 = vmatprep.subr.mxu0 0.0
        %3918 = vmatpush1.xpose.msra.mxu0 0.0
        %3919 = vmatprep.subr.mxu0 0.0
        %3920 = vmatpush1.xpose.msra.mxu0 0.0
        %3921 = vmatprep.subr.mxu0 0.0
        %3922 = vmatpush1.xpose.msra.mxu0 0.0
        %3923 = vmatprep.subr.mxu0 0.0
        %3924 = vmatpush1.xpose.msra.mxu0 0.0
        %3925 = vmatprep.subr.mxu0 0.0
        %3926 = vmatpush1.xpose.msra.mxu0 0.0
        %3927 = vmatprep.subr.mxu0 0.0
        %3928 = vmatpush1.xpose.msra.mxu0 0.0
        %3929 = vmatprep.subr.mxu0 0.0
        %3930 = vmatpush1.xpose.msra.mxu0 0.0
        %3931 = vmatprep.subr.mxu0 0.0
        %3932 = vmatpush1.xpose.msra.mxu0 0.0
        %3933 = vmatprep.subr.mxu0 0.0
        %3934 = vmatpush1.xpose.msra.mxu0 0.0
        %3935 = vmatprep.subr.mxu0 0.0
        %3936 = vmatpush1.xpose.msra.mxu0 0.0
        %3937 = vmatprep.subr.mxu0 0.0
        %3938 = vmatpush1.xpose.msra.mxu0 0.0
        %3939 = vmatprep.subr.mxu0 0.0
        %3940 = vmatpush1.xpose.msra.mxu0 0.0
        %3941 = vmatprep.subr.mxu0 0.0
        %3942 = vmatpush1.xpose.msra.mxu0 0.0
        %3943 = vmatprep.subr.mxu0 0.0
        %3944 = vmatpush1.xpose.msra.mxu0 0.0
        %3945 = vmatprep.subr.mxu0 0.0
        %3946 = vmatpush1.xpose.msra.mxu0 0.0
        %3947 = vmatprep.mubr.f32.mxu0 0.0
        %v3948 = vand.u32 %v400, 4294901760
        %v3949 = vsub.f32 %v400, %v3948
        %3950 = vmatmul.mubr.f32.gmra.mrb[0].mxu0 %v3949
        %v3951 = vpop.f32.mrb[0].mxu0
        %v3952 = vadd.f32 %v3874, %v3951
        %v3953 = vpop.f32.mrb[0].mxu0
        %3954 = vdwg.mxu0
        %3955 = vmatprep.subr.mxu0 0.0
        %v3956 = vand.u32 %v348, 4294901760
        %3957 = vmatpush1.xpose.msra.mxu0 %v3956
        %3958 = vmatprep.subr.mxu0 0.0
        %v3959 = vand.u32 %v349, 4294901760
        %3960 = vmatpush1.xpose.msra.mxu0 %v3959
        %3961 = vmatprep.subr.mxu0 0.0
        %v3962 = vand.u32 %v350, 4294901760
        %3963 = vmatpush1.xpose.msra.mxu0 %v3962
        %3964 = vmatprep.subr.mxu0 0.0
        %3965 = vmatpush1.xpose.msra.mxu0 0.0
        %3966 = vmatprep.subr.mxu0 0.0
        %3967 = vmatpush1.xpose.msra.mxu0 0.0
        %3968 = vmatprep.subr.mxu0 0.0
        %3969 = vmatpush1.xpose.msra.mxu0 0.0
        %3970 = vmatprep.subr.mxu0 0.0
        %3971 = vmatpush1.xpose.msra.mxu0 0.0
        %3972 = vmatprep.subr.mxu0 0.0
        %3973 = vmatpush1.xpose.msra.mxu0 0.0
        %3974 = vmatprep.subr.mxu0 0.0
        %3975 = vmatpush1.xpose.msra.mxu0 0.0
        %3976 = vmatprep.subr.mxu0 0.0
        %3977 = vmatpush1.xpose.msra.mxu0 0.0
        %3978 = vmatprep.subr.mxu0 0.0
        %3979 = vmatpush1.xpose.msra.mxu0 0.0
        %3980 = vmatprep.subr.mxu0 0.0
        %3981 = vmatpush1.xpose.msra.mxu0 0.0
        %3982 = vmatprep.subr.mxu0 0.0
        %3983 = vmatpush1.xpose.msra.mxu0 0.0
        %3984 = vmatprep.subr.mxu0 0.0
        %3985 = vmatpush1.xpose.msra.mxu0 0.0
        %3986 = vmatprep.subr.mxu0 0.0
        %3987 = vmatpush1.xpose.msra.mxu0 0.0
        %3988 = vmatprep.subr.mxu0 0.0
        %3989 = vmatpush1.xpose.msra.mxu0 0.0
        %3990 = vmatprep.subr.mxu0 0.0
        %3991 = vmatpush1.xpose.msra.mxu0 0.0
        %3992 = vmatprep.subr.mxu0 0.0
        %3993 = vmatpush1.xpose.msra.mxu0 0.0
        %3994 = vmatprep.subr.mxu0 0.0
        %3995 = vmatpush1.xpose.msra.mxu0 0.0
        %3996 = vmatprep.subr.mxu0 0.0
        %3997 = vmatpush1.xpose.msra.mxu0 0.0
        %3998 = vmatprep.subr.mxu0 0.0
        %3999 = vmatpush1.xpose.msra.mxu0 0.0
        %4000 = vmatprep.subr.mxu0 0.0
        %4001 = vmatpush1.xpose.msra.mxu0 0.0
        %4002 = vmatprep.subr.mxu0 0.0
        %4003 = vmatpush1.xpose.msra.mxu0 0.0
        %4004 = vmatprep.subr.mxu0 0.0
        %4005 = vmatpush1.xpose.msra.mxu0 0.0
        %4006 = vmatprep.subr.mxu0 0.0
        %4007 = vmatpush1.xpose.msra.mxu0 0.0
        %4008 = vmatprep.subr.mxu0 0.0
        %4009 = vmatpush1.xpose.msra.mxu0 0.0
        %4010 = vmatprep.subr.mxu0 0.0
        %4011 = vmatpush1.xpose.msra.mxu0 0.0
        %4012 = vmatprep.subr.mxu0 0.0
        %4013 = vmatpush1.xpose.msra.mxu0 0.0
        %4014 = vmatprep.subr.mxu0 0.0
        %4015 = vmatpush1.xpose.msra.mxu0 0.0
        %4016 = vmatprep.subr.mxu0 0.0
        %4017 = vmatpush1.xpose.msra.mxu0 0.0
        %4018 = vmatprep.subr.mxu0 0.0
        %4019 = vmatpush1.xpose.msra.mxu0 0.0
        %4020 = vmatprep.subr.mxu0 0.0
        %4021 = vmatpush1.xpose.msra.mxu0 0.0
        %4022 = vmatprep.mubr.f32.mxu0 0.0
        %v4023 = vand.u32 %v400, 4294901760
        %v4024 = vsub.f32 %v400, %v4023
        %v4025 = vand.u32 %v4024, 4294901760
        %4026 = vmatmul.mubr.f32.gmra.mrb[0].mxu0 %v4025
        %v4027 = vpop.f32.mrb[0].mxu0
        %v4028 = vadd.f32 %v3952, %v4027
        %v4029 = vpop.f32.mrb[0].mxu0
        %4030 = vdwg.mxu0
        %4031 = vmatprep.subr.mxu0 0.0
        %v4032 = vand.u32 %v348, 4294901760
        %v4033 = vsub.f32 %v348, %v4032
        %v4034 = vand.u32 %v4033, 4294901760
        %4035 = vmatpush1.xpose.msra.mxu0 %v4034
        %4036 = vmatprep.subr.mxu0 0.0
        %v4037 = vand.u32 %v349, 4294901760
        %v4038 = vsub.f32 %v349, %v4037
        %v4039 = vand.u32 %v4038, 4294901760
        %4040 = vmatpush1.xpose.msra.mxu0 %v4039
        %4041 = vmatprep.subr.mxu0 0.0
        %v4042 = vand.u32 %v350, 4294901760
        %v4043 = vsub.f32 %v350, %v4042
        %v4044 = vand.u32 %v4043, 4294901760
        %4045 = vmatpush1.xpose.msra.mxu0 %v4044
        %4046 = vmatprep.subr.mxu0 0.0
        %4047 = vmatpush1.xpose.msra.mxu0 0.0
        %4048 = vmatprep.subr.mxu0 0.0
        %4049 = vmatpush1.xpose.msra.mxu0 0.0
        %4050 = vmatprep.subr.mxu0 0.0
        %4051 = vmatpush1.xpose.msra.mxu0 0.0
        %4052 = vmatprep.subr.mxu0 0.0
        %4053 = vmatpush1.xpose.msra.mxu0 0.0
        %4054 = vmatprep.subr.mxu0 0.0
        %4055 = vmatpush1.xpose.msra.mxu0 0.0
        %4056 = vmatprep.subr.mxu0 0.0
        %4057 = vmatpush1.xpose.msra.mxu0 0.0
        %4058 = vmatprep.subr.mxu0 0.0
        %4059 = vmatpush1.xpose.msra.mxu0 0.0
        %4060 = vmatprep.subr.mxu0 0.0
        %4061 = vmatpush1.xpose.msra.mxu0 0.0
        %4062 = vmatprep.subr.mxu0 0.0
        %4063 = vmatpush1.xpose.msra.mxu0 0.0
        %4064 = vmatprep.subr.mxu0 0.0
        %4065 = vmatpush1.xpose.msra.mxu0 0.0
        %4066 = vmatprep.subr.mxu0 0.0
        %4067 = vmatpush1.xpose.msra.mxu0 0.0
        %4068 = vmatprep.subr.mxu0 0.0
        %4069 = vmatpush1.xpose.msra.mxu0 0.0
        %4070 = vmatprep.subr.mxu0 0.0
        %4071 = vmatpush1.xpose.msra.mxu0 0.0
        %4072 = vmatprep.subr.mxu0 0.0
        %4073 = vmatpush1.xpose.msra.mxu0 0.0
        %4074 = vmatprep.subr.mxu0 0.0
        %4075 = vmatpush1.xpose.msra.mxu0 0.0
        %4076 = vmatprep.subr.mxu0 0.0
        %4077 = vmatpush1.xpose.msra.mxu0 0.0
        %4078 = vmatprep.subr.mxu0 0.0
        %4079 = vmatpush1.xpose.msra.mxu0 0.0
        %4080 = vmatprep.subr.mxu0 0.0
        %4081 = vmatpush1.xpose.msra.mxu0 0.0
        %4082 = vmatprep.subr.mxu0 0.0
        %4083 = vmatpush1.xpose.msra.mxu0 0.0
        %4084 = vmatprep.subr.mxu0 0.0
        %4085 = vmatpush1.xpose.msra.mxu0 0.0
        %4086 = vmatprep.subr.mxu0 0.0
        %4087 = vmatpush1.xpose.msra.mxu0 0.0
        %4088 = vmatprep.subr.mxu0 0.0
        %4089 = vmatpush1.xpose.msra.mxu0 0.0
        %4090 = vmatprep.subr.mxu0 0.0
        %4091 = vmatpush1.xpose.msra.mxu0 0.0
        %4092 = vmatprep.subr.mxu0 0.0
        %4093 = vmatpush1.xpose.msra.mxu0 0.0
        %4094 = vmatprep.subr.mxu0 0.0
        %4095 = vmatpush1.xpose.msra.mxu0 0.0
        %4096 = vmatprep.subr.mxu0 0.0
        %4097 = vmatpush1.xpose.msra.mxu0 0.0
        %4098 = vmatprep.subr.mxu0 0.0
        %4099 = vmatpush1.xpose.msra.mxu0 0.0
        %4100 = vmatprep.subr.mxu0 0.0
        %4101 = vmatpush1.xpose.msra.mxu0 0.0
        %4102 = vmatprep.subr.mxu0 0.0
        %4103 = vmatpush1.xpose.msra.mxu0 0.0
        %4104 = vmatprep.mubr.f32.mxu0 0.0
        %v4105 = vand.u32 %v400, 4294901760
        %4106 = vmatmul.mubr.f32.gmra.mrb[0].mxu0 %v4105
        %v4107 = vpop.f32.mrb[0].mxu0
        %v4108 = vadd.f32 %v4028, %v4107
        %v4109 = vpop.f32.mrb[0].mxu0
        %4110 = vdwg.mxu0
        %4111 = vmatprep.subr.mxu0 0.0
        %v4112 = vand.u32 %v348, 4294901760
        %4113 = vmatpush1.xpose.msra.mxu0 %v4112
        %4114 = vmatprep.subr.mxu0 0.0
        %v4115 = vand.u32 %v349, 4294901760
        %4116 = vmatpush1.xpose.msra.mxu0 %v4115
        %4117 = vmatprep.subr.mxu0 0.0
        %v4118 = vand.u32 %v350, 4294901760
        %4119 = vmatpush1.xpose.msra.mxu0 %v4118
        %4120 = vmatprep.subr.mxu0 0.0
        %4121 = vmatpush1.xpose.msra.mxu0 0.0
        %4122 = vmatprep.subr.mxu0 0.0
        %4123 = vmatpush1.xpose.msra.mxu0 0.0
        %4124 = vmatprep.subr.mxu0 0.0
        %4125 = vmatpush1.xpose.msra.mxu0 0.0
        %4126 = vmatprep.subr.mxu0 0.0
        %4127 = vmatpush1.xpose.msra.mxu0 0.0
        %4128 = vmatprep.subr.mxu0 0.0
        %4129 = vmatpush1.xpose.msra.mxu0 0.0
        %4130 = vmatprep.subr.mxu0 0.0
        %4131 = vmatpush1.xpose.msra.mxu0 0.0
        %4132 = vmatprep.subr.mxu0 0.0
        %4133 = vmatpush1.xpose.msra.mxu0 0.0
        %4134 = vmatprep.subr.mxu0 0.0
        %4135 = vmatpush1.xpose.msra.mxu0 0.0
        %4136 = vmatprep.subr.mxu0 0.0
        %4137 = vmatpush1.xpose.msra.mxu0 0.0
        %4138 = vmatprep.subr.mxu0 0.0
        %4139 = vmatpush1.xpose.msra.mxu0 0.0
        %4140 = vmatprep.subr.mxu0 0.0
        %4141 = vmatpush1.xpose.msra.mxu0 0.0
        %4142 = vmatprep.subr.mxu0 0.0
        %4143 = vmatpush1.xpose.msra.mxu0 0.0
        %4144 = vmatprep.subr.mxu0 0.0
        %4145 = vmatpush1.xpose.msra.mxu0 0.0
        %4146 = vmatprep.subr.mxu0 0.0
        %4147 = vmatpush1.xpose.msra.mxu0 0.0
        %4148 = vmatprep.subr.mxu0 0.0
        %4149 = vmatpush1.xpose.msra.mxu0 0.0
        %4150 = vmatprep.subr.mxu0 0.0
        %4151 = vmatpush1.xpose.msra.mxu0 0.0
        %4152 = vmatprep.subr.mxu0 0.0
        %4153 = vmatpush1.xpose.msra.mxu0 0.0
        %4154 = vmatprep.subr.mxu0 0.0
        %4155 = vmatpush1.xpose.msra.mxu0 0.0
        %4156 = vmatprep.subr.mxu0 0.0
        %4157 = vmatpush1.xpose.msra.mxu0 0.0
        %4158 = vmatprep.subr.mxu0 0.0
        %4159 = vmatpush1.xpose.msra.mxu0 0.0
        %4160 = vmatprep.subr.mxu0 0.0
        %4161 = vmatpush1.xpose.msra.mxu0 0.0
        %4162 = vmatprep.subr.mxu0 0.0
        %4163 = vmatpush1.xpose.msra.mxu0 0.0
        %4164 = vmatprep.subr.mxu0 0.0
        %4165 = vmatpush1.xpose.msra.mxu0 0.0
        %4166 = vmatprep.subr.mxu0 0.0
        %4167 = vmatpush1.xpose.msra.mxu0 0.0
        %4168 = vmatprep.subr.mxu0 0.0
        %4169 = vmatpush1.xpose.msra.mxu0 0.0
        %4170 = vmatprep.subr.mxu0 0.0
        %4171 = vmatpush1.xpose.msra.mxu0 0.0
        %4172 = vmatprep.subr.mxu0 0.0
        %4173 = vmatpush1.xpose.msra.mxu0 0.0
        %4174 = vmatprep.subr.mxu0 0.0
        %4175 = vmatpush1.xpose.msra.mxu0 0.0
        %4176 = vmatprep.subr.mxu0 0.0
        %4177 = vmatpush1.xpose.msra.mxu0 0.0
        %4178 = vmatprep.mubr.f32.mxu0 0.0
        %v4179 = vand.u32 %v400, 4294901760
        %4180 = vmatmul.mubr.f32.gmra.mrb[0].mxu0 %v4179
        %v4181 = vpop.f32.mrb[0].mxu0
        %v4182 = vadd.f32 %v4108, %v4181
        %v4183 = vpop.f32.mrb[0].mxu0
        %4184 = vdwg.mxu0
        %v4185 = vmul.f32 %v326, %v326
        %4186 = vadd.xlane.f32.xlu0 %v4185
        %v4187 = vpop.xlane.xlu0 %4186
        %v4188 = vmul.f32 %v327, %v327
        %v4189 = vmul.f32 %v328, %v328
        %v4190 = vmul.f32 %v329, %v329
        %v4191 = vmul.f32 %v330, %v330
        %v4192 = vmul.f32 %v331, %v331
        %v4193 = vmul.f32 %v332, %v332
        %v4194 = vmul.f32 %v333, %v333
        %v4195 = vmul.f32 %v334, %v334
        %v4196 = vmul.f32 %v335, %v335
        %v4197 = vmul.f32 %v336, %v336
        %v4198 = vmul.f32 %v337, %v337
        %v4199 = vmul.f32 %v338, %v338
        %v4200 = vmul.f32 %v339, %v339
        %v4201 = vmul.f32 %v340, %v340
        %v4202 = vmul.f32 %v341, %v341
        %v4203 = vmul.f32 %v342, %v342
        %v4204 = vmul.f32 %v343, %v343
        %v4205 = vmul.f32 %v344, %v344
        %v4206 = vmul.f32 %v345, %v345
        %v4207 = vmul.f32 %v346, %v346
        %v4208 = vmul.f32 %v347, %v347
        %v4209 = vmul.f32 %v348, %v348
        %v4210 = vmul.f32 %v349, %v349
        %v4211 = vmul.f32 %v350, %v350
        %4212 = vadd.xlane.f32.xlu0 %v4188
        %v4213 = vpop.xlane.xlu0 %4212
        %4214 = vadd.xlane.f32.xlu0 %v4189
        %v4215 = vpop.xlane.xlu0 %4214
        %4216 = vadd.xlane.f32.xlu0 %v4190
        %v4217 = vpop.xlane.xlu0 %4216
        %4218 = vadd.xlane.f32.xlu0 %v4191
        %v4219 = vpop.xlane.xlu0 %4218
        %4220 = vadd.xlane.f32.xlu0 %v4192
        %v4221 = vpop.xlane.xlu0 %4220
        %4222 = vadd.xlane.f32.xlu0 %v4193
        %v4223 = vpop.xlane.xlu0 %4222
        %4224 = vadd.xlane.f32.xlu0 %v4194
        %v4225 = vpop.xlane.xlu0 %4224
        %4226 = vadd.xlane.f32.xlu0 %v4195
        %v4227 = vpop.xlane.xlu0 %4226
        %4228 = vadd.xlane.f32.xlu0 %v4196
        %v4229 = vpop.xlane.xlu0 %4228
        %4230 = vadd.xlane.f32.xlu0 %v4197
        %v4231 = vpop.xlane.xlu0 %4230
        %4232 = vadd.xlane.f32.xlu0 %v4198
        %v4233 = vpop.xlane.xlu0 %4232
        %4234 = vadd.xlane.f32.xlu0 %v4199
        %v4235 = vpop.xlane.xlu0 %4234
        %4236 = vadd.xlane.f32.xlu0 %v4200
        %v4237 = vpop.xlane.xlu0 %4236
        %4238 = vadd.xlane.f32.xlu0 %v4201
        %v4239 = vpop.xlane.xlu0 %4238
        %4240 = vadd.xlane.f32.xlu0 %v4202
        %v4241 = vpop.xlane.xlu0 %4240
        %4242 = vadd.xlane.f32.xlu0 %v4203
        %v4243 = vpop.xlane.xlu0 %4242
        %4244 = vadd.xlane.f32.xlu0 %v4204
        %v4245 = vpop.xlane.xlu0 %4244
        %4246 = vadd.xlane.f32.xlu0 %v4205
        %v4247 = vpop.xlane.xlu0 %4246
        %4248 = vadd.xlane.f32.xlu0 %v4206
        %v4249 = vpop.xlane.xlu0 %4248
        %4250 = vadd.xlane.f32.xlu0 %v4207
        %v4251 = vpop.xlane.xlu0 %4250
        %4252 = vadd.xlane.f32.xlu0 %v4208
        %v4253 = vpop.xlane.xlu0 %4252
        %4254 = vadd.xlane.f32.xlu0 %v4209
        %v4255 = vpop.xlane.xlu0 %4254
        %4256 = vadd.xlane.f32.xlu0 %v4210
        %v4257 = vpop.xlane.xlu0 %4256
        %4258 = vadd.xlane.f32.xlu0 %v4211
        %v4259 = vpop.xlane.xlu0 %4258
        %v4260 = vmax.f32 %v4187, 1e-16
        %v4261 = vrsqrt.pop %v4260
        %v4262 = vmax.f32 %v4213, 1e-16
        %v4263 = vmax.f32 %v4215, 1e-16
        %v4264 = vmax.f32 %v4217, 1e-16
        %v4265 = vmax.f32 %v4219, 1e-16
        %v4266 = vmax.f32 %v4221, 1e-16
        %v4267 = vmax.f32 %v4223, 1e-16
        %v4268 = vmax.f32 %v4225, 1e-16
        %v4269 = vmax.f32 %v4227, 1e-16
        %v4270 = vmax.f32 %v4229, 1e-16
        %v4271 = vmax.f32 %v4231, 1e-16
        %v4272 = vmax.f32 %v4233, 1e-16
        %v4273 = vmax.f32 %v4235, 1e-16
        %v4274 = vmax.f32 %v4237, 1e-16
        %v4275 = vmax.f32 %v4239, 1e-16
        %v4276 = vmax.f32 %v4241, 1e-16
        %v4277 = vmax.f32 %v4243, 1e-16
        %v4278 = vmax.f32 %v4245, 1e-16
        %v4279 = vmax.f32 %v4247, 1e-16
        %v4280 = vmax.f32 %v4249, 1e-16
        %v4281 = vmax.f32 %v4251, 1e-16
        %v4282 = vmax.f32 %v4253, 1e-16
        %v4283 = vmax.f32 %v4255, 1e-16
        %v4284 = vmax.f32 %v4257, 1e-16
        %v4285 = vmax.f32 %v4259, 1e-16
        %v4286 = vrsqrt.pop %v4262
        %v4287 = vrsqrt.pop %v4263
        %v4288 = vrsqrt.pop %v4264
        %v4289 = vrsqrt.pop %v4265
        %v4290 = vrsqrt.pop %v4266
        %v4291 = vrsqrt.pop %v4267
        %v4292 = vrsqrt.pop %v4268
        %v4293 = vrsqrt.pop %v4269
        %v4294 = vrsqrt.pop %v4270
        %v4295 = vrsqrt.pop %v4271
        %v4296 = vrsqrt.pop %v4272
        %v4297 = vrsqrt.pop %v4273
        %v4298 = vrsqrt.pop %v4274
        %v4299 = vrsqrt.pop %v4275
        %v4300 = vrsqrt.pop %v4276
        %v4301 = vrsqrt.pop %v4277
        %v4302 = vrsqrt.pop %v4278
        %v4303 = vrsqrt.pop %v4279
        %v4304 = vrsqrt.pop %v4280
        %v4305 = vrsqrt.pop %v4281
        %v4306 = vrsqrt.pop %v4282
        %v4307 = vrsqrt.pop %v4283
        %v4308 = vrsqrt.pop %v4284
        %v4309 = vrsqrt.pop %v4285
        %v4334 = vlaneseq
        %v4335 = vand.u32 %v4334, 127
        %v4336 = vlaneseq
        %v4337 = vshrl.u32 %v4336, 7
        %v4338 = vsub.s32 %v4335, %v4337
        %v4339 = vrot.slane %v4286, %v4338
        %v4340 = vadd.s32 %v4335, 4294967288
        %v4341 = vlaneseq
        %v4342 = vshrl.u32 %v4341, 7
        %v4343 = vsub.s32 %v4340, %v4342
        %v4344 = vrot.slane %v4287, %v4343
        %vm4345 = vcmask 130112
        %v4346 = vsel %vm4345, %v4344, %v4339
        %v4347 = vadd.s32 %v4335, 4294967280
        %v4348 = vlaneseq
        %v4349 = vshrl.u32 %v4348, 7
        %v4350 = vsub.s32 %v4347, %v4349
        %v4351 = vrot.slane %v4288, %v4350
        %vm4352 = vcmask 195712
        %v4353 = vsel %vm4352, %v4351, %v4346
        %v4354 = vlaneseq
        %v4355 = vshrl.u32 %v4354, 7
        %v4356 = vsub.s32 %v4335, %v4355
        %v4357 = vrot.slane %v4289, %v4356
        %v4358 = vlaneseq
        %v4359 = vshrl.u32 %v4358, 7
        %v4360 = vsub.s32 %v4340, %v4359
        %v4361 = vrot.slane %v4290, %v4360
        %v4362 = vsel %vm4345, %v4361, %v4357
        %v4363 = vlaneseq
        %v4364 = vshrl.u32 %v4363, 7
        %v4365 = vsub.s32 %v4347, %v4364
        %v4366 = vrot.slane %v4291, %v4365
        %v4367 = vsel %vm4352, %v4366, %v4362
        %v4368 = vlaneseq
        %v4369 = vshrl.u32 %v4368, 7
        %v4370 = vsub.s32 %v4335, %v4369
        %v4371 = vrot.slane %v4292, %v4370
        %v4372 = vlaneseq
        %v4373 = vshrl.u32 %v4372, 7
        %v4374 = vsub.s32 %v4340, %v4373
        %v4375 = vrot.slane %v4293, %v4374
        %v4376 = vsel %vm4345, %v4375, %v4371
        %v4377 = vlaneseq
        %v4378 = vshrl.u32 %v4377, 7
        %v4379 = vsub.s32 %v4347, %v4378
        %v4380 = vrot.slane %v4294, %v4379
        %v4381 = vsel %vm4352, %v4380, %v4376
        %v4382 = vlaneseq
        %v4383 = vshrl.u32 %v4382, 7
        %v4384 = vsub.s32 %v4335, %v4383
        %v4385 = vrot.slane %v4295, %v4384
        %v4386 = vlaneseq
        %v4387 = vshrl.u32 %v4386, 7
        %v4388 = vsub.s32 %v4340, %v4387
        %v4389 = vrot.slane %v4296, %v4388
        %v4390 = vsel %vm4345, %v4389, %v4385
        %v4391 = vlaneseq
        %v4392 = vshrl.u32 %v4391, 7
        %v4393 = vsub.s32 %v4347, %v4392
        %v4394 = vrot.slane %v4297, %v4393
        %v4395 = vsel %vm4352, %v4394, %v4390
        %v4396 = vlaneseq
        %v4397 = vshrl.u32 %v4396, 7
        %v4398 = vsub.s32 %v4335, %v4397
        %v4399 = vrot.slane %v4298, %v4398
        %v4400 = vlaneseq
        %v4401 = vshrl.u32 %v4400, 7
        %v4402 = vsub.s32 %v4340, %v4401
        %v4403 = vrot.slane %v4299, %v4402
        %v4404 = vsel %vm4345, %v4403, %v4399
        %v4405 = vlaneseq
        %v4406 = vshrl.u32 %v4405, 7
        %v4407 = vsub.s32 %v4347, %v4406
        %v4408 = vrot.slane %v4300, %v4407
        %v4409 = vsel %vm4352, %v4408, %v4404
        %v4410 = vlaneseq
        %v4411 = vshrl.u32 %v4410, 7
        %v4412 = vsub.s32 %v4335, %v4411
        %v4413 = vrot.slane %v4301, %v4412
        %v4414 = vlaneseq
        %v4415 = vshrl.u32 %v4414, 7
        %v4416 = vsub.s32 %v4340, %v4415
        %v4417 = vrot.slane %v4302, %v4416
        %v4418 = vsel %vm4345, %v4417, %v4413
        %v4419 = vlaneseq
        %v4420 = vshrl.u32 %v4419, 7
        %v4421 = vsub.s32 %v4347, %v4420
        %v4422 = vrot.slane %v4303, %v4421
        %v4423 = vsel %vm4352, %v4422, %v4418
        %v4424 = vlaneseq
        %v4425 = vshrl.u32 %v4424, 7
        %v4426 = vsub.s32 %v4335, %v4425
        %v4427 = vrot.slane %v4304, %v4426
        %v4428 = vlaneseq
        %v4429 = vshrl.u32 %v4428, 7
        %v4430 = vsub.s32 %v4340, %v4429
        %v4431 = vrot.slane %v4305, %v4430
        %v4432 = vsel %vm4345, %v4431, %v4427
        %v4433 = vlaneseq
        %v4434 = vshrl.u32 %v4433, 7
        %v4435 = vsub.s32 %v4347, %v4434
        %v4436 = vrot.slane %v4306, %v4435
        %v4437 = vsel %vm4352, %v4436, %v4432
        %v4438 = vlaneseq
        %v4439 = vshrl.u32 %v4438, 7
        %v4440 = vsub.s32 %v4335, %v4439
        %v4441 = vrot.slane %v4307, %v4440
        %v4442 = vlaneseq
        %v4443 = vshrl.u32 %v4442, 7
        %v4444 = vsub.s32 %v4340, %v4443
        %v4445 = vrot.slane %v4308, %v4444
        %v4446 = vsel %vm4345, %v4445, %v4441
        %v4447 = vlaneseq
        %v4448 = vshrl.u32 %v4447, 7
        %v4449 = vsub.s32 %v4347, %v4448
        %v4450 = vrot.slane %v4309, %v4449
        %v4451 = vsel %vm4352, %v4450, %v4446
        %vm4452 = vcmask 1041409
        %v4453 = vsel %vm4452, %v4367, %v4353
        %vm4454 = vcmask 1042434
        %v4455 = vsel %vm4454, %v4381, %v4453
        %vm4456 = vcmask 1043459
        %v4457 = vsel %vm4456, %v4395, %v4455
        %vm4458 = vcmask 1044484
        %v4459 = vsel %vm4458, %v4409, %v4457
        %vm4460 = vcmask 1045509
        %v4461 = vsel %vm4460, %v4423, %v4459
        %vm4462 = vcmask 1046534
        %v4463 = vsel %vm4462, %v4437, %v4461
        %vm4464 = vcmask 1047559
        %v4465 = vsel %vm4464, %v4451, %v4463
        %v4467 = vmul.f32 %v4261, %v4465
        %v4469 = vrot.slane %v4467, 1
        %v4470 = vrot.slane %v4467, 2
        %v4471 = vrot.slane %v4467, 3
        %v4472 = vrot.slane %v4467, 4
        %v4473 = vrot.slane %v4467, 5
        %v4474 = vrot.slane %v4467, 6
        %v4475 = vrot.slane %v4467, 7
        %v4484 = vmul.f32 %v878, %v4467
        %v4485 = vmul.f32 %v1350, %v4469
        %v4486 = vmul.f32 %v1822, %v4470
        %v4487 = vmul.f32 %v2294, %v4471
        %v4488 = vmul.f32 %v2766, %v4472
        %v4489 = vmul.f32 %v3238, %v4473
        %v4490 = vmul.f32 %v3710, %v4474
        %v4491 = vmul.f32 %v4182, %v4475
        %vm4492 = vcmp.lt.s32.totalorder %v4335, 8
        %v4493 = vsel %vm4492, 1, 0
        %v4494 = vcvt.s32.f32 %v4493
        %v4495 = vsub.f32 1.0, %v4494
        %v4496 = vmul.f32 %v4484, %v4494
        %v4497 = vmul.f32 %v4485, %v4494
        %v4498 = vmul.f32 %v4486, %v4494
        %v4499 = vmul.f32 %v4487, %v4494
        %v4500 = vmul.f32 %v4488, %v4494
        %v4501 = vmul.f32 %v4489, %v4494
        %v4502 = vmul.f32 %v4490, %v4494
        %v4503 = vmul.f32 %v4491, %v4494
        %v4512 = vrot.slane %v4497, 7
        %v4513 = vsel %vm4452, %v4512, %v4496
        %v4514 = vrot.slane %v4498, 6
        %v4515 = vsel %vm4454, %v4514, %v4513
        %v4516 = vrot.slane %v4499, 5
        %v4517 = vsel %vm4456, %v4516, %v4515
        %v4518 = vrot.slane %v4500, 4
        %v4519 = vsel %vm4458, %v4518, %v4517
        %v4520 = vrot.slane %v4501, 3
        %v4521 = vsel %vm4460, %v4520, %v4519
        %v4522 = vrot.slane %v4502, 2
        %v4523 = vsel %vm4462, %v4522, %v4521
        %v4524 = vrot.slane %v4503, 1
        %v4525 = vsel %vm4464, %v4524, %v4523
        %vm4527 = vcmask 195584
        %v4528 = vsel %vm4527, %v4525, 0.0
        %4529 = vadd.xlane.f32.xlu0 %v4528
        %v4530 = vpop.xlane.xlu0 %4529
        %v4531 = vmul.f32 %v4530, 0.125
        %v4532 = vmul.f32 %v4484, %v4495
        %v4533 = vmul.f32 %v4485, %v4495
        %v4534 = vmul.f32 %v4486, %v4495
        %v4535 = vmul.f32 %v4487, %v4495
        %v4536 = vmul.f32 %v4488, %v4495
        %v4537 = vmul.f32 %v4489, %v4495
        %v4538 = vmul.f32 %v4490, %v4495
        %v4539 = vmul.f32 %v4491, %v4495
        %v4548 = vrot.slane %v4533, 7
        %v4549 = vsel %vm4452, %v4548, %v4532
        %v4550 = vrot.slane %v4534, 6
        %v4551 = vsel %vm4454, %v4550, %v4549
        %v4552 = vrot.slane %v4535, 5
        %v4553 = vsel %vm4456, %v4552, %v4551
        %v4554 = vrot.slane %v4536, 4
        %v4555 = vsel %vm4458, %v4554, %v4553
        %v4556 = vrot.slane %v4537, 3
        %v4557 = vsel %vm4460, %v4556, %v4555
        %v4558 = vrot.slane %v4538, 2
        %v4559 = vsel %vm4462, %v4558, %v4557
        %v4560 = vrot.slane %v4539, 1
        %v4561 = vsel %vm4464, %v4560, %v4559
        %v4563 = vsel %vm4527, %v4561, 0.0
        %4564 = vadd.xlane.f32.xlu0 %v4563
        %v4565 = vpop.xlane.xlu0 %4564
        %v4566 = vmul.f32 %v4565, 0.0625
        %v4567 = vsub.f32 %v4566, %v4531
        %v4568 = vadd.f32 %v4567, 0.2
        %v4569 = vmax.f32 %v4568, 0.0
        %vm4570 = vcmp.lt.s32.totalorder %v4335, 32
        %v4571 = vsel %vm4570, 1e-06, 0.0
        %v4572 = vld [vmem:[%s276] sm:$0xff]
        %v4573 = vsub.f32 %v326, %v4572
        %v4574 = vadd.f32 %v4573, %v4571
        %v4575 = vld [vmem:[%s267] sm:$0xff]
        %v4576 = vsub.f32 %v326, %v4575
        %v4577 = vadd.f32 %v4576, %v4571
        %v4578 = vmul.f32 %v4574, %v4574
        %4579 = vadd.xlane.f32.xlu0 %v4578
        %v4580 = vpop.xlane.xlu0 %4579
        %v4581 = vrsqrt.pop %v4580
        %v4582 = vmul.f32 %v4580, %v4581
        %vm4583 = vcmp.eq.f32.partialorder %v4580, inf
        %v4584 = vsel %vm4583, %v4580, %v4582
        %vm4585 = vcmp.eq.f32.partialorder %v4580, 0.0
        %v4586 = vand.u32 %v4580, 2147483648
        %v4587 = vsel %vm4585, %v4586, %v4584
        %v4588 = vmul.f32 %v4577, %v4577
        %4589 = vadd.xlane.f32.xlu0 %v4588
        %v4590 = vpop.xlane.xlu0 %4589
        %v4591 = vrsqrt.pop %v4590
        %v4592 = vmul.f32 %v4590, %v4591
        %vm4593 = vcmp.eq.f32.partialorder %v4590, inf
        %v4594 = vsel %vm4593, %v4590, %v4592
        %vm4595 = vcmp.eq.f32.partialorder %v4590, 0.0
        %v4596 = vand.u32 %v4590, 2147483648
        %v4597 = vsel %vm4595, %v4596, %v4594
        %v4598 = vsub.f32 %v4587, %v4597
        %v4599 = vadd.f32 %v4598, 0.9
        %v4600 = vmax.f32 %v4599, 0.0
        %v4601 = vadd.f32 %v4569, %v4600
        %4602 = vst [vmem:[%s324] sm:$0xff] %v4601
        %s4603 = sand.u32 %s139, 1
        %s4604 = scalar_lea.sflag [#allocation4], %s4603
        %s4605 = sand.u32 %s139, 1
        %s4606 = smul.addr %s4605, 8
        %s4607 = scalar_lea.vmem [#allocation10], %s4606
        // Predicated region
        $region53: #{tpu_custom_call.1} parent=35 // pred_check
          %p4608 = pneg %p149
        $region54: #{tpu_custom_call.1} parent=35 // pred_check_branch
          %4610 = sbr.rel (%p4608) target = $region56
        $region55: #{tpu_custom_call.1} parent=35 // pred_region
          %s4612 = ssub.s32 128, 128
          %4613 = vsyncadd %s4604, %s4612
          %s4614 = smul.addr %s27, 128
          %s4615 = scalar_lea.hbm %s4, %s4614
          %s4617 = sshll.u32 %s4607, 4
          %s4618 = int_to_ptr.vmem [resolvable:$true] %s4617
          %4620 = dma.vmem_to_hbm [thread:$0]  %s4618, 128, %s4615, %s4604
        $region56: #{tpu_custom_call.1} parent=35 // pred_fallthru
          _
      $region36: #{tpu_custom_call.1} parent=5 // pred_fallthru
        _
      %p4621 = scmp.le.s32.totalorder 2, %s22
      // Predicated region
      $region57: #{tpu_custom_call.1} parent=5 // pred_check
        %p4622 = pneg %p4621
      $region58: #{tpu_custom_call.1} parent=5 // pred_check_branch
        %4624 = sbr.rel (%p4622) target = $region60
      $region59: #{tpu_custom_call.1} parent=5 // pred_region
        %s4625 = ssub.s32 %s22, 2
        // Predicated region
        $region61: #{tpu_custom_call.1} parent=59 // pred_check
          %p4626 = pneg %p155
        $region62: #{tpu_custom_call.1} parent=59 // pred_check_branch
          %4628 = sbr.rel (%p4626) target = $region64
        $region63: #{tpu_custom_call.1} parent=59 // pred_region
          %s4629 = sand.u32 %s140, 1
          %s4630 = scalar_lea.sflag [#allocation4], %s4629
          %s4631 = sand.u32 %s140, 1
          %s4632 = smul.addr %s4631, 8
          %s4633 = scalar_lea.vmem [#allocation10], %s4632
          %4634 = dma.done %s4630, 128
        $region64: #{tpu_custom_call.1} parent=59 // pred_fallthru
          _
      $region60: #{tpu_custom_call.1} parent=5 // pred_fallthru
        _
    $region6: #{tpu_custom_call.1} parent=1 // loop_footer
      %s26 = sadd.s32 1, %s22
    $region7: #{tpu_custom_call.1} parent=1 // loop_footer_branch
      %21 = sbr.rel target = $region3
    $region8: #{tpu_custom_call.1} parent=1 // loop_exit
      _
    %4635 = vsyncpa [#allocation3], 1
    %s4636 = scalar_lea.sflag [#allocation3], 1
    %4637 = vsyncpa %s4636, 1
    %4638 = vsyncpa [#allocation6], 1
    %s4639 = scalar_lea.sflag [#allocation6], 1
    %4640 = vsyncpa %s4639, 1
    %4641 = vsyncpa [#allocation9], 1
    %s4642 = scalar_lea.sflag [#allocation9], 1
    %4643 = vsyncpa %s4642, 1
    %4644 = vsyncpa [#allocation4], 1
    %s4645 = scalar_lea.sflag [#allocation4], 1
    %4646 = vsyncpa %s4645, 1

</llo_original>
